<compile_context>
chip_gen: v5e
topology: v5e:2x2
jax: 0.10.0
libtpu: 0.0.40
codegen_flags: <defaults>
</compile_context>

<pallas_src>
import functools

import jax
import jax.numpy as jnp
from jax.experimental import pallas as pl
from jax.experimental.pallas import tpu as pltpu

EPS = 1e-5  # PyTorch BatchNorm2d default eps


# ---------------------------------------------------------------------------
# In-kernel helpers (pure jnp on values; everything static / unrolled)
# ---------------------------------------------------------------------------
def _tap_rows(a, n_batch, h_in, w_in, h_out, w_out, ky, kx):
    """Rows of the im2col patch for one (ky, kx) tap.

    `a` is a flat activation [n_batch*h_in*w_in, C] with row = (n, i, j).
    Returns [n_batch*h_out*w_out, C] whose row (n, i, j) equals a[n, i+ky, j+kx].
    All slice bounds are static -> plain contiguous VMEM slices, no gathers.
    """
    pieces = []
    for n in range(n_batch):
        for i in range(h_out):
            s = n * h_in * w_in + (i + ky) * w_in + kx
            pieces.append(a[s:s + w_out, :])
    return jnp.concatenate(pieces, axis=0)


def _bn_relu(y, gamma, beta, n_rows):
    """Training-mode BatchNorm2d (biased var) + ReLU folded into one FMA.

    One-pass stats (sum, sum-of-squares) -> per-channel scale/shift.
    Kept in f32 to avoid cancellation issues in E[y^2] - E[y]^2.
    """
    inv_m = 1.0 / float(n_rows)
    s1 = jnp.sum(y, axis=0, keepdims=True)
    s2 = jnp.sum(y * y, axis=0, keepdims=True)
    mean = s1 * inv_m
    var = s2 * inv_m - mean * mean
    scale = gamma * jax.lax.rsqrt(var + EPS)      # rsqrt -> EUP (free slot)
    shift = beta - mean * scale
    return jnp.maximum(y * scale + shift, 0.0)


# ---------------------------------------------------------------------------
# Fused kernel: conv1+bn1+relu -> conv2+bn2+relu -> conv3+bn3+relu -> head
# ---------------------------------------------------------------------------
def _convq_kernel(n_batch, h, w,
                  x_ref,
                  w1_ref, b1_ref, g1_ref, be1_ref,
                  w2_ref, b2_ref, g2_ref, be2_ref,
                  w3_ref, b3_ref, g3_ref, be3_ref,
                  wh_ref, bh_ref,
                  o_ref):
    h1, w1o = h - 2, w - 2
    h2, w2o = h1 - 2, w1o - 2
    h3, w3o = h2 - 2, w2o - 2

    # ---- layer 1: Conv2d(1, 16, 3).  Cin=1, K=9 -> 9 VPU FMAs, no MXU. ----
    x = x_ref[...]                                  # [N*H*W, 1]
    w1 = w1_ref[...]                                # [9, 16], row = ky*3 + kx
    m1 = n_batch * h1 * w1o
    y1 = jnp.zeros((m1, w1.shape[1]), jnp.float32)
    for ky in range(3):
        for kx in range(3):
            t = ky * 3 + kx
            col = _tap_rows(x, n_batch, h, w, h1, w1o, ky, kx)    # [m1, 1]
            y1 = y1 + col * w1[t:t + 1, :]           # outer-product FMA [m1,16]
    y1 = y1 + b1_ref[...]
    a1 = _bn_relu(y1, g1_ref[...], be1_ref[...], m1)              # [m1, 16]

    # ---- layer 2: Conv2d(16, 32, 3). im2col concat + one MXU matmul. ----
    m2 = n_batch * h2 * w2o
    p2 = jnp.concatenate(
        [_tap_rows(a1, n_batch, h1, w1o, h2, w2o, ky, kx)
         for ky in range(3) for kx in range(3)], axis=1)          # [m2, 144]
    y2 = jnp.dot(p2, w2_ref[...], preferred_element_type=jnp.float32)
    y2 = y2 + b2_ref[...]
    a2 = _bn_relu(y2, g2_ref[...], be2_ref[...], m2)              # [m2, 32]

    # ---- layer 3: Conv2d(32, 32, 3). ----
    m3 = n_batch * h3 * w3o
    p3 = jnp.concatenate(
        [_tap_rows(a2, n_batch, h2, w2o, h3, w3o, ky, kx)
         for ky in range(3) for kx in range(3)], axis=1)          # [m3, 288]
    y3 = jnp.dot(p3, w3_ref[...], preferred_element_type=jnp.float32)
    y3 = y3 + b3_ref[...]
    a3 = _bn_relu(y3, g3_ref[...], be3_ref[...], m3)              # [m3, 32]

    # ---- head: Linear(h3*w3*32 -> outputs). ----
    # Flatten each sample to [1, h3*w3*32] in (i, j, c) order via lane-concat;
    # the head weight was pre-permuted to match, so this is one matmul.
    rows_per_n = h3 * w3o
    flat = jnp.concatenate(
        [jnp.concatenate(
            [a3[n * rows_per_n + r:n * rows_per_n + r + 1, :]
             for r in range(rows_per_n)], axis=1)
         for n in range(n_batch)], axis=0)                        # [N, F]
    o_ref[...] = (jnp.dot(flat, wh_ref[...],
                          preferred_element_type=jnp.float32) + bh_ref[...])


# ---------------------------------------------------------------------------
# Wrapper / pallas_call
# ---------------------------------------------------------------------------
def _full_spec(shape):
    zeros = (0,) * len(shape)
    return pl.BlockSpec(shape, lambda i, z=zeros: z)


def conv_q_forward(x, params, action_space):
    """x: [N, 1, H, W] float32 (NCHW, like PyTorch). Returns [N, 2, action_space//2]."""
    n, cin, h, w = x.shape
    assert cin == 1
    x_flat = x.reshape(n * h * w, 1)

    (w1m, b1, g1, be1), (w2m, b2, g2, be2), (w3m, b3, g3, be3) = params["convs"]
    whm, bh = params["head"]
    outputs = whm.shape[1]

    args = (x_flat,
            w1m, b1, g1, be1,
            w2m, b2, g2, be2,
            w3m, b3, g3, be3,
            whm, bh)

    h1, w1o = h - 2, w - 2
    h2, w2o = h1 - 2, w1o - 2
    h3, w3o = h2 - 2, w2o - 2
    flops = 2 * (n * h1 * w1o * 9 * 16
                 + n * h2 * w2o * 144 * 32
                 + n * h3 * w3o * 288 * 32
                 + n * (h3 * w3o * 32) * outputs)
    bytes_accessed = sum(int(a.size) * 4 for a in args) + n * outputs * 4

    q = pl.pallas_call(
        functools.partial(_convq_kernel, n, h, w),
        out_shape=jax.ShapeDtypeStruct((n, outputs), jnp.float32),
        grid=(1,),
        in_specs=[_full_spec(a.shape) for a in args],
        out_specs=_full_spec((n, outputs)),
        compiler_params=pltpu.CompilerParams(
            dimension_semantics=("arbitrary",)),
        cost_estimate=pl.CostEstimate(
            flops=flops, transcendentals=80, bytes_accessed=bytes_accessed),
    )(*args)
    return q.reshape(-1, 2, action_space // 2)


# ---------------------------------------------------------------------------
# Parameters: raw (PyTorch layout) + one-time conversion to matmul-ready layout
# ---------------------------------------------------------------------------
def _conv_out(s, k=3, stride=1):
    return (s - (k - 1) - 1) // stride + 1


def init_raw_params(key, h, w, outputs):
    """PyTorch-layout parameters: conv [Cout, Cin, 3, 3], head [outputs, F]."""
    convw = _conv_out(_conv_out(_conv_out(w)))
    convh = _conv_out(_conv_out(_conv_out(h)))
    linear_in = convw * convh * 32

    keys = jax.random.split(key, 13)
    convs = []
    chans = [(1, 16), (16, 32), (32, 32)]
    ki = 0
    for cin, cout in chans:
        wgt = 0.1 * jax.random.normal(keys[ki], (cout, cin, 3, 3), jnp.float32)
        bias = 0.1 * jax.random.normal(keys[ki + 1], (cout,), jnp.float32)
        gamma = 1.0 + 0.01 * jax.random.normal(keys[ki + 2], (cout,), jnp.float32)
        beta = 0.01 * jax.random.normal(keys[ki + 3], (cout,), jnp.float32)
        convs.append((wgt, bias, gamma, beta))
        ki += 4
    kh1, kh2 = jax.random.split(keys[12])
    wh = 0.05 * jax.random.normal(kh1, (outputs, linear_in), jnp.float32)
    bh = 0.05 * jax.random.normal(kh2, (outputs,), jnp.float32)
    return {"convs": convs, "head": (wh, bh), "spatial": (convh, convw)}


def prepare_params(raw):
    """One-time conversion to the matmul-ready layouts the kernel consumes."""
    convs = []
    for (wgt, bias, gamma, beta) in raw["convs"]:
        cout, cin = wgt.shape[0], wgt.shape[1]
        # [K = 9*Cin, Cout] with row index = (ky*3 + kx)*Cin + c
        # (matches the in-kernel im2col concat order: taps-major, channel-minor).
        wm = jnp.transpose(wgt, (2, 3, 1, 0)).reshape(9 * cin, cout)
        convs.append((wm, bias.reshape(1, -1),
                      gamma.reshape(1, -1), beta.reshape(1, -1)))
    wh, bh = raw["head"]
    convh, convw = raw["spatial"]
    outputs = wh.shape[0]
    # PyTorch flattens NCHW as (c, i, j); the kernel flattens as (i, j, c).
    whm = jnp.transpose(wh.reshape(outputs, 32, convh, convw),
                        (2, 3, 1, 0)).reshape(convh * convw * 32, outputs)
    return {"convs": convs, "head": (whm, bh.reshape(1, -1))}


# ---------------------------------------------------------------------------
# Pure-JAX reference (XLA ops, no Pallas) for a correctness cross-check
# ---------------------------------------------------------------------------
def reference_forward(x, raw, action_space):
    hi = x
    for (wgt, bias, gamma, beta) in raw["convs"]:
        y = jax.lax.conv_general_dilated(
            hi, wgt, window_strides=(1, 1), padding="VALID",
            dimension_numbers=("NCHW", "OIHW", "NCHW"),
            precision=jax.lax.Precision.HIGHEST)
        y = y + bias.reshape(1, -1, 1, 1)
        mean = jnp.mean(y, axis=(0, 2, 3), keepdims=True)
        var = jnp.mean((y - mean) ** 2, axis=(0, 2, 3), keepdims=True)
        y = (y - mean) * jax.lax.rsqrt(var + EPS)
        y = y * gamma.reshape(1, -1, 1, 1) + beta.reshape(1, -1, 1, 1)
        hi = jnp.maximum(y, 0.0)
    n = hi.shape[0]
    flat = hi.reshape(n, -1)
    wh, bh = raw["head"]
    q = jnp.dot(flat, wh.T, precision=jax.lax.Precision.HIGHEST) + bh
    return q.reshape(-1, 2, action_space // 2)


# ---------------------------------------------------------------------------
if __name__ == "__main__":
    H, W = 10, 10          # battleship-style board
    N = 2                  # batch
    OUTPUTS = 8            # action_space (must be even)

    key = jax.random.PRNGKey(0)
    k_x, k_p = jax.random.split(key)
    x = jax.random.normal(k_x, (N, 1, H, W), jnp.float32)

    raw = init_raw_params(k_p, H, W, OUTPUTS)
    params = prepare_params(raw)   # matmul-ready weights, computed once

    fwd = jax.jit(lambda xx: conv_q_forward(xx, params, OUTPUTS))
    out = fwd(x)
    jax.block_until_ready(out)
    assert out.shape == (N, 2, OUTPUTS // 2), out.shape

    # Cross-check the fused kernel against a plain XLA implementation.
    ref = reference_forward(x, raw, OUTPUTS)
    err = float(jnp.max(jnp.abs(out - ref)))
    assert err < 2e-2, f"kernel/reference mismatch: max abs err = {err}"

    print("KERNEL_OK")
</pallas_src>

<mosaic_0001>
module attributes {stable_mosaic.version = 11 : i64} {
  func.func @_convq_kernel(%arg0: i32, %arg1: memref<200x1xf32, #tpu.memory_space<vmem>>, %arg2: memref<9x16xf32, #tpu.memory_space<vmem>>, %arg3: memref<1x16xf32, #tpu.memory_space<vmem>>, %arg4: memref<1x16xf32, #tpu.memory_space<vmem>>, %arg5: memref<1x16xf32, #tpu.memory_space<vmem>>, %arg6: memref<144x32xf32, #tpu.memory_space<vmem>>, %arg7: memref<1x32xf32, #tpu.memory_space<vmem>>, %arg8: memref<1x32xf32, #tpu.memory_space<vmem>>, %arg9: memref<1x32xf32, #tpu.memory_space<vmem>>, %arg10: memref<288x32xf32, #tpu.memory_space<vmem>>, %arg11: memref<1x32xf32, #tpu.memory_space<vmem>>, %arg12: memref<1x32xf32, #tpu.memory_space<vmem>>, %arg13: memref<1x32xf32, #tpu.memory_space<vmem>>, %arg14: memref<512x8xf32, #tpu.memory_space<vmem>>, %arg15: memref<1x8xf32, #tpu.memory_space<vmem>>, %arg16: memref<2x8xf32, #tpu.memory_space<vmem>>) attributes {dimension_semantics = [#tpu.dimension_semantics<arbitrary>], iteration_bounds = array<i64: 1>, scalar_prefetch = 0 : i64, scratch_operands = 0 : i64, tpu.core_type = #tpu.core_type<tc>, window_params = [{pipeline_mode = #tpu.pipeline_mode<synchronous>, transform_indices = @transform_0, window_bounds = array<i64: 200, 1>}, {pipeline_mode = #tpu.pipeline_mode<synchronous>, transform_indices = @transform_1, window_bounds = array<i64: 9, 16>}, {pipeline_mode = #tpu.pipeline_mode<synchronous>, transform_indices = @transform_2, window_bounds = array<i64: 1, 16>}, {pipeline_mode = #tpu.pipeline_mode<synchronous>, transform_indices = @transform_3, window_bounds = array<i64: 1, 16>}, {pipeline_mode = #tpu.pipeline_mode<synchronous>, transform_indices = @transform_4, window_bounds = array<i64: 1, 16>}, {pipeline_mode = #tpu.pipeline_mode<synchronous>, transform_indices = @transform_5, window_bounds = array<i64: 144, 32>}, {pipeline_mode = #tpu.pipeline_mode<synchronous>, transform_indices = @transform_6, window_bounds = array<i64: 1, 32>}, {pipeline_mode = #tpu.pipeline_mode<synchronous>, transform_indices = @transform_7, window_bounds = array<i64: 1, 32>}, {pipeline_mode = #tpu.pipeline_mode<synchronous>, transform_indices = @transform_8, window_bounds = array<i64: 1, 32>}, {pipeline_mode = #tpu.pipeline_mode<synchronous>, transform_indices = @transform_9, window_bounds = array<i64: 288, 32>}, {pipeline_mode = #tpu.pipeline_mode<synchronous>, transform_indices = @transform_10, window_bounds = array<i64: 1, 32>}, {pipeline_mode = #tpu.pipeline_mode<synchronous>, transform_indices = @transform_11, window_bounds = array<i64: 1, 32>}, {pipeline_mode = #tpu.pipeline_mode<synchronous>, transform_indices = @transform_12, window_bounds = array<i64: 1, 32>}, {pipeline_mode = #tpu.pipeline_mode<synchronous>, transform_indices = @transform_13, window_bounds = array<i64: 512, 8>}, {pipeline_mode = #tpu.pipeline_mode<synchronous>, transform_indices = @transform_14, window_bounds = array<i64: 1, 8>}, {pipeline_mode = #tpu.pipeline_mode<synchronous>, transform_indices = @transform_15, window_bounds = array<i64: 2, 8>}]} {
    %c0 = arith.constant 0 : index
    %c0_0 = arith.constant 0 : index
    %0 = vector.load %arg1[%c0, %c0_0] : memref<200x1xf32, #tpu.memory_space<vmem>>, vector<200x1xf32>
    %c0_1 = arith.constant 0 : index
    %c0_2 = arith.constant 0 : index
    %1 = vector.load %arg2[%c0_1, %c0_2] : memref<9x16xf32, #tpu.memory_space<vmem>>, vector<9x16xf32>
    %cst = arith.constant 0.000000e+00 : f32
    %2 = vector.broadcast %cst : f32 to vector<128x16xf32>
    %3 = vector.extract_strided_slice %0 {offsets = [0, 0], sizes = [8, 1], strides = [1, 1]} : vector<200x1xf32> to vector<8x1xf32>
    %4 = vector.extract_strided_slice %0 {offsets = [10, 0], sizes = [8, 1], strides = [1, 1]} : vector<200x1xf32> to vector<8x1xf32>
    %5 = vector.extract_strided_slice %0 {offsets = [20, 0], sizes = [8, 1], strides = [1, 1]} : vector<200x1xf32> to vector<8x1xf32>
    %6 = vector.extract_strided_slice %0 {offsets = [30, 0], sizes = [8, 1], strides = [1, 1]} : vector<200x1xf32> to vector<8x1xf32>
    %7 = vector.extract_strided_slice %0 {offsets = [40, 0], sizes = [8, 1], strides = [1, 1]} : vector<200x1xf32> to vector<8x1xf32>
    %8 = vector.extract_strided_slice %0 {offsets = [50, 0], sizes = [8, 1], strides = [1, 1]} : vector<200x1xf32> to vector<8x1xf32>
    %9 = vector.extract_strided_slice %0 {offsets = [60, 0], sizes = [8, 1], strides = [1, 1]} : vector<200x1xf32> to vector<8x1xf32>
    %10 = vector.extract_strided_slice %0 {offsets = [70, 0], sizes = [8, 1], strides = [1, 1]} : vector<200x1xf32> to vector<8x1xf32>
    %11 = vector.extract_strided_slice %0 {offsets = [100, 0], sizes = [8, 1], strides = [1, 1]} : vector<200x1xf32> to vector<8x1xf32>
    %12 = vector.extract_strided_slice %0 {offsets = [110, 0], sizes = [8, 1], strides = [1, 1]} : vector<200x1xf32> to vector<8x1xf32>
    %13 = vector.extract_strided_slice %0 {offsets = [120, 0], sizes = [8, 1], strides = [1, 1]} : vector<200x1xf32> to vector<8x1xf32>
    %14 = vector.extract_strided_slice %0 {offsets = [130, 0], sizes = [8, 1], strides = [1, 1]} : vector<200x1xf32> to vector<8x1xf32>
    %15 = vector.extract_strided_slice %0 {offsets = [140, 0], sizes = [8, 1], strides = [1, 1]} : vector<200x1xf32> to vector<8x1xf32>
    %16 = vector.extract_strided_slice %0 {offsets = [150, 0], sizes = [8, 1], strides = [1, 1]} : vector<200x1xf32> to vector<8x1xf32>
    %17 = vector.extract_strided_slice %0 {offsets = [160, 0], sizes = [8, 1], strides = [1, 1]} : vector<200x1xf32> to vector<8x1xf32>
    %18 = vector.extract_strided_slice %0 {offsets = [170, 0], sizes = [8, 1], strides = [1, 1]} : vector<200x1xf32> to vector<8x1xf32>
    %19 = tpu.concatenate %3, %4, %5, %6, %7, %8, %9, %10, %11, %12, %13, %14, %15, %16, %17, %18 in 0 : vector<8x1xf32>, vector<8x1xf32>, vector<8x1xf32>, vector<8x1xf32>, vector<8x1xf32>, vector<8x1xf32>, vector<8x1xf32>, vector<8x1xf32>, vector<8x1xf32>, vector<8x1xf32>, vector<8x1xf32>, vector<8x1xf32>, vector<8x1xf32>, vector<8x1xf32>, vector<8x1xf32>, vector<8x1xf32> -> vector<128x1xf32>
    %20 = vector.extract_strided_slice %1 {offsets = [0, 0], sizes = [1, 16], strides = [1, 1]} : vector<9x16xf32> to vector<1x16xf32>
    %21 = vector.broadcast %19 : vector<128x1xf32> to vector<128x16xf32>
    %22 = vector.broadcast %20 : vector<1x16xf32> to vector<128x16xf32>
    %23 = arith.mulf %21, %22 : vector<128x16xf32>
    %24 = arith.addf %2, %23 : vector<128x16xf32>
    %25 = vector.extract_strided_slice %0 {offsets = [1, 0], sizes = [8, 1], strides = [1, 1]} : vector<200x1xf32> to vector<8x1xf32>
    %26 = vector.extract_strided_slice %0 {offsets = [11, 0], sizes = [8, 1], strides = [1, 1]} : vector<200x1xf32> to vector<8x1xf32>
    %27 = vector.extract_strided_slice %0 {offsets = [21, 0], sizes = [8, 1], strides = [1, 1]} : vector<200x1xf32> to vector<8x1xf32>
    %28 = vector.extract_strided_slice %0 {offsets = [31, 0], sizes = [8, 1], strides = [1, 1]} : vector<200x1xf32> to vector<8x1xf32>
    %29 = vector.extract_strided_slice %0 {offsets = [41, 0], sizes = [8, 1], strides = [1, 1]} : vector<200x1xf32> to vector<8x1xf32>
    %30 = vector.extract_strided_slice %0 {offsets = [51, 0], sizes = [8, 1], strides = [1, 1]} : vector<200x1xf32> to vector<8x1xf32>
    %31 = vector.extract_strided_slice %0 {offsets = [61, 0], sizes = [8, 1], strides = [1, 1]} : vector<200x1xf32> to vector<8x1xf32>
    %32 = vector.extract_strided_slice %0 {offsets = [71, 0], sizes = [8, 1], strides = [1, 1]} : vector<200x1xf32> to vector<8x1xf32>
    %33 = vector.extract_strided_slice %0 {offsets = [101, 0], sizes = [8, 1], strides = [1, 1]} : vector<200x1xf32> to vector<8x1xf32>
    %34 = vector.extract_strided_slice %0 {offsets = [111, 0], sizes = [8, 1], strides = [1, 1]} : vector<200x1xf32> to vector<8x1xf32>
    %35 = vector.extract_strided_slice %0 {offsets = [121, 0], sizes = [8, 1], strides = [1, 1]} : vector<200x1xf32> to vector<8x1xf32>
    %36 = vector.extract_strided_slice %0 {offsets = [131, 0], sizes = [8, 1], strides = [1, 1]} : vector<200x1xf32> to vector<8x1xf32>
    %37 = vector.extract_strided_slice %0 {offsets = [141, 0], sizes = [8, 1], strides = [1, 1]} : vector<200x1xf32> to vector<8x1xf32>
    %38 = vector.extract_strided_slice %0 {offsets = [151, 0], sizes = [8, 1], strides = [1, 1]} : vector<200x1xf32> to vector<8x1xf32>
    %39 = vector.extract_strided_slice %0 {offsets = [161, 0], sizes = [8, 1], strides = [1, 1]} : vector<200x1xf32> to vector<8x1xf32>
    %40 = vector.extract_strided_slice %0 {offsets = [171, 0], sizes = [8, 1], strides = [1, 1]} : vector<200x1xf32> to vector<8x1xf32>
    %41 = tpu.concatenate %25, %26, %27, %28, %29, %30, %31, %32, %33, %34, %35, %36, %37, %38, %39, %40 in 0 : vector<8x1xf32>, vector<8x1xf32>, vector<8x1xf32>, vector<8x1xf32>, vector<8x1xf32>, vector<8x1xf32>, vector<8x1xf32>, vector<8x1xf32>, vector<8x1xf32>, vector<8x1xf32>, vector<8x1xf32>, vector<8x1xf32>, vector<8x1xf32>, vector<8x1xf32>, vector<8x1xf32>, vector<8x1xf32> -> vector<128x1xf32>
    %42 = vector.extract_strided_slice %1 {offsets = [1, 0], sizes = [1, 16], strides = [1, 1]} : vector<9x16xf32> to vector<1x16xf32>
    %43 = vector.broadcast %41 : vector<128x1xf32> to vector<128x16xf32>
    %44 = vector.broadcast %42 : vector<1x16xf32> to vector<128x16xf32>
    %45 = arith.mulf %43, %44 : vector<128x16xf32>
    %46 = arith.addf %24, %45 : vector<128x16xf32>
    %47 = vector.extract_strided_slice %0 {offsets = [2, 0], sizes = [8, 1], strides = [1, 1]} : vector<200x1xf32> to vector<8x1xf32>
    %48 = vector.extract_strided_slice %0 {offsets = [12, 0], sizes = [8, 1], strides = [1, 1]} : vector<200x1xf32> to vector<8x1xf32>
    %49 = vector.extract_strided_slice %0 {offsets = [22, 0], sizes = [8, 1], strides = [1, 1]} : vector<200x1xf32> to vector<8x1xf32>
    %50 = vector.extract_strided_slice %0 {offsets = [32, 0], sizes = [8, 1], strides = [1, 1]} : vector<200x1xf32> to vector<8x1xf32>
    %51 = vector.extract_strided_slice %0 {offsets = [42, 0], sizes = [8, 1], strides = [1, 1]} : vector<200x1xf32> to vector<8x1xf32>
    %52 = vector.extract_strided_slice %0 {offsets = [52, 0], sizes = [8, 1], strides = [1, 1]} : vector<200x1xf32> to vector<8x1xf32>
    %53 = vector.extract_strided_slice %0 {offsets = [62, 0], sizes = [8, 1], strides = [1, 1]} : vector<200x1xf32> to vector<8x1xf32>
    %54 = vector.extract_strided_slice %0 {offsets = [72, 0], sizes = [8, 1], strides = [1, 1]} : vector<200x1xf32> to vector<8x1xf32>
    %55 = vector.extract_strided_slice %0 {offsets = [102, 0], sizes = [8, 1], strides = [1, 1]} : vector<200x1xf32> to vector<8x1xf32>
    %56 = vector.extract_strided_slice %0 {offsets = [112, 0], sizes = [8, 1], strides = [1, 1]} : vector<200x1xf32> to vector<8x1xf32>
    %57 = vector.extract_strided_slice %0 {offsets = [122, 0], sizes = [8, 1], strides = [1, 1]} : vector<200x1xf32> to vector<8x1xf32>
    %58 = vector.extract_strided_slice %0 {offsets = [132, 0], sizes = [8, 1], strides = [1, 1]} : vector<200x1xf32> to vector<8x1xf32>
    %59 = vector.extract_strided_slice %0 {offsets = [142, 0], sizes = [8, 1], strides = [1, 1]} : vector<200x1xf32> to vector<8x1xf32>
    %60 = vector.extract_strided_slice %0 {offsets = [152, 0], sizes = [8, 1], strides = [1, 1]} : vector<200x1xf32> to vector<8x1xf32>
    %61 = vector.extract_strided_slice %0 {offsets = [162, 0], sizes = [8, 1], strides = [1, 1]} : vector<200x1xf32> to vector<8x1xf32>
    %62 = vector.extract_strided_slice %0 {offsets = [172, 0], sizes = [8, 1], strides = [1, 1]} : vector<200x1xf32> to vector<8x1xf32>
    %63 = tpu.concatenate %47, %48, %49, %50, %51, %52, %53, %54, %55, %56, %57, %58, %59, %60, %61, %62 in 0 : vector<8x1xf32>, vector<8x1xf32>, vector<8x1xf32>, vector<8x1xf32>, vector<8x1xf32>, vector<8x1xf32>, vector<8x1xf32>, vector<8x1xf32>, vector<8x1xf32>, vector<8x1xf32>, vector<8x1xf32>, vector<8x1xf32>, vector<8x1xf32>, vector<8x1xf32>, vector<8x1xf32>, vector<8x1xf32> -> vector<128x1xf32>
    %64 = vector.extract_strided_slice %1 {offsets = [2, 0], sizes = [1, 16], strides = [1, 1]} : vector<9x16xf32> to vector<1x16xf32>
    %65 = vector.broadcast %63 : vector<128x1xf32> to vector<128x16xf32>
    %66 = vector.broadcast %64 : vector<1x16xf32> to vector<128x16xf32>
    %67 = arith.mulf %65, %66 : vector<128x16xf32>
    %68 = arith.addf %46, %67 : vector<128x16xf32>
    %69 = vector.extract_strided_slice %0 {offsets = [10, 0], sizes = [8, 1], strides = [1, 1]} : vector<200x1xf32> to vector<8x1xf32>
    %70 = vector.extract_strided_slice %0 {offsets = [20, 0], sizes = [8, 1], strides = [1, 1]} : vector<200x1xf32> to vector<8x1xf32>
    %71 = vector.extract_strided_slice %0 {offsets = [30, 0], sizes = [8, 1], strides = [1, 1]} : vector<200x1xf32> to vector<8x1xf32>
    %72 = vector.extract_strided_slice %0 {offsets = [40, 0], sizes = [8, 1], strides = [1, 1]} : vector<200x1xf32> to vector<8x1xf32>
    %73 = vector.extract_strided_slice %0 {offsets = [50, 0], sizes = [8, 1], strides = [1, 1]} : vector<200x1xf32> to vector<8x1xf32>
    %74 = vector.extract_strided_slice %0 {offsets = [60, 0], sizes = [8, 1], strides = [1, 1]} : vector<200x1xf32> to vector<8x1xf32>
    %75 = vector.extract_strided_slice %0 {offsets = [70, 0], sizes = [8, 1], strides = [1, 1]} : vector<200x1xf32> to vector<8x1xf32>
    %76 = vector.extract_strided_slice %0 {offsets = [80, 0], sizes = [8, 1], strides = [1, 1]} : vector<200x1xf32> to vector<8x1xf32>
    %77 = vector.extract_strided_slice %0 {offsets = [110, 0], sizes = [8, 1], strides = [1, 1]} : vector<200x1xf32> to vector<8x1xf32>
    %78 = vector.extract_strided_slice %0 {offsets = [120, 0], sizes = [8, 1], strides = [1, 1]} : vector<200x1xf32> to vector<8x1xf32>
    %79 = vector.extract_strided_slice %0 {offsets = [130, 0], sizes = [8, 1], strides = [1, 1]} : vector<200x1xf32> to vector<8x1xf32>
    %80 = vector.extract_strided_slice %0 {offsets = [140, 0], sizes = [8, 1], strides = [1, 1]} : vector<200x1xf32> to vector<8x1xf32>
    %81 = vector.extract_strided_slice %0 {offsets = [150, 0], sizes = [8, 1], strides = [1, 1]} : vector<200x1xf32> to vector<8x1xf32>
    %82 = vector.extract_strided_slice %0 {offsets = [160, 0], sizes = [8, 1], strides = [1, 1]} : vector<200x1xf32> to vector<8x1xf32>
    %83 = vector.extract_strided_slice %0 {offsets = [170, 0], sizes = [8, 1], strides = [1, 1]} : vector<200x1xf32> to vector<8x1xf32>
    %84 = vector.extract_strided_slice %0 {offsets = [180, 0], sizes = [8, 1], strides = [1, 1]} : vector<200x1xf32> to vector<8x1xf32>
    %85 = tpu.concatenate %69, %70, %71, %72, %73, %74, %75, %76, %77, %78, %79, %80, %81, %82, %83, %84 in 0 : vector<8x1xf32>, vector<8x1xf32>, vector<8x1xf32>, vector<8x1xf32>, vector<8x1xf32>, vector<8x1xf32>, vector<8x1xf32>, vector<8x1xf32>, vector<8x1xf32>, vector<8x1xf32>, vector<8x1xf32>, vector<8x1xf32>, vector<8x1xf32>, vector<8x1xf32>, vector<8x1xf32>, vector<8x1xf32> -> vector<128x1xf32>
    %86 = vector.extract_strided_slice %1 {offsets = [3, 0], sizes = [1, 16], strides = [1, 1]} : vector<9x16xf32> to vector<1x16xf32>
    %87 = vector.broadcast %85 : vector<128x1xf32> to vector<128x16xf32>
    %88 = vector.broadcast %86 : vector<1x16xf32> to vector<128x16xf32>
    %89 = arith.mulf %87, %88 : vector<128x16xf32>
    %90 = arith.addf %68, %89 : vector<128x16xf32>
    %91 = vector.extract_strided_slice %0 {offsets = [11, 0], sizes = [8, 1], strides = [1, 1]} : vector<200x1xf32> to vector<8x1xf32>
    %92 = vector.extract_strided_slice %0 {offsets = [21, 0], sizes = [8, 1], strides = [1, 1]} : vector<200x1xf32> to vector<8x1xf32>
    %93 = vector.extract_strided_slice %0 {offsets = [31, 0], sizes = [8, 1], strides = [1, 1]} : vector<200x1xf32> to vector<8x1xf32>
    %94 = vector.extract_strided_slice %0 {offsets = [41, 0], sizes = [8, 1], strides = [1, 1]} : vector<200x1xf32> to vector<8x1xf32>
    %95 = vector.extract_strided_slice %0 {offsets = [51, 0], sizes = [8, 1], strides = [1, 1]} : vector<200x1xf32> to vector<8x1xf32>
    %96 = vector.extract_strided_slice %0 {offsets = [61, 0], sizes = [8, 1], strides = [1, 1]} : vector<200x1xf32> to vector<8x1xf32>
    %97 = vector.extract_strided_slice %0 {offsets = [71, 0], sizes = [8, 1], strides = [1, 1]} : vector<200x1xf32> to vector<8x1xf32>
    %98 = vector.extract_strided_slice %0 {offsets = [81, 0], sizes = [8, 1], strides = [1, 1]} : vector<200x1xf32> to vector<8x1xf32>
    %99 = vector.extract_strided_slice %0 {offsets = [111, 0], sizes = [8, 1], strides = [1, 1]} : vector<200x1xf32> to vector<8x1xf32>
    %100 = vector.extract_strided_slice %0 {offsets = [121, 0], sizes = [8, 1], strides = [1, 1]} : vector<200x1xf32> to vector<8x1xf32>
    %101 = vector.extract_strided_slice %0 {offsets = [131, 0], sizes = [8, 1], strides = [1, 1]} : vector<200x1xf32> to vector<8x1xf32>
    %102 = vector.extract_strided_slice %0 {offsets = [141, 0], sizes = [8, 1], strides = [1, 1]} : vector<200x1xf32> to vector<8x1xf32>
    %103 = vector.extract_strided_slice %0 {offsets = [151, 0], sizes = [8, 1], strides = [1, 1]} : vector<200x1xf32> to vector<8x1xf32>
    %104 = vector.extract_strided_slice %0 {offsets = [161, 0], sizes = [8, 1], strides = [1, 1]} : vector<200x1xf32> to vector<8x1xf32>
    %105 = vector.extract_strided_slice %0 {offsets = [171, 0], sizes = [8, 1], strides = [1, 1]} : vector<200x1xf32> to vector<8x1xf32>
    %106 = vector.extract_strided_slice %0 {offsets = [181, 0], sizes = [8, 1], strides = [1, 1]} : vector<200x1xf32> to vector<8x1xf32>
    %107 = tpu.concatenate %91, %92, %93, %94, %95, %96, %97, %98, %99, %100, %101, %102, %103, %104, %105, %106 in 0 : vector<8x1xf32>, vector<8x1xf32>, vector<8x1xf32>, vector<8x1xf32>, vector<8x1xf32>, vector<8x1xf32>, vector<8x1xf32>, vector<8x1xf32>, vector<8x1xf32>, vector<8x1xf32>, vector<8x1xf32>, vector<8x1xf32>, vector<8x1xf32>, vector<8x1xf32>, vector<8x1xf32>, vector<8x1xf32> -> vector<128x1xf32>
    %108 = vector.extract_strided_slice %1 {offsets = [4, 0], sizes = [1, 16], strides = [1, 1]} : vector<9x16xf32> to vector<1x16xf32>
    %109 = vector.broadcast %107 : vector<128x1xf32> to vector<128x16xf32>
    %110 = vector.broadcast %108 : vector<1x16xf32> to vector<128x16xf32>
    %111 = arith.mulf %109, %110 : vector<128x16xf32>
    %112 = arith.addf %90, %111 : vector<128x16xf32>
    %113 = vector.extract_strided_slice %0 {offsets = [12, 0], sizes = [8, 1], strides = [1, 1]} : vector<200x1xf32> to vector<8x1xf32>
    %114 = vector.extract_strided_slice %0 {offsets = [22, 0], sizes = [8, 1], strides = [1, 1]} : vector<200x1xf32> to vector<8x1xf32>
    %115 = vector.extract_strided_slice %0 {offsets = [32, 0], sizes = [8, 1], strides = [1, 1]} : vector<200x1xf32> to vector<8x1xf32>
    %116 = vector.extract_strided_slice %0 {offsets = [42, 0], sizes = [8, 1], strides = [1, 1]} : vector<200x1xf32> to vector<8x1xf32>
    %117 = vector.extract_strided_slice %0 {offsets = [52, 0], sizes = [8, 1], strides = [1, 1]} : vector<200x1xf32> to vector<8x1xf32>
    %118 = vector.extract_strided_slice %0 {offsets = [62, 0], sizes = [8, 1], strides = [1, 1]} : vector<200x1xf32> to vector<8x1xf32>
    %119 = vector.extract_strided_slice %0 {offsets = [72, 0], sizes = [8, 1], strides = [1, 1]} : vector<200x1xf32> to vector<8x1xf32>
    %120 = vector.extract_strided_slice %0 {offsets = [82, 0], sizes = [8, 1], strides = [1, 1]} : vector<200x1xf32> to vector<8x1xf32>
    %121 = vector.extract_strided_slice %0 {offsets = [112, 0], sizes = [8, 1], strides = [1, 1]} : vector<200x1xf32> to vector<8x1xf32>
    %122 = vector.extract_strided_slice %0 {offsets = [122, 0], sizes = [8, 1], strides = [1, 1]} : vector<200x1xf32> to vector<8x1xf32>
    %123 = vector.extract_strided_slice %0 {offsets = [132, 0], sizes = [8, 1], strides = [1, 1]} : vector<200x1xf32> to vector<8x1xf32>
    %124 = vector.extract_strided_slice %0 {offsets = [142, 0], sizes = [8, 1], strides = [1, 1]} : vector<200x1xf32> to vector<8x1xf32>
    %125 = vector.extract_strided_slice %0 {offsets = [152, 0], sizes = [8, 1], strides = [1, 1]} : vector<200x1xf32> to vector<8x1xf32>
    %126 = vector.extract_strided_slice %0 {offsets = [162, 0], sizes = [8, 1], strides = [1, 1]} : vector<200x1xf32> to vector<8x1xf32>
    %127 = vector.extract_strided_slice %0 {offsets = [172, 0], sizes = [8, 1], strides = [1, 1]} : vector<200x1xf32> to vector<8x1xf32>
    %128 = vector.extract_strided_slice %0 {offsets = [182, 0], sizes = [8, 1], strides = [1, 1]} : vector<200x1xf32> to vector<8x1xf32>
    %129 = tpu.concatenate %113, %114, %115, %116, %117, %118, %119, %120, %121, %122, %123, %124, %125, %126, %127, %128 in 0 : vector<8x1xf32>, vector<8x1xf32>, vector<8x1xf32>, vector<8x1xf32>, vector<8x1xf32>, vector<8x1xf32>, vector<8x1xf32>, vector<8x1xf32>, vector<8x1xf32>, vector<8x1xf32>, vector<8x1xf32>, vector<8x1xf32>, vector<8x1xf32>, vector<8x1xf32>, vector<8x1xf32>, vector<8x1xf32> -> vector<128x1xf32>
    %130 = vector.extract_strided_slice %1 {offsets = [5, 0], sizes = [1, 16], strides = [1, 1]} : vector<9x16xf32> to vector<1x16xf32>
    %131 = vector.broadcast %129 : vector<128x1xf32> to vector<128x16xf32>
    %132 = vector.broadcast %130 : vector<1x16xf32> to vector<128x16xf32>
    %133 = arith.mulf %131, %132 : vector<128x16xf32>
    %134 = arith.addf %112, %133 : vector<128x16xf32>
    %135 = vector.extract_strided_slice %0 {offsets = [20, 0], sizes = [8, 1], strides = [1, 1]} : vector<200x1xf32> to vector<8x1xf32>
    %136 = vector.extract_strided_slice %0 {offsets = [30, 0], sizes = [8, 1], strides = [1, 1]} : vector<200x1xf32> to vector<8x1xf32>
    %137 = vector.extract_strided_slice %0 {offsets = [40, 0], sizes = [8, 1], strides = [1, 1]} : vector<200x1xf32> to vector<8x1xf32>
    %138 = vector.extract_strided_slice %0 {offsets = [50, 0], sizes = [8, 1], strides = [1, 1]} : vector<200x1xf32> to vector<8x1xf32>
    %139 = vector.extract_strided_slice %0 {offsets = [60, 0], sizes = [8, 1], strides = [1, 1]} : vector<200x1xf32> to vector<8x1xf32>
    %140 = vector.extract_strided_slice %0 {offsets = [70, 0], sizes = [8, 1], strides = [1, 1]} : vector<200x1xf32> to vector<8x1xf32>
    %141 = vector.extract_strided_slice %0 {offsets = [80, 0], sizes = [8, 1], strides = [1, 1]} : vector<200x1xf32> to vector<8x1xf32>
    %142 = vector.extract_strided_slice %0 {offsets = [90, 0], sizes = [8, 1], strides = [1, 1]} : vector<200x1xf32> to vector<8x1xf32>
    %143 = vector.extract_strided_slice %0 {offsets = [120, 0], sizes = [8, 1], strides = [1, 1]} : vector<200x1xf32> to vector<8x1xf32>
    %144 = vector.extract_strided_slice %0 {offsets = [130, 0], sizes = [8, 1], strides = [1, 1]} : vector<200x1xf32> to vector<8x1xf32>
    %145 = vector.extract_strided_slice %0 {offsets = [140, 0], sizes = [8, 1], strides = [1, 1]} : vector<200x1xf32> to vector<8x1xf32>
    %146 = vector.extract_strided_slice %0 {offsets = [150, 0], sizes = [8, 1], strides = [1, 1]} : vector<200x1xf32> to vector<8x1xf32>
    %147 = vector.extract_strided_slice %0 {offsets = [160, 0], sizes = [8, 1], strides = [1, 1]} : vector<200x1xf32> to vector<8x1xf32>
    %148 = vector.extract_strided_slice %0 {offsets = [170, 0], sizes = [8, 1], strides = [1, 1]} : vector<200x1xf32> to vector<8x1xf32>
    %149 = vector.extract_strided_slice %0 {offsets = [180, 0], sizes = [8, 1], strides = [1, 1]} : vector<200x1xf32> to vector<8x1xf32>
    %150 = vector.extract_strided_slice %0 {offsets = [190, 0], sizes = [8, 1], strides = [1, 1]} : vector<200x1xf32> to vector<8x1xf32>
    %151 = tpu.concatenate %135, %136, %137, %138, %139, %140, %141, %142, %143, %144, %145, %146, %147, %148, %149, %150 in 0 : vector<8x1xf32>, vector<8x1xf32>, vector<8x1xf32>, vector<8x1xf32>, vector<8x1xf32>, vector<8x1xf32>, vector<8x1xf32>, vector<8x1xf32>, vector<8x1xf32>, vector<8x1xf32>, vector<8x1xf32>, vector<8x1xf32>, vector<8x1xf32>, vector<8x1xf32>, vector<8x1xf32>, vector<8x1xf32> -> vector<128x1xf32>
    %152 = vector.extract_strided_slice %1 {offsets = [6, 0], sizes = [1, 16], strides = [1, 1]} : vector<9x16xf32> to vector<1x16xf32>
    %153 = vector.broadcast %151 : vector<128x1xf32> to vector<128x16xf32>
    %154 = vector.broadcast %152 : vector<1x16xf32> to vector<128x16xf32>
    %155 = arith.mulf %153, %154 : vector<128x16xf32>
    %156 = arith.addf %134, %155 : vector<128x16xf32>
    %157 = vector.extract_strided_slice %0 {offsets = [21, 0], sizes = [8, 1], strides = [1, 1]} : vector<200x1xf32> to vector<8x1xf32>
    %158 = vector.extract_strided_slice %0 {offsets = [31, 0], sizes = [8, 1], strides = [1, 1]} : vector<200x1xf32> to vector<8x1xf32>
    %159 = vector.extract_strided_slice %0 {offsets = [41, 0], sizes = [8, 1], strides = [1, 1]} : vector<200x1xf32> to vector<8x1xf32>
    %160 = vector.extract_strided_slice %0 {offsets = [51, 0], sizes = [8, 1], strides = [1, 1]} : vector<200x1xf32> to vector<8x1xf32>
    %161 = vector.extract_strided_slice %0 {offsets = [61, 0], sizes = [8, 1], strides = [1, 1]} : vector<200x1xf32> to vector<8x1xf32>
    %162 = vector.extract_strided_slice %0 {offsets = [71, 0], sizes = [8, 1], strides = [1, 1]} : vector<200x1xf32> to vector<8x1xf32>
    %163 = vector.extract_strided_slice %0 {offsets = [81, 0], sizes = [8, 1], strides = [1, 1]} : vector<200x1xf32> to vector<8x1xf32>
    %164 = vector.extract_strided_slice %0 {offsets = [91, 0], sizes = [8, 1], strides = [1, 1]} : vector<200x1xf32> to vector<8x1xf32>
    %165 = vector.extract_strided_slice %0 {offsets = [121, 0], sizes = [8, 1], strides = [1, 1]} : vector<200x1xf32> to vector<8x1xf32>
    %166 = vector.extract_strided_slice %0 {offsets = [131, 0], sizes = [8, 1], strides = [1, 1]} : vector<200x1xf32> to vector<8x1xf32>
    %167 = vector.extract_strided_slice %0 {offsets = [141, 0], sizes = [8, 1], strides = [1, 1]} : vector<200x1xf32> to vector<8x1xf32>
    %168 = vector.extract_strided_slice %0 {offsets = [151, 0], sizes = [8, 1], strides = [1, 1]} : vector<200x1xf32> to vector<8x1xf32>
    %169 = vector.extract_strided_slice %0 {offsets = [161, 0], sizes = [8, 1], strides = [1, 1]} : vector<200x1xf32> to vector<8x1xf32>
    %170 = vector.extract_strided_slice %0 {offsets = [171, 0], sizes = [8, 1], strides = [1, 1]} : vector<200x1xf32> to vector<8x1xf32>
    %171 = vector.extract_strided_slice %0 {offsets = [181, 0], sizes = [8, 1], strides = [1, 1]} : vector<200x1xf32> to vector<8x1xf32>
    %172 = vector.extract_strided_slice %0 {offsets = [191, 0], sizes = [8, 1], strides = [1, 1]} : vector<200x1xf32> to vector<8x1xf32>
    %173 = tpu.concatenate %157, %158, %159, %160, %161, %162, %163, %164, %165, %166, %167, %168, %169, %170, %171, %172 in 0 : vector<8x1xf32>, vector<8x1xf32>, vector<8x1xf32>, vector<8x1xf32>, vector<8x1xf32>, vector<8x1xf32>, vector<8x1xf32>, vector<8x1xf32>, vector<8x1xf32>, vector<8x1xf32>, vector<8x1xf32>, vector<8x1xf32>, vector<8x1xf32>, vector<8x1xf32>, vector<8x1xf32>, vector<8x1xf32> -> vector<128x1xf32>
    %174 = vector.extract_strided_slice %1 {offsets = [7, 0], sizes = [1, 16], strides = [1, 1]} : vector<9x16xf32> to vector<1x16xf32>
    %175 = vector.broadcast %173 : vector<128x1xf32> to vector<128x16xf32>
    %176 = vector.broadcast %174 : vector<1x16xf32> to vector<128x16xf32>
    %177 = arith.mulf %175, %176 : vector<128x16xf32>
    %178 = arith.addf %156, %177 : vector<128x16xf32>
    %179 = vector.extract_strided_slice %0 {offsets = [22, 0], sizes = [8, 1], strides = [1, 1]} : vector<200x1xf32> to vector<8x1xf32>
    %180 = vector.extract_strided_slice %0 {offsets = [32, 0], sizes = [8, 1], strides = [1, 1]} : vector<200x1xf32> to vector<8x1xf32>
    %181 = vector.extract_strided_slice %0 {offsets = [42, 0], sizes = [8, 1], strides = [1, 1]} : vector<200x1xf32> to vector<8x1xf32>
    %182 = vector.extract_strided_slice %0 {offsets = [52, 0], sizes = [8, 1], strides = [1, 1]} : vector<200x1xf32> to vector<8x1xf32>
    %183 = vector.extract_strided_slice %0 {offsets = [62, 0], sizes = [8, 1], strides = [1, 1]} : vector<200x1xf32> to vector<8x1xf32>
    %184 = vector.extract_strided_slice %0 {offsets = [72, 0], sizes = [8, 1], strides = [1, 1]} : vector<200x1xf32> to vector<8x1xf32>
    %185 = vector.extract_strided_slice %0 {offsets = [82, 0], sizes = [8, 1], strides = [1, 1]} : vector<200x1xf32> to vector<8x1xf32>
    %186 = vector.extract_strided_slice %0 {offsets = [92, 0], sizes = [8, 1], strides = [1, 1]} : vector<200x1xf32> to vector<8x1xf32>
    %187 = vector.extract_strided_slice %0 {offsets = [122, 0], sizes = [8, 1], strides = [1, 1]} : vector<200x1xf32> to vector<8x1xf32>
    %188 = vector.extract_strided_slice %0 {offsets = [132, 0], sizes = [8, 1], strides = [1, 1]} : vector<200x1xf32> to vector<8x1xf32>
    %189 = vector.extract_strided_slice %0 {offsets = [142, 0], sizes = [8, 1], strides = [1, 1]} : vector<200x1xf32> to vector<8x1xf32>
    %190 = vector.extract_strided_slice %0 {offsets = [152, 0], sizes = [8, 1], strides = [1, 1]} : vector<200x1xf32> to vector<8x1xf32>
    %191 = vector.extract_strided_slice %0 {offsets = [162, 0], sizes = [8, 1], strides = [1, 1]} : vector<200x1xf32> to vector<8x1xf32>
    %192 = vector.extract_strided_slice %0 {offsets = [172, 0], sizes = [8, 1], strides = [1, 1]} : vector<200x1xf32> to vector<8x1xf32>
    %193 = vector.extract_strided_slice %0 {offsets = [182, 0], sizes = [8, 1], strides = [1, 1]} : vector<200x1xf32> to vector<8x1xf32>
    %194 = vector.extract_strided_slice %0 {offsets = [192, 0], sizes = [8, 1], strides = [1, 1]} : vector<200x1xf32> to vector<8x1xf32>
    %195 = tpu.concatenate %179, %180, %181, %182, %183, %184, %185, %186, %187, %188, %189, %190, %191, %192, %193, %194 in 0 : vector<8x1xf32>, vector<8x1xf32>, vector<8x1xf32>, vector<8x1xf32>, vector<8x1xf32>, vector<8x1xf32>, vector<8x1xf32>, vector<8x1xf32>, vector<8x1xf32>, vector<8x1xf32>, vector<8x1xf32>, vector<8x1xf32>, vector<8x1xf32>, vector<8x1xf32>, vector<8x1xf32>, vector<8x1xf32> -> vector<128x1xf32>
    %196 = vector.extract_strided_slice %1 {offsets = [8, 0], sizes = [1, 16], strides = [1, 1]} : vector<9x16xf32> to vector<1x16xf32>
    %197 = vector.broadcast %195 : vector<128x1xf32> to vector<128x16xf32>
    %198 = vector.broadcast %196 : vector<1x16xf32> to vector<128x16xf32>
    %199 = arith.mulf %197, %198 : vector<128x16xf32>
    %200 = arith.addf %178, %199 : vector<128x16xf32>
    %c0_3 = arith.constant 0 : index
    %c0_4 = arith.constant 0 : index
    %201 = vector.load %arg3[%c0_3, %c0_4] : memref<1x16xf32, #tpu.memory_space<vmem>>, vector<1x16xf32>
    %202 = vector.broadcast %201 : vector<1x16xf32> to vector<128x16xf32>
    %203 = arith.addf %200, %202 : vector<128x16xf32>
    %c0_5 = arith.constant 0 : index
    %c0_6 = arith.constant 0 : index
    %204 = vector.load %arg4[%c0_5, %c0_6] : memref<1x16xf32, #tpu.memory_space<vmem>>, vector<1x16xf32>
    %c0_7 = arith.constant 0 : index
    %c0_8 = arith.constant 0 : index
    %205 = vector.load %arg5[%c0_7, %c0_8] : memref<1x16xf32, #tpu.memory_space<vmem>>, vector<1x16xf32>
    %cst_9 = arith.constant dense<0.000000e+00> : vector<16xf32>
    %206 = vector.multi_reduction <add>, %203, %cst_9 [0] : vector<128x16xf32> to vector<16xf32>
    %207 = vector.shape_cast %206 : vector<16xf32> to vector<1x16xf32>
    %208 = arith.mulf %203, %203 : vector<128x16xf32>
    %cst_10 = arith.constant dense<0.000000e+00> : vector<16xf32>
    %209 = vector.multi_reduction <add>, %208, %cst_10 [0] : vector<128x16xf32> to vector<16xf32>
    %210 = vector.shape_cast %209 : vector<16xf32> to vector<1x16xf32>
    %cst_11 = arith.constant 7.812500e-03 : f32
    %211 = vector.broadcast %cst_11 : f32 to vector<1x16xf32>
    %212 = arith.mulf %207, %211 : vector<1x16xf32>
    %cst_12 = arith.constant 7.812500e-03 : f32
    %213 = vector.broadcast %cst_12 : f32 to vector<1x16xf32>
    %214 = arith.mulf %210, %213 : vector<1x16xf32>
    %215 = arith.mulf %212, %212 : vector<1x16xf32>
    %216 = arith.subf %214, %215 : vector<1x16xf32>
    %cst_13 = arith.constant 9.99999974E-6 : f32
    %217 = vector.broadcast %cst_13 : f32 to vector<1x16xf32>
    %218 = arith.addf %216, %217 : vector<1x16xf32>
    %219 = math.rsqrt %218 : vector<1x16xf32>
    %220 = arith.mulf %204, %219 : vector<1x16xf32>
    %221 = arith.mulf %212, %220 : vector<1x16xf32>
    %222 = arith.subf %205, %221 : vector<1x16xf32>
    %223 = vector.broadcast %220 : vector<1x16xf32> to vector<128x16xf32>
    %224 = arith.mulf %203, %223 : vector<128x16xf32>
    %225 = vector.broadcast %222 : vector<1x16xf32> to vector<128x16xf32>
    %226 = arith.addf %224, %225 : vector<128x16xf32>
    %cst_14 = arith.constant 0.000000e+00 : f32
    %227 = vector.broadcast %cst_14 : f32 to vector<128x16xf32>
    %228 = arith.maximumf %226, %227 : vector<128x16xf32>
    %229 = vector.extract_strided_slice %228 {offsets = [0, 0], sizes = [6, 16], strides = [1, 1]} : vector<128x16xf32> to vector<6x16xf32>
    %230 = vector.extract_strided_slice %228 {offsets = [8, 0], sizes = [6, 16], strides = [1, 1]} : vector<128x16xf32> to vector<6x16xf32>
    %231 = vector.extract_strided_slice %228 {offsets = [16, 0], sizes = [6, 16], strides = [1, 1]} : vector<128x16xf32> to vector<6x16xf32>
    %232 = vector.extract_strided_slice %228 {offsets = [24, 0], sizes = [6, 16], strides = [1, 1]} : vector<128x16xf32> to vector<6x16xf32>
    %233 = vector.extract_strided_slice %228 {offsets = [32, 0], sizes = [6, 16], strides = [1, 1]} : vector<128x16xf32> to vector<6x16xf32>
    %234 = vector.extract_strided_slice %228 {offsets = [40, 0], sizes = [6, 16], strides = [1, 1]} : vector<128x16xf32> to vector<6x16xf32>
    %235 = vector.extract_strided_slice %228 {offsets = [64, 0], sizes = [6, 16], strides = [1, 1]} : vector<128x16xf32> to vector<6x16xf32>
    %236 = vector.extract_strided_slice %228 {offsets = [72, 0], sizes = [6, 16], strides = [1, 1]} : vector<128x16xf32> to vector<6x16xf32>
    %237 = vector.extract_strided_slice %228 {offsets = [80, 0], sizes = [6, 16], strides = [1, 1]} : vector<128x16xf32> to vector<6x16xf32>
    %238 = vector.extract_strided_slice %228 {offsets = [88, 0], sizes = [6, 16], strides = [1, 1]} : vector<128x16xf32> to vector<6x16xf32>
    %239 = vector.extract_strided_slice %228 {offsets = [96, 0], sizes = [6, 16], strides = [1, 1]} : vector<128x16xf32> to vector<6x16xf32>
    %240 = vector.extract_strided_slice %228 {offsets = [104, 0], sizes = [6, 16], strides = [1, 1]} : vector<128x16xf32> to vector<6x16xf32>
    %241 = tpu.concatenate %229, %230, %231, %232, %233, %234, %235, %236, %237, %238, %239, %240 in 0 : vector<6x16xf32>, vector<6x16xf32>, vector<6x16xf32>, vector<6x16xf32>, vector<6x16xf32>, vector<6x16xf32>, vector<6x16xf32>, vector<6x16xf32>, vector<6x16xf32>, vector<6x16xf32>, vector<6x16xf32>, vector<6x16xf32> -> vector<72x16xf32>
    %242 = vector.extract_strided_slice %228 {offsets = [1, 0], sizes = [6, 16], strides = [1, 1]} : vector<128x16xf32> to vector<6x16xf32>
    %243 = vector.extract_strided_slice %228 {offsets = [9, 0], sizes = [6, 16], strides = [1, 1]} : vector<128x16xf32> to vector<6x16xf32>
    %244 = vector.extract_strided_slice %228 {offsets = [17, 0], sizes = [6, 16], strides = [1, 1]} : vector<128x16xf32> to vector<6x16xf32>
    %245 = vector.extract_strided_slice %228 {offsets = [25, 0], sizes = [6, 16], strides = [1, 1]} : vector<128x16xf32> to vector<6x16xf32>
    %246 = vector.extract_strided_slice %228 {offsets = [33, 0], sizes = [6, 16], strides = [1, 1]} : vector<128x16xf32> to vector<6x16xf32>
    %247 = vector.extract_strided_slice %228 {offsets = [41, 0], sizes = [6, 16], strides = [1, 1]} : vector<128x16xf32> to vector<6x16xf32>
    %248 = vector.extract_strided_slice %228 {offsets = [65, 0], sizes = [6, 16], strides = [1, 1]} : vector<128x16xf32> to vector<6x16xf32>
    %249 = vector.extract_strided_slice %228 {offsets = [73, 0], sizes = [6, 16], strides = [1, 1]} : vector<128x16xf32> to vector<6x16xf32>
    %250 = vector.extract_strided_slice %228 {offsets = [81, 0], sizes = [6, 16], strides = [1, 1]} : vector<128x16xf32> to vector<6x16xf32>
    %251 = vector.extract_strided_slice %228 {offsets = [89, 0], sizes = [6, 16], strides = [1, 1]} : vector<128x16xf32> to vector<6x16xf32>
    %252 = vector.extract_strided_slice %228 {offsets = [97, 0], sizes = [6, 16], strides = [1, 1]} : vector<128x16xf32> to vector<6x16xf32>
    %253 = vector.extract_strided_slice %228 {offsets = [105, 0], sizes = [6, 16], strides = [1, 1]} : vector<128x16xf32> to vector<6x16xf32>
    %254 = tpu.concatenate %242, %243, %244, %245, %246, %247, %248, %249, %250, %251, %252, %253 in 0 : vector<6x16xf32>, vector<6x16xf32>, vector<6x16xf32>, vector<6x16xf32>, vector<6x16xf32>, vector<6x16xf32>, vector<6x16xf32>, vector<6x16xf32>, vector<6x16xf32>, vector<6x16xf32>, vector<6x16xf32>, vector<6x16xf32> -> vector<72x16xf32>
    %255 = vector.extract_strided_slice %228 {offsets = [2, 0], sizes = [6, 16], strides = [1, 1]} : vector<128x16xf32> to vector<6x16xf32>
    %256 = vector.extract_strided_slice %228 {offsets = [10, 0], sizes = [6, 16], strides = [1, 1]} : vector<128x16xf32> to vector<6x16xf32>
    %257 = vector.extract_strided_slice %228 {offsets = [18, 0], sizes = [6, 16], strides = [1, 1]} : vector<128x16xf32> to vector<6x16xf32>
    %258 = vector.extract_strided_slice %228 {offsets = [26, 0], sizes = [6, 16], strides = [1, 1]} : vector<128x16xf32> to vector<6x16xf32>
    %259 = vector.extract_strided_slice %228 {offsets = [34, 0], sizes = [6, 16], strides = [1, 1]} : vector<128x16xf32> to vector<6x16xf32>
    %260 = vector.extract_strided_slice %228 {offsets = [42, 0], sizes = [6, 16], strides = [1, 1]} : vector<128x16xf32> to vector<6x16xf32>
    %261 = vector.extract_strided_slice %228 {offsets = [66, 0], sizes = [6, 16], strides = [1, 1]} : vector<128x16xf32> to vector<6x16xf32>
    %262 = vector.extract_strided_slice %228 {offsets = [74, 0], sizes = [6, 16], strides = [1, 1]} : vector<128x16xf32> to vector<6x16xf32>
    %263 = vector.extract_strided_slice %228 {offsets = [82, 0], sizes = [6, 16], strides = [1, 1]} : vector<128x16xf32> to vector<6x16xf32>
    %264 = vector.extract_strided_slice %228 {offsets = [90, 0], sizes = [6, 16], strides = [1, 1]} : vector<128x16xf32> to vector<6x16xf32>
    %265 = vector.extract_strided_slice %228 {offsets = [98, 0], sizes = [6, 16], strides = [1, 1]} : vector<128x16xf32> to vector<6x16xf32>
    %266 = vector.extract_strided_slice %228 {offsets = [106, 0], sizes = [6, 16], strides = [1, 1]} : vector<128x16xf32> to vector<6x16xf32>
    %267 = tpu.concatenate %255, %256, %257, %258, %259, %260, %261, %262, %263, %264, %265, %266 in 0 : vector<6x16xf32>, vector<6x16xf32>, vector<6x16xf32>, vector<6x16xf32>, vector<6x16xf32>, vector<6x16xf32>, vector<6x16xf32>, vector<6x16xf32>, vector<6x16xf32>, vector<6x16xf32>, vector<6x16xf32>, vector<6x16xf32> -> vector<72x16xf32>
    %268 = vector.extract_strided_slice %228 {offsets = [8, 0], sizes = [6, 16], strides = [1, 1]} : vector<128x16xf32> to vector<6x16xf32>
    %269 = vector.extract_strided_slice %228 {offsets = [16, 0], sizes = [6, 16], strides = [1, 1]} : vector<128x16xf32> to vector<6x16xf32>
    %270 = vector.extract_strided_slice %228 {offsets = [24, 0], sizes = [6, 16], strides = [1, 1]} : vector<128x16xf32> to vector<6x16xf32>
    %271 = vector.extract_strided_slice %228 {offsets = [32, 0], sizes = [6, 16], strides = [1, 1]} : vector<128x16xf32> to vector<6x16xf32>
    %272 = vector.extract_strided_slice %228 {offsets = [40, 0], sizes = [6, 16], strides = [1, 1]} : vector<128x16xf32> to vector<6x16xf32>
    %273 = vector.extract_strided_slice %228 {offsets = [48, 0], sizes = [6, 16], strides = [1, 1]} : vector<128x16xf32> to vector<6x16xf32>
    %274 = vector.extract_strided_slice %228 {offsets = [72, 0], sizes = [6, 16], strides = [1, 1]} : vector<128x16xf32> to vector<6x16xf32>
    %275 = vector.extract_strided_slice %228 {offsets = [80, 0], sizes = [6, 16], strides = [1, 1]} : vector<128x16xf32> to vector<6x16xf32>
    %276 = vector.extract_strided_slice %228 {offsets = [88, 0], sizes = [6, 16], strides = [1, 1]} : vector<128x16xf32> to vector<6x16xf32>
    %277 = vector.extract_strided_slice %228 {offsets = [96, 0], sizes = [6, 16], strides = [1, 1]} : vector<128x16xf32> to vector<6x16xf32>
    %278 = vector.extract_strided_slice %228 {offsets = [104, 0], sizes = [6, 16], strides = [1, 1]} : vector<128x16xf32> to vector<6x16xf32>
    %279 = vector.extract_strided_slice %228 {offsets = [112, 0], sizes = [6, 16], strides = [1, 1]} : vector<128x16xf32> to vector<6x16xf32>
    %280 = tpu.concatenate %268, %269, %270, %271, %272, %273, %274, %275, %276, %277, %278, %279 in 0 : vector<6x16xf32>, vector<6x16xf32>, vector<6x16xf32>, vector<6x16xf32>, vector<6x16xf32>, vector<6x16xf32>, vector<6x16xf32>, vector<6x16xf32>, vector<6x16xf32>, vector<6x16xf32>, vector<6x16xf32>, vector<6x16xf32> -> vector<72x16xf32>
    %281 = vector.extract_strided_slice %228 {offsets = [9, 0], sizes = [6, 16], strides = [1, 1]} : vector<128x16xf32> to vector<6x16xf32>
    %282 = vector.extract_strided_slice %228 {offsets = [17, 0], sizes = [6, 16], strides = [1, 1]} : vector<128x16xf32> to vector<6x16xf32>
    %283 = vector.extract_strided_slice %228 {offsets = [25, 0], sizes = [6, 16], strides = [1, 1]} : vector<128x16xf32> to vector<6x16xf32>
    %284 = vector.extract_strided_slice %228 {offsets = [33, 0], sizes = [6, 16], strides = [1, 1]} : vector<128x16xf32> to vector<6x16xf32>
    %285 = vector.extract_strided_slice %228 {offsets = [41, 0], sizes = [6, 16], strides = [1, 1]} : vector<128x16xf32> to vector<6x16xf32>
    %286 = vector.extract_strided_slice %228 {offsets = [49, 0], sizes = [6, 16], strides = [1, 1]} : vector<128x16xf32> to vector<6x16xf32>
    %287 = vector.extract_strided_slice %228 {offsets = [73, 0], sizes = [6, 16], strides = [1, 1]} : vector<128x16xf32> to vector<6x16xf32>
    %288 = vector.extract_strided_slice %228 {offsets = [81, 0], sizes = [6, 16], strides = [1, 1]} : vector<128x16xf32> to vector<6x16xf32>
    %289 = vector.extract_strided_slice %228 {offsets = [89, 0], sizes = [6, 16], strides = [1, 1]} : vector<128x16xf32> to vector<6x16xf32>
    %290 = vector.extract_strided_slice %228 {offsets = [97, 0], sizes = [6, 16], strides = [1, 1]} : vector<128x16xf32> to vector<6x16xf32>
    %291 = vector.extract_strided_slice %228 {offsets = [105, 0], sizes = [6, 16], strides = [1, 1]} : vector<128x16xf32> to vector<6x16xf32>
    %292 = vector.extract_strided_slice %228 {offsets = [113, 0], sizes = [6, 16], strides = [1, 1]} : vector<128x16xf32> to vector<6x16xf32>
    %293 = tpu.concatenate %281, %282, %283, %284, %285, %286, %287, %288, %289, %290, %291, %292 in 0 : vector<6x16xf32>, vector<6x16xf32>, vector<6x16xf32>, vector<6x16xf32>, vector<6x16xf32>, vector<6x16xf32>, vector<6x16xf32>, vector<6x16xf32>, vector<6x16xf32>, vector<6x16xf32>, vector<6x16xf32>, vector<6x16xf32> -> vector<72x16xf32>
    %294 = vector.extract_strided_slice %228 {offsets = [10, 0], sizes = [6, 16], strides = [1, 1]} : vector<128x16xf32> to vector<6x16xf32>
    %295 = vector.extract_strided_slice %228 {offsets = [18, 0], sizes = [6, 16], strides = [1, 1]} : vector<128x16xf32> to vector<6x16xf32>
    %296 = vector.extract_strided_slice %228 {offsets = [26, 0], sizes = [6, 16], strides = [1, 1]} : vector<128x16xf32> to vector<6x16xf32>
    %297 = vector.extract_strided_slice %228 {offsets = [34, 0], sizes = [6, 16], strides = [1, 1]} : vector<128x16xf32> to vector<6x16xf32>
    %298 = vector.extract_strided_slice %228 {offsets = [42, 0], sizes = [6, 16], strides = [1, 1]} : vector<128x16xf32> to vector<6x16xf32>
    %299 = vector.extract_strided_slice %228 {offsets = [50, 0], sizes = [6, 16], strides = [1, 1]} : vector<128x16xf32> to vector<6x16xf32>
    %300 = vector.extract_strided_slice %228 {offsets = [74, 0], sizes = [6, 16], strides = [1, 1]} : vector<128x16xf32> to vector<6x16xf32>
    %301 = vector.extract_strided_slice %228 {offsets = [82, 0], sizes = [6, 16], strides = [1, 1]} : vector<128x16xf32> to vector<6x16xf32>
    %302 = vector.extract_strided_slice %228 {offsets = [90, 0], sizes = [6, 16], strides = [1, 1]} : vector<128x16xf32> to vector<6x16xf32>
    %303 = vector.extract_strided_slice %228 {offsets = [98, 0], sizes = [6, 16], strides = [1, 1]} : vector<128x16xf32> to vector<6x16xf32>
    %304 = vector.extract_strided_slice %228 {offsets = [106, 0], sizes = [6, 16], strides = [1, 1]} : vector<128x16xf32> to vector<6x16xf32>
    %305 = vector.extract_strided_slice %228 {offsets = [114, 0], sizes = [6, 16], strides = [1, 1]} : vector<128x16xf32> to vector<6x16xf32>
    %306 = tpu.concatenate %294, %295, %296, %297, %298, %299, %300, %301, %302, %303, %304, %305 in 0 : vector<6x16xf32>, vector<6x16xf32>, vector<6x16xf32>, vector<6x16xf32>, vector<6x16xf32>, vector<6x16xf32>, vector<6x16xf32>, vector<6x16xf32>, vector<6x16xf32>, vector<6x16xf32>, vector<6x16xf32>, vector<6x16xf32> -> vector<72x16xf32>
    %307 = vector.extract_strided_slice %228 {offsets = [16, 0], sizes = [6, 16], strides = [1, 1]} : vector<128x16xf32> to vector<6x16xf32>
    %308 = vector.extract_strided_slice %228 {offsets = [24, 0], sizes = [6, 16], strides = [1, 1]} : vector<128x16xf32> to vector<6x16xf32>
    %309 = vector.extract_strided_slice %228 {offsets = [32, 0], sizes = [6, 16], strides = [1, 1]} : vector<128x16xf32> to vector<6x16xf32>
    %310 = vector.extract_strided_slice %228 {offsets = [40, 0], sizes = [6, 16], strides = [1, 1]} : vector<128x16xf32> to vector<6x16xf32>
    %311 = vector.extract_strided_slice %228 {offsets = [48, 0], sizes = [6, 16], strides = [1, 1]} : vector<128x16xf32> to vector<6x16xf32>
    %312 = vector.extract_strided_slice %228 {offsets = [56, 0], sizes = [6, 16], strides = [1, 1]} : vector<128x16xf32> to vector<6x16xf32>
    %313 = vector.extract_strided_slice %228 {offsets = [80, 0], sizes = [6, 16], strides = [1, 1]} : vector<128x16xf32> to vector<6x16xf32>
    %314 = vector.extract_strided_slice %228 {offsets = [88, 0], sizes = [6, 16], strides = [1, 1]} : vector<128x16xf32> to vector<6x16xf32>
    %315 = vector.extract_strided_slice %228 {offsets = [96, 0], sizes = [6, 16], strides = [1, 1]} : vector<128x16xf32> to vector<6x16xf32>
    %316 = vector.extract_strided_slice %228 {offsets = [104, 0], sizes = [6, 16], strides = [1, 1]} : vector<128x16xf32> to vector<6x16xf32>
    %317 = vector.extract_strided_slice %228 {offsets = [112, 0], sizes = [6, 16], strides = [1, 1]} : vector<128x16xf32> to vector<6x16xf32>
    %318 = vector.extract_strided_slice %228 {offsets = [120, 0], sizes = [6, 16], strides = [1, 1]} : vector<128x16xf32> to vector<6x16xf32>
    %319 = tpu.concatenate %307, %308, %309, %310, %311, %312, %313, %314, %315, %316, %317, %318 in 0 : vector<6x16xf32>, vector<6x16xf32>, vector<6x16xf32>, vector<6x16xf32>, vector<6x16xf32>, vector<6x16xf32>, vector<6x16xf32>, vector<6x16xf32>, vector<6x16xf32>, vector<6x16xf32>, vector<6x16xf32>, vector<6x16xf32> -> vector<72x16xf32>
    %320 = vector.extract_strided_slice %228 {offsets = [17, 0], sizes = [6, 16], strides = [1, 1]} : vector<128x16xf32> to vector<6x16xf32>
    %321 = vector.extract_strided_slice %228 {offsets = [25, 0], sizes = [6, 16], strides = [1, 1]} : vector<128x16xf32> to vector<6x16xf32>
    %322 = vector.extract_strided_slice %228 {offsets = [33, 0], sizes = [6, 16], strides = [1, 1]} : vector<128x16xf32> to vector<6x16xf32>
    %323 = vector.extract_strided_slice %228 {offsets = [41, 0], sizes = [6, 16], strides = [1, 1]} : vector<128x16xf32> to vector<6x16xf32>
    %324 = vector.extract_strided_slice %228 {offsets = [49, 0], sizes = [6, 16], strides = [1, 1]} : vector<128x16xf32> to vector<6x16xf32>
    %325 = vector.extract_strided_slice %228 {offsets = [57, 0], sizes = [6, 16], strides = [1, 1]} : vector<128x16xf32> to vector<6x16xf32>
    %326 = vector.extract_strided_slice %228 {offsets = [81, 0], sizes = [6, 16], strides = [1, 1]} : vector<128x16xf32> to vector<6x16xf32>
    %327 = vector.extract_strided_slice %228 {offsets = [89, 0], sizes = [6, 16], strides = [1, 1]} : vector<128x16xf32> to vector<6x16xf32>
    %328 = vector.extract_strided_slice %228 {offsets = [97, 0], sizes = [6, 16], strides = [1, 1]} : vector<128x16xf32> to vector<6x16xf32>
    %329 = vector.extract_strided_slice %228 {offsets = [105, 0], sizes = [6, 16], strides = [1, 1]} : vector<128x16xf32> to vector<6x16xf32>
    %330 = vector.extract_strided_slice %228 {offsets = [113, 0], sizes = [6, 16], strides = [1, 1]} : vector<128x16xf32> to vector<6x16xf32>
    %331 = vector.extract_strided_slice %228 {offsets = [121, 0], sizes = [6, 16], strides = [1, 1]} : vector<128x16xf32> to vector<6x16xf32>
    %332 = tpu.concatenate %320, %321, %322, %323, %324, %325, %326, %327, %328, %329, %330, %331 in 0 : vector<6x16xf32>, vector<6x16xf32>, vector<6x16xf32>, vector<6x16xf32>, vector<6x16xf32>, vector<6x16xf32>, vector<6x16xf32>, vector<6x16xf32>, vector<6x16xf32>, vector<6x16xf32>, vector<6x16xf32>, vector<6x16xf32> -> vector<72x16xf32>
    %333 = vector.extract_strided_slice %228 {offsets = [18, 0], sizes = [6, 16], strides = [1, 1]} : vector<128x16xf32> to vector<6x16xf32>
    %334 = vector.extract_strided_slice %228 {offsets = [26, 0], sizes = [6, 16], strides = [1, 1]} : vector<128x16xf32> to vector<6x16xf32>
    %335 = vector.extract_strided_slice %228 {offsets = [34, 0], sizes = [6, 16], strides = [1, 1]} : vector<128x16xf32> to vector<6x16xf32>
    %336 = vector.extract_strided_slice %228 {offsets = [42, 0], sizes = [6, 16], strides = [1, 1]} : vector<128x16xf32> to vector<6x16xf32>
    %337 = vector.extract_strided_slice %228 {offsets = [50, 0], sizes = [6, 16], strides = [1, 1]} : vector<128x16xf32> to vector<6x16xf32>
    %338 = vector.extract_strided_slice %228 {offsets = [58, 0], sizes = [6, 16], strides = [1, 1]} : vector<128x16xf32> to vector<6x16xf32>
    %339 = vector.extract_strided_slice %228 {offsets = [82, 0], sizes = [6, 16], strides = [1, 1]} : vector<128x16xf32> to vector<6x16xf32>
    %340 = vector.extract_strided_slice %228 {offsets = [90, 0], sizes = [6, 16], strides = [1, 1]} : vector<128x16xf32> to vector<6x16xf32>
    %341 = vector.extract_strided_slice %228 {offsets = [98, 0], sizes = [6, 16], strides = [1, 1]} : vector<128x16xf32> to vector<6x16xf32>
    %342 = vector.extract_strided_slice %228 {offsets = [106, 0], sizes = [6, 16], strides = [1, 1]} : vector<128x16xf32> to vector<6x16xf32>
    %343 = vector.extract_strided_slice %228 {offsets = [114, 0], sizes = [6, 16], strides = [1, 1]} : vector<128x16xf32> to vector<6x16xf32>
    %344 = vector.extract_strided_slice %228 {offsets = [122, 0], sizes = [6, 16], strides = [1, 1]} : vector<128x16xf32> to vector<6x16xf32>
    %345 = tpu.concatenate %333, %334, %335, %336, %337, %338, %339, %340, %341, %342, %343, %344 in 0 : vector<6x16xf32>, vector<6x16xf32>, vector<6x16xf32>, vector<6x16xf32>, vector<6x16xf32>, vector<6x16xf32>, vector<6x16xf32>, vector<6x16xf32>, vector<6x16xf32>, vector<6x16xf32>, vector<6x16xf32>, vector<6x16xf32> -> vector<72x16xf32>
    %346 = tpu.concatenate %241, %254, %267, %280, %293, %306, %319, %332, %345 in 1 : vector<72x16xf32>, vector<72x16xf32>, vector<72x16xf32>, vector<72x16xf32>, vector<72x16xf32>, vector<72x16xf32>, vector<72x16xf32>, vector<72x16xf32>, vector<72x16xf32> -> vector<72x144xf32>
    %c0_15 = arith.constant 0 : index
    %c0_16 = arith.constant 0 : index
    %347 = vector.load %arg6[%c0_15, %c0_16] : memref<144x32xf32, #tpu.memory_space<vmem>>, vector<144x32xf32>
    %cst_17 = arith.constant dense<0.000000e+00> : vector<72x32xf32>
    %348 = tpu.matmul %346, %347, %cst_17 {dimension_numbers = #tpu.dot_dimension_numbers<[1], [0], [0], [1], [0, 0, 1, 1], [], []>} : vector<72x144xf32>, vector<144x32xf32>, vector<72x32xf32> -> vector<72x32xf32>
    %c0_18 = arith.constant 0 : index
    %c0_19 = arith.constant 0 : index
    %349 = vector.load %arg7[%c0_18, %c0_19] : memref<1x32xf32, #tpu.memory_space<vmem>>, vector<1x32xf32>
    %350 = vector.broadcast %349 : vector<1x32xf32> to vector<72x32xf32>
    %351 = arith.addf %348, %350 : vector<72x32xf32>
    %c0_20 = arith.constant 0 : index
    %c0_21 = arith.constant 0 : index
    %352 = vector.load %arg8[%c0_20, %c0_21] : memref<1x32xf32, #tpu.memory_space<vmem>>, vector<1x32xf32>
    %c0_22 = arith.constant 0 : index
    %c0_23 = arith.constant 0 : index
    %353 = vector.load %arg9[%c0_22, %c0_23] : memref<1x32xf32, #tpu.memory_space<vmem>>, vector<1x32xf32>
    %cst_24 = arith.constant dense<0.000000e+00> : vector<32xf32>
    %354 = vector.multi_reduction <add>, %351, %cst_24 [0] : vector<72x32xf32> to vector<32xf32>
    %355 = vector.shape_cast %354 : vector<32xf32> to vector<1x32xf32>
    %356 = arith.mulf %351, %351 : vector<72x32xf32>
    %cst_25 = arith.constant dense<0.000000e+00> : vector<32xf32>
    %357 = vector.multi_reduction <add>, %356, %cst_25 [0] : vector<72x32xf32> to vector<32xf32>
    %358 = vector.shape_cast %357 : vector<32xf32> to vector<1x32xf32>
    %cst_26 = arith.constant 0.013888889 : f32
    %359 = vector.broadcast %cst_26 : f32 to vector<1x32xf32>
    %360 = arith.mulf %355, %359 : vector<1x32xf32>
    %cst_27 = arith.constant 0.013888889 : f32
    %361 = vector.broadcast %cst_27 : f32 to vector<1x32xf32>
    %362 = arith.mulf %358, %361 : vector<1x32xf32>
    %363 = arith.mulf %360, %360 : vector<1x32xf32>
    %364 = arith.subf %362, %363 : vector<1x32xf32>
    %cst_28 = arith.constant 9.99999974E-6 : f32
    %365 = vector.broadcast %cst_28 : f32 to vector<1x32xf32>
    %366 = arith.addf %364, %365 : vector<1x32xf32>
    %367 = math.rsqrt %366 : vector<1x32xf32>
    %368 = arith.mulf %352, %367 : vector<1x32xf32>
    %369 = arith.mulf %360, %368 : vector<1x32xf32>
    %370 = arith.subf %353, %369 : vector<1x32xf32>
    %371 = vector.broadcast %368 : vector<1x32xf32> to vector<72x32xf32>
    %372 = arith.mulf %351, %371 : vector<72x32xf32>
    %373 = vector.broadcast %370 : vector<1x32xf32> to vector<72x32xf32>
    %374 = arith.addf %372, %373 : vector<72x32xf32>
    %cst_29 = arith.constant 0.000000e+00 : f32
    %375 = vector.broadcast %cst_29 : f32 to vector<72x32xf32>
    %376 = arith.maximumf %374, %375 : vector<72x32xf32>
    %377 = vector.extract_strided_slice %376 {offsets = [0, 0], sizes = [4, 32], strides = [1, 1]} : vector<72x32xf32> to vector<4x32xf32>
    %378 = vector.extract_strided_slice %376 {offsets = [6, 0], sizes = [4, 32], strides = [1, 1]} : vector<72x32xf32> to vector<4x32xf32>
    %379 = vector.extract_strided_slice %376 {offsets = [12, 0], sizes = [4, 32], strides = [1, 1]} : vector<72x32xf32> to vector<4x32xf32>
    %380 = vector.extract_strided_slice %376 {offsets = [18, 0], sizes = [4, 32], strides = [1, 1]} : vector<72x32xf32> to vector<4x32xf32>
    %381 = vector.extract_strided_slice %376 {offsets = [36, 0], sizes = [4, 32], strides = [1, 1]} : vector<72x32xf32> to vector<4x32xf32>
    %382 = vector.extract_strided_slice %376 {offsets = [42, 0], sizes = [4, 32], strides = [1, 1]} : vector<72x32xf32> to vector<4x32xf32>
    %383 = vector.extract_strided_slice %376 {offsets = [48, 0], sizes = [4, 32], strides = [1, 1]} : vector<72x32xf32> to vector<4x32xf32>
    %384 = vector.extract_strided_slice %376 {offsets = [54, 0], sizes = [4, 32], strides = [1, 1]} : vector<72x32xf32> to vector<4x32xf32>
    %385 = tpu.concatenate %377, %378, %379, %380, %381, %382, %383, %384 in 0 : vector<4x32xf32>, vector<4x32xf32>, vector<4x32xf32>, vector<4x32xf32>, vector<4x32xf32>, vector<4x32xf32>, vector<4x32xf32>, vector<4x32xf32> -> vector<32x32xf32>
    %386 = vector.extract_strided_slice %376 {offsets = [1, 0], sizes = [4, 32], strides = [1, 1]} : vector<72x32xf32> to vector<4x32xf32>
    %387 = vector.extract_strided_slice %376 {offsets = [7, 0], sizes = [4, 32], strides = [1, 1]} : vector<72x32xf32> to vector<4x32xf32>
    %388 = vector.extract_strided_slice %376 {offsets = [13, 0], sizes = [4, 32], strides = [1, 1]} : vector<72x32xf32> to vector<4x32xf32>
    %389 = vector.extract_strided_slice %376 {offsets = [19, 0], sizes = [4, 32], strides = [1, 1]} : vector<72x32xf32> to vector<4x32xf32>
    %390 = vector.extract_strided_slice %376 {offsets = [37, 0], sizes = [4, 32], strides = [1, 1]} : vector<72x32xf32> to vector<4x32xf32>
    %391 = vector.extract_strided_slice %376 {offsets = [43, 0], sizes = [4, 32], strides = [1, 1]} : vector<72x32xf32> to vector<4x32xf32>
    %392 = vector.extract_strided_slice %376 {offsets = [49, 0], sizes = [4, 32], strides = [1, 1]} : vector<72x32xf32> to vector<4x32xf32>
    %393 = vector.extract_strided_slice %376 {offsets = [55, 0], sizes = [4, 32], strides = [1, 1]} : vector<72x32xf32> to vector<4x32xf32>
    %394 = tpu.concatenate %386, %387, %388, %389, %390, %391, %392, %393 in 0 : vector<4x32xf32>, vector<4x32xf32>, vector<4x32xf32>, vector<4x32xf32>, vector<4x32xf32>, vector<4x32xf32>, vector<4x32xf32>, vector<4x32xf32> -> vector<32x32xf32>
    %395 = vector.extract_strided_slice %376 {offsets = [2, 0], sizes = [4, 32], strides = [1, 1]} : vector<72x32xf32> to vector<4x32xf32>
    %396 = vector.extract_strided_slice %376 {offsets = [8, 0], sizes = [4, 32], strides = [1, 1]} : vector<72x32xf32> to vector<4x32xf32>
    %397 = vector.extract_strided_slice %376 {offsets = [14, 0], sizes = [4, 32], strides = [1, 1]} : vector<72x32xf32> to vector<4x32xf32>
    %398 = vector.extract_strided_slice %376 {offsets = [20, 0], sizes = [4, 32], strides = [1, 1]} : vector<72x32xf32> to vector<4x32xf32>
    %399 = vector.extract_strided_slice %376 {offsets = [38, 0], sizes = [4, 32], strides = [1, 1]} : vector<72x32xf32> to vector<4x32xf32>
    %400 = vector.extract_strided_slice %376 {offsets = [44, 0], sizes = [4, 32], strides = [1, 1]} : vector<72x32xf32> to vector<4x32xf32>
    %401 = vector.extract_strided_slice %376 {offsets = [50, 0], sizes = [4, 32], strides = [1, 1]} : vector<72x32xf32> to vector<4x32xf32>
    %402 = vector.extract_strided_slice %376 {offsets = [56, 0], sizes = [4, 32], strides = [1, 1]} : vector<72x32xf32> to vector<4x32xf32>
    %403 = tpu.concatenate %395, %396, %397, %398, %399, %400, %401, %402 in 0 : vector<4x32xf32>, vector<4x32xf32>, vector<4x32xf32>, vector<4x32xf32>, vector<4x32xf32>, vector<4x32xf32>, vector<4x32xf32>, vector<4x32xf32> -> vector<32x32xf32>
    %404 = vector.extract_strided_slice %376 {offsets = [6, 0], sizes = [4, 32], strides = [1, 1]} : vector<72x32xf32> to vector<4x32xf32>
    %405 = vector.extract_strided_slice %376 {offsets = [12, 0], sizes = [4, 32], strides = [1, 1]} : vector<72x32xf32> to vector<4x32xf32>
    %406 = vector.extract_strided_slice %376 {offsets = [18, 0], sizes = [4, 32], strides = [1, 1]} : vector<72x32xf32> to vector<4x32xf32>
    %407 = vector.extract_strided_slice %376 {offsets = [24, 0], sizes = [4, 32], strides = [1, 1]} : vector<72x32xf32> to vector<4x32xf32>
    %408 = vector.extract_strided_slice %376 {offsets = [42, 0], sizes = [4, 32], strides = [1, 1]} : vector<72x32xf32> to vector<4x32xf32>
    %409 = vector.extract_strided_slice %376 {offsets = [48, 0], sizes = [4, 32], strides = [1, 1]} : vector<72x32xf32> to vector<4x32xf32>
    %410 = vector.extract_strided_slice %376 {offsets = [54, 0], sizes = [4, 32], strides = [1, 1]} : vector<72x32xf32> to vector<4x32xf32>
    %411 = vector.extract_strided_slice %376 {offsets = [60, 0], sizes = [4, 32], strides = [1, 1]} : vector<72x32xf32> to vector<4x32xf32>
    %412 = tpu.concatenate %404, %405, %406, %407, %408, %409, %410, %411 in 0 : vector<4x32xf32>, vector<4x32xf32>, vector<4x32xf32>, vector<4x32xf32>, vector<4x32xf32>, vector<4x32xf32>, vector<4x32xf32>, vector<4x32xf32> -> vector<32x32xf32>
    %413 = vector.extract_strided_slice %376 {offsets = [7, 0], sizes = [4, 32], strides = [1, 1]} : vector<72x32xf32> to vector<4x32xf32>
    %414 = vector.extract_strided_slice %376 {offsets = [13, 0], sizes = [4, 32], strides = [1, 1]} : vector<72x32xf32> to vector<4x32xf32>
    %415 = vector.extract_strided_slice %376 {offsets = [19, 0], sizes = [4, 32], strides = [1, 1]} : vector<72x32xf32> to vector<4x32xf32>
    %416 = vector.extract_strided_slice %376 {offsets = [25, 0], sizes = [4, 32], strides = [1, 1]} : vector<72x32xf32> to vector<4x32xf32>
    %417 = vector.extract_strided_slice %376 {offsets = [43, 0], sizes = [4, 32], strides = [1, 1]} : vector<72x32xf32> to vector<4x32xf32>
    %418 = vector.extract_strided_slice %376 {offsets = [49, 0], sizes = [4, 32], strides = [1, 1]} : vector<72x32xf32> to vector<4x32xf32>
    %419 = vector.extract_strided_slice %376 {offsets = [55, 0], sizes = [4, 32], strides = [1, 1]} : vector<72x32xf32> to vector<4x32xf32>
    %420 = vector.extract_strided_slice %376 {offsets = [61, 0], sizes = [4, 32], strides = [1, 1]} : vector<72x32xf32> to vector<4x32xf32>
    %421 = tpu.concatenate %413, %414, %415, %416, %417, %418, %419, %420 in 0 : vector<4x32xf32>, vector<4x32xf32>, vector<4x32xf32>, vector<4x32xf32>, vector<4x32xf32>, vector<4x32xf32>, vector<4x32xf32>, vector<4x32xf32> -> vector<32x32xf32>
    %422 = vector.extract_strided_slice %376 {offsets = [8, 0], sizes = [4, 32], strides = [1, 1]} : vector<72x32xf32> to vector<4x32xf32>
    %423 = vector.extract_strided_slice %376 {offsets = [14, 0], sizes = [4, 32], strides = [1, 1]} : vector<72x32xf32> to vector<4x32xf32>
    %424 = vector.extract_strided_slice %376 {offsets = [20, 0], sizes = [4, 32], strides = [1, 1]} : vector<72x32xf32> to vector<4x32xf32>
    %425 = vector.extract_strided_slice %376 {offsets = [26, 0], sizes = [4, 32], strides = [1, 1]} : vector<72x32xf32> to vector<4x32xf32>
    %426 = vector.extract_strided_slice %376 {offsets = [44, 0], sizes = [4, 32], strides = [1, 1]} : vector<72x32xf32> to vector<4x32xf32>
    %427 = vector.extract_strided_slice %376 {offsets = [50, 0], sizes = [4, 32], strides = [1, 1]} : vector<72x32xf32> to vector<4x32xf32>
    %428 = vector.extract_strided_slice %376 {offsets = [56, 0], sizes = [4, 32], strides = [1, 1]} : vector<72x32xf32> to vector<4x32xf32>
    %429 = vector.extract_strided_slice %376 {offsets = [62, 0], sizes = [4, 32], strides = [1, 1]} : vector<72x32xf32> to vector<4x32xf32>
    %430 = tpu.concatenate %422, %423, %424, %425, %426, %427, %428, %429 in 0 : vector<4x32xf32>, vector<4x32xf32>, vector<4x32xf32>, vector<4x32xf32>, vector<4x32xf32>, vector<4x32xf32>, vector<4x32xf32>, vector<4x32xf32> -> vector<32x32xf32>
    %431 = vector.extract_strided_slice %376 {offsets = [12, 0], sizes = [4, 32], strides = [1, 1]} : vector<72x32xf32> to vector<4x32xf32>
    %432 = vector.extract_strided_slice %376 {offsets = [18, 0], sizes = [4, 32], strides = [1, 1]} : vector<72x32xf32> to vector<4x32xf32>
    %433 = vector.extract_strided_slice %376 {offsets = [24, 0], sizes = [4, 32], strides = [1, 1]} : vector<72x32xf32> to vector<4x32xf32>
    %434 = vector.extract_strided_slice %376 {offsets = [30, 0], sizes = [4, 32], strides = [1, 1]} : vector<72x32xf32> to vector<4x32xf32>
    %435 = vector.extract_strided_slice %376 {offsets = [48, 0], sizes = [4, 32], strides = [1, 1]} : vector<72x32xf32> to vector<4x32xf32>
    %436 = vector.extract_strided_slice %376 {offsets = [54, 0], sizes = [4, 32], strides = [1, 1]} : vector<72x32xf32> to vector<4x32xf32>
    %437 = vector.extract_strided_slice %376 {offsets = [60, 0], sizes = [4, 32], strides = [1, 1]} : vector<72x32xf32> to vector<4x32xf32>
    %438 = vector.extract_strided_slice %376 {offsets = [66, 0], sizes = [4, 32], strides = [1, 1]} : vector<72x32xf32> to vector<4x32xf32>
    %439 = tpu.concatenate %431, %432, %433, %434, %435, %436, %437, %438 in 0 : vector<4x32xf32>, vector<4x32xf32>, vector<4x32xf32>, vector<4x32xf32>, vector<4x32xf32>, vector<4x32xf32>, vector<4x32xf32>, vector<4x32xf32> -> vector<32x32xf32>
    %440 = vector.extract_strided_slice %376 {offsets = [13, 0], sizes = [4, 32], strides = [1, 1]} : vector<72x32xf32> to vector<4x32xf32>
    %441 = vector.extract_strided_slice %376 {offsets = [19, 0], sizes = [4, 32], strides = [1, 1]} : vector<72x32xf32> to vector<4x32xf32>
    %442 = vector.extract_strided_slice %376 {offsets = [25, 0], sizes = [4, 32], strides = [1, 1]} : vector<72x32xf32> to vector<4x32xf32>
    %443 = vector.extract_strided_slice %376 {offsets = [31, 0], sizes = [4, 32], strides = [1, 1]} : vector<72x32xf32> to vector<4x32xf32>
    %444 = vector.extract_strided_slice %376 {offsets = [49, 0], sizes = [4, 32], strides = [1, 1]} : vector<72x32xf32> to vector<4x32xf32>
    %445 = vector.extract_strided_slice %376 {offsets = [55, 0], sizes = [4, 32], strides = [1, 1]} : vector<72x32xf32> to vector<4x32xf32>
    %446 = vector.extract_strided_slice %376 {offsets = [61, 0], sizes = [4, 32], strides = [1, 1]} : vector<72x32xf32> to vector<4x32xf32>
    %447 = vector.extract_strided_slice %376 {offsets = [67, 0], sizes = [4, 32], strides = [1, 1]} : vector<72x32xf32> to vector<4x32xf32>
    %448 = tpu.concatenate %440, %441, %442, %443, %444, %445, %446, %447 in 0 : vector<4x32xf32>, vector<4x32xf32>, vector<4x32xf32>, vector<4x32xf32>, vector<4x32xf32>, vector<4x32xf32>, vector<4x32xf32>, vector<4x32xf32> -> vector<32x32xf32>
    %449 = vector.extract_strided_slice %376 {offsets = [14, 0], sizes = [4, 32], strides = [1, 1]} : vector<72x32xf32> to vector<4x32xf32>
    %450 = vector.extract_strided_slice %376 {offsets = [20, 0], sizes = [4, 32], strides = [1, 1]} : vector<72x32xf32> to vector<4x32xf32>
    %451 = vector.extract_strided_slice %376 {offsets = [26, 0], sizes = [4, 32], strides = [1, 1]} : vector<72x32xf32> to vector<4x32xf32>
    %452 = vector.extract_strided_slice %376 {offsets = [32, 0], sizes = [4, 32], strides = [1, 1]} : vector<72x32xf32> to vector<4x32xf32>
    %453 = vector.extract_strided_slice %376 {offsets = [50, 0], sizes = [4, 32], strides = [1, 1]} : vector<72x32xf32> to vector<4x32xf32>
    %454 = vector.extract_strided_slice %376 {offsets = [56, 0], sizes = [4, 32], strides = [1, 1]} : vector<72x32xf32> to vector<4x32xf32>
    %455 = vector.extract_strided_slice %376 {offsets = [62, 0], sizes = [4, 32], strides = [1, 1]} : vector<72x32xf32> to vector<4x32xf32>
    %456 = vector.extract_strided_slice %376 {offsets = [68, 0], sizes = [4, 32], strides = [1, 1]} : vector<72x32xf32> to vector<4x32xf32>
    %457 = tpu.concatenate %449, %450, %451, %452, %453, %454, %455, %456 in 0 : vector<4x32xf32>, vector<4x32xf32>, vector<4x32xf32>, vector<4x32xf32>, vector<4x32xf32>, vector<4x32xf32>, vector<4x32xf32>, vector<4x32xf32> -> vector<32x32xf32>
    %458 = tpu.concatenate %385, %394, %403, %412, %421, %430, %439, %448, %457 in 1 : vector<32x32xf32>, vector<32x32xf32>, vector<32x32xf32>, vector<32x32xf32>, vector<32x32xf32>, vector<32x32xf32>, vector<32x32xf32>, vector<32x32xf32>, vector<32x32xf32> -> vector<32x288xf32>
    %c0_30 = arith.constant 0 : index
    %c0_31 = arith.constant 0 : index
    %459 = vector.load %arg10[%c0_30, %c0_31] : memref<288x32xf32, #tpu.memory_space<vmem>>, vector<288x32xf32>
    %cst_32 = arith.constant dense<0.000000e+00> : vector<32x32xf32>
    %460 = tpu.matmul %458, %459, %cst_32 {dimension_numbers = #tpu.dot_dimension_numbers<[1], [0], [0], [1], [0, 0, 1, 1], [], []>} : vector<32x288xf32>, vector<288x32xf32>, vector<32x32xf32> -> vector<32x32xf32>
    %c0_33 = arith.constant 0 : index
    %c0_34 = arith.constant 0 : index
    %461 = vector.load %arg11[%c0_33, %c0_34] : memref<1x32xf32, #tpu.memory_space<vmem>>, vector<1x32xf32>
    %462 = vector.broadcast %461 : vector<1x32xf32> to vector<32x32xf32>
    %463 = arith.addf %460, %462 : vector<32x32xf32>
    %c0_35 = arith.constant 0 : index
    %c0_36 = arith.constant 0 : index
    %464 = vector.load %arg12[%c0_35, %c0_36] : memref<1x32xf32, #tpu.memory_space<vmem>>, vector<1x32xf32>
    %c0_37 = arith.constant 0 : index
    %c0_38 = arith.constant 0 : index
    %465 = vector.load %arg13[%c0_37, %c0_38] : memref<1x32xf32, #tpu.memory_space<vmem>>, vector<1x32xf32>
    %cst_39 = arith.constant dense<0.000000e+00> : vector<32xf32>
    %466 = vector.multi_reduction <add>, %463, %cst_39 [0] : vector<32x32xf32> to vector<32xf32>
    %467 = vector.shape_cast %466 : vector<32xf32> to vector<1x32xf32>
    %468 = arith.mulf %463, %463 : vector<32x32xf32>
    %cst_40 = arith.constant dense<0.000000e+00> : vector<32xf32>
    %469 = vector.multi_reduction <add>, %468, %cst_40 [0] : vector<32x32xf32> to vector<32xf32>
    %470 = vector.shape_cast %469 : vector<32xf32> to vector<1x32xf32>
    %cst_41 = arith.constant 3.125000e-02 : f32
    %471 = vector.broadcast %cst_41 : f32 to vector<1x32xf32>
    %472 = arith.mulf %467, %471 : vector<1x32xf32>
    %cst_42 = arith.constant 3.125000e-02 : f32
    %473 = vector.broadcast %cst_42 : f32 to vector<1x32xf32>
    %474 = arith.mulf %470, %473 : vector<1x32xf32>
    %475 = arith.mulf %472, %472 : vector<1x32xf32>
    %476 = arith.subf %474, %475 : vector<1x32xf32>
    %cst_43 = arith.constant 9.99999974E-6 : f32
    %477 = vector.broadcast %cst_43 : f32 to vector<1x32xf32>
    %478 = arith.addf %476, %477 : vector<1x32xf32>
    %479 = math.rsqrt %478 : vector<1x32xf32>
    %480 = arith.mulf %464, %479 : vector<1x32xf32>
    %481 = arith.mulf %472, %480 : vector<1x32xf32>
    %482 = arith.subf %465, %481 : vector<1x32xf32>
    %483 = vector.broadcast %480 : vector<1x32xf32> to vector<32x32xf32>
    %484 = arith.mulf %463, %483 : vector<32x32xf32>
    %485 = vector.broadcast %482 : vector<1x32xf32> to vector<32x32xf32>
    %486 = arith.addf %484, %485 : vector<32x32xf32>
    %cst_44 = arith.constant 0.000000e+00 : f32
    %487 = vector.broadcast %cst_44 : f32 to vector<32x32xf32>
    %488 = arith.maximumf %486, %487 : vector<32x32xf32>
    %489 = vector.extract_strided_slice %488 {offsets = [0, 0], sizes = [1, 32], strides = [1, 1]} : vector<32x32xf32> to vector<1x32xf32>
    %490 = vector.extract_strided_slice %488 {offsets = [1, 0], sizes = [1, 32], strides = [1, 1]} : vector<32x32xf32> to vector<1x32xf32>
    %491 = vector.extract_strided_slice %488 {offsets = [2, 0], sizes = [1, 32], strides = [1, 1]} : vector<32x32xf32> to vector<1x32xf32>
    %492 = vector.extract_strided_slice %488 {offsets = [3, 0], sizes = [1, 32], strides = [1, 1]} : vector<32x32xf32> to vector<1x32xf32>
    %493 = vector.extract_strided_slice %488 {offsets = [4, 0], sizes = [1, 32], strides = [1, 1]} : vector<32x32xf32> to vector<1x32xf32>
    %494 = vector.extract_strided_slice %488 {offsets = [5, 0], sizes = [1, 32], strides = [1, 1]} : vector<32x32xf32> to vector<1x32xf32>
    %495 = vector.extract_strided_slice %488 {offsets = [6, 0], sizes = [1, 32], strides = [1, 1]} : vector<32x32xf32> to vector<1x32xf32>
    %496 = vector.extract_strided_slice %488 {offsets = [7, 0], sizes = [1, 32], strides = [1, 1]} : vector<32x32xf32> to vector<1x32xf32>
    %497 = vector.extract_strided_slice %488 {offsets = [8, 0], sizes = [1, 32], strides = [1, 1]} : vector<32x32xf32> to vector<1x32xf32>
    %498 = vector.extract_strided_slice %488 {offsets = [9, 0], sizes = [1, 32], strides = [1, 1]} : vector<32x32xf32> to vector<1x32xf32>
    %499 = vector.extract_strided_slice %488 {offsets = [10, 0], sizes = [1, 32], strides = [1, 1]} : vector<32x32xf32> to vector<1x32xf32>
    %500 = vector.extract_strided_slice %488 {offsets = [11, 0], sizes = [1, 32], strides = [1, 1]} : vector<32x32xf32> to vector<1x32xf32>
    %501 = vector.extract_strided_slice %488 {offsets = [12, 0], sizes = [1, 32], strides = [1, 1]} : vector<32x32xf32> to vector<1x32xf32>
    %502 = vector.extract_strided_slice %488 {offsets = [13, 0], sizes = [1, 32], strides = [1, 1]} : vector<32x32xf32> to vector<1x32xf32>
    %503 = vector.extract_strided_slice %488 {offsets = [14, 0], sizes = [1, 32], strides = [1, 1]} : vector<32x32xf32> to vector<1x32xf32>
    %504 = vector.extract_strided_slice %488 {offsets = [15, 0], sizes = [1, 32], strides = [1, 1]} : vector<32x32xf32> to vector<1x32xf32>
    %505 = tpu.concatenate %489, %490, %491, %492, %493, %494, %495, %496, %497, %498, %499, %500, %501, %502, %503, %504 in 1 : vector<1x32xf32>, vector<1x32xf32>, vector<1x32xf32>, vector<1x32xf32>, vector<1x32xf32>, vector<1x32xf32>, vector<1x32xf32>, vector<1x32xf32>, vector<1x32xf32>, vector<1x32xf32>, vector<1x32xf32>, vector<1x32xf32>, vector<1x32xf32>, vector<1x32xf32>, vector<1x32xf32>, vector<1x32xf32> -> vector<1x512xf32>
    %506 = vector.extract_strided_slice %488 {offsets = [16, 0], sizes = [1, 32], strides = [1, 1]} : vector<32x32xf32> to vector<1x32xf32>
    %507 = vector.extract_strided_slice %488 {offsets = [17, 0], sizes = [1, 32], strides = [1, 1]} : vector<32x32xf32> to vector<1x32xf32>
    %508 = vector.extract_strided_slice %488 {offsets = [18, 0], sizes = [1, 32], strides = [1, 1]} : vector<32x32xf32> to vector<1x32xf32>
    %509 = vector.extract_strided_slice %488 {offsets = [19, 0], sizes = [1, 32], strides = [1, 1]} : vector<32x32xf32> to vector<1x32xf32>
    %510 = vector.extract_strided_slice %488 {offsets = [20, 0], sizes = [1, 32], strides = [1, 1]} : vector<32x32xf32> to vector<1x32xf32>
    %511 = vector.extract_strided_slice %488 {offsets = [21, 0], sizes = [1, 32], strides = [1, 1]} : vector<32x32xf32> to vector<1x32xf32>
    %512 = vector.extract_strided_slice %488 {offsets = [22, 0], sizes = [1, 32], strides = [1, 1]} : vector<32x32xf32> to vector<1x32xf32>
    %513 = vector.extract_strided_slice %488 {offsets = [23, 0], sizes = [1, 32], strides = [1, 1]} : vector<32x32xf32> to vector<1x32xf32>
    %514 = vector.extract_strided_slice %488 {offsets = [24, 0], sizes = [1, 32], strides = [1, 1]} : vector<32x32xf32> to vector<1x32xf32>
    %515 = vector.extract_strided_slice %488 {offsets = [25, 0], sizes = [1, 32], strides = [1, 1]} : vector<32x32xf32> to vector<1x32xf32>
    %516 = vector.extract_strided_slice %488 {offsets = [26, 0], sizes = [1, 32], strides = [1, 1]} : vector<32x32xf32> to vector<1x32xf32>
    %517 = vector.extract_strided_slice %488 {offsets = [27, 0], sizes = [1, 32], strides = [1, 1]} : vector<32x32xf32> to vector<1x32xf32>
    %518 = vector.extract_strided_slice %488 {offsets = [28, 0], sizes = [1, 32], strides = [1, 1]} : vector<32x32xf32> to vector<1x32xf32>
    %519 = vector.extract_strided_slice %488 {offsets = [29, 0], sizes = [1, 32], strides = [1, 1]} : vector<32x32xf32> to vector<1x32xf32>
    %520 = vector.extract_strided_slice %488 {offsets = [30, 0], sizes = [1, 32], strides = [1, 1]} : vector<32x32xf32> to vector<1x32xf32>
    %521 = vector.extract_strided_slice %488 {offsets = [31, 0], sizes = [1, 32], strides = [1, 1]} : vector<32x32xf32> to vector<1x32xf32>
    %522 = tpu.concatenate %506, %507, %508, %509, %510, %511, %512, %513, %514, %515, %516, %517, %518, %519, %520, %521 in 1 : vector<1x32xf32>, vector<1x32xf32>, vector<1x32xf32>, vector<1x32xf32>, vector<1x32xf32>, vector<1x32xf32>, vector<1x32xf32>, vector<1x32xf32>, vector<1x32xf32>, vector<1x32xf32>, vector<1x32xf32>, vector<1x32xf32>, vector<1x32xf32>, vector<1x32xf32>, vector<1x32xf32>, vector<1x32xf32> -> vector<1x512xf32>
    %523 = tpu.concatenate %505, %522 in 0 : vector<1x512xf32>, vector<1x512xf32> -> vector<2x512xf32>
    %c0_45 = arith.constant 0 : index
    %c0_46 = arith.constant 0 : index
    %524 = vector.load %arg14[%c0_45, %c0_46] : memref<512x8xf32, #tpu.memory_space<vmem>>, vector<512x8xf32>
    %cst_47 = arith.constant dense<0.000000e+00> : vector<2x8xf32>
    %525 = tpu.matmul %523, %524, %cst_47 {dimension_numbers = #tpu.dot_dimension_numbers<[1], [0], [0], [1], [0, 0, 1, 1], [], []>} : vector<2x512xf32>, vector<512x8xf32>, vector<2x8xf32> -> vector<2x8xf32>
    %c0_48 = arith.constant 0 : index
    %c0_49 = arith.constant 0 : index
    %526 = vector.load %arg15[%c0_48, %c0_49] : memref<1x8xf32, #tpu.memory_space<vmem>>, vector<1x8xf32>
    %527 = vector.broadcast %526 : vector<1x8xf32> to vector<2x8xf32>
    %528 = arith.addf %525, %527 : vector<2x8xf32>
    %c0_50 = arith.constant 0 : index
    %c0_51 = arith.constant 0 : index
    %529 = vector.load %arg16[%c0_50, %c0_51] : memref<2x8xf32, #tpu.memory_space<vmem>>, vector<2x8xf32>
    tpu.vector_store %arg16[%c0_50, %c0_51], %528 {strides = array<i32>} : memref<2x8xf32, #tpu.memory_space<vmem>>, vector<2x8xf32>,
    return
  }
  func.func @transform_0(%arg0: i32) -> (i32, i32) {
    %c0_i32 = arith.constant 0 : i32
    %c0_i32_0 = arith.constant 0 : i32
    %c0_i32_1 = arith.constant 0 : i32
    return %c0_i32, %c0_i32_0 : i32, i32
  }
  func.func @transform_1(%arg0: i32) -> (i32, i32) {
    %c0_i32 = arith.constant 0 : i32
    %c0_i32_0 = arith.constant 0 : i32
    %c0_i32_1 = arith.constant 0 : i32
    return %c0_i32, %c0_i32_0 : i32, i32
  }
  func.func @transform_2(%arg0: i32) -> (i32, i32) {
    %c0_i32 = arith.constant 0 : i32
    %c0_i32_0 = arith.constant 0 : i32
    %c0_i32_1 = arith.constant 0 : i32
    return %c0_i32, %c0_i32_0 : i32, i32
  }
  func.func @transform_3(%arg0: i32) -> (i32, i32) {
    %c0_i32 = arith.constant 0 : i32
    %c0_i32_0 = arith.constant 0 : i32
    %c0_i32_1 = arith.constant 0 : i32
    return %c0_i32, %c0_i32_0 : i32, i32
  }
  func.func @transform_4(%arg0: i32) -> (i32, i32) {
    %c0_i32 = arith.constant 0 : i32
    %c0_i32_0 = arith.constant 0 : i32
    %c0_i32_1 = arith.constant 0 : i32
    return %c0_i32, %c0_i32_0 : i32, i32
  }
  func.func @transform_5(%arg0: i32) -> (i32, i32) {
    %c0_i32 = arith.constant 0 : i32
    %c0_i32_0 = arith.constant 0 : i32
    %c0_i32_1 = arith.constant 0 : i32
    return %c0_i32, %c0_i32_0 : i32, i32
  }
  func.func @transform_6(%arg0: i32) -> (i32, i32) {
    %c0_i32 = arith.constant 0 : i32
    %c0_i32_0 = arith.constant 0 : i32
    %c0_i32_1 = arith.constant 0 : i32
    return %c0_i32, %c0_i32_0 : i32, i32
  }
  func.func @transform_7(%arg0: i32) -> (i32, i32) {
    %c0_i32 = arith.constant 0 : i32
    %c0_i32_0 = arith.constant 0 : i32
    %c0_i32_1 = arith.constant 0 : i32
    return %c0_i32, %c0_i32_0 : i32, i32
  }
  func.func @transform_8(%arg0: i32) -> (i32, i32) {
    %c0_i32 = arith.constant 0 : i32
    %c0_i32_0 = arith.constant 0 : i32
    %c0_i32_1 = arith.constant 0 : i32
    return %c0_i32, %c0_i32_0 : i32, i32
  }
  func.func @transform_9(%arg0: i32) -> (i32, i32) {
    %c0_i32 = arith.constant 0 : i32
    %c0_i32_0 = arith.constant 0 : i32
    %c0_i32_1 = arith.constant 0 : i32
    return %c0_i32, %c0_i32_0 : i32, i32
  }
  func.func @transform_10(%arg0: i32) -> (i32, i32) {
    %c0_i32 = arith.constant 0 : i32
    %c0_i32_0 = arith.constant 0 : i32
    %c0_i32_1 = arith.constant 0 : i32
    return %c0_i32, %c0_i32_0 : i32, i32
  }
  func.func @transform_11(%arg0: i32) -> (i32, i32) {
    %c0_i32 = arith.constant 0 : i32
    %c0_i32_0 = arith.constant 0 : i32
    %c0_i32_1 = arith.constant 0 : i32
    return %c0_i32, %c0_i32_0 : i32, i32
  }
  func.func @transform_12(%arg0: i32) -> (i32, i32) {
    %c0_i32 = arith.constant 0 : i32
    %c0_i32_0 = arith.constant 0 : i32
    %c0_i32_1 = arith.constant 0 : i32
    return %c0_i32, %c0_i32_0 : i32, i32
  }
  func.func @transform_13(%arg0: i32) -> (i32, i32) {
    %c0_i32 = arith.constant 0 : i32
    %c0_i32_0 = arith.constant 0 : i32
    %c0_i32_1 = arith.constant 0 : i32
    return %c0_i32, %c0_i32_0 : i32, i32
  }
  func.func @transform_14(%arg0: i32) -> (i32, i32) {
    %c0_i32 = arith.constant 0 : i32
    %c0_i32_0 = arith.constant 0 : i32
    %c0_i32_1 = arith.constant 0 : i32
    return %c0_i32, %c0_i32_0 : i32, i32
  }
  func.func @transform_15(%arg0: i32) -> (i32, i32) {
    %c0_i32 = arith.constant 0 : i32
    %c0_i32_0 = arith.constant 0 : i32
    %c0_i32_1 = arith.constant 0 : i32
    return %c0_i32, %c0_i32_0 : i32, i32
  }
}

</mosaic_0001>

<llo_original>
// kernel: _lambda_.1
$region0: #{_lambda_.1}
  #allocation0 [shape = 'u32[]', space=smem, size = 0x4, offset = 0x4, fixed_abs, tag = 'smem constant byte address 0x4 - core index']
  #allocation1 [shape = 'u32[72,128]{1,0:T(1,128)}', space=vmem, size = 0x9000, scoped, tag = 'internal scratch']
  %s0 = inlined_call_operand.vmem [shape: f32[200,1], index: 0, kind: input, shape index: {}]
  %s1 = inlined_call_operand.hbm [shape: f32[9,16], index: 1, kind: input, shape index: {}]
  %s2 = inlined_call_operand.hbm [shape: f32[1,16], index: 2, kind: input, shape index: {}]
  %s3 = inlined_call_operand.hbm [shape: f32[1,16], index: 3, kind: input, shape index: {}]
  %s4 = inlined_call_operand.hbm [shape: f32[1,16], index: 4, kind: input, shape index: {}]
  %s5 = inlined_call_operand.hbm [shape: f32[144,32], index: 5, kind: input, shape index: {}]
  %s6 = inlined_call_operand.hbm [shape: f32[1,32], index: 6, kind: input, shape index: {}]
  %s7 = inlined_call_operand.hbm [shape: f32[1,32], index: 7, kind: input, shape index: {}]
  %s8 = inlined_call_operand.vmem [shape: f32[1,32], index: 8, kind: input, shape index: {}]
  %s9 = inlined_call_operand.vmem [shape: f32[288,32], index: 9, kind: input, shape index: {}]
  %s10 = inlined_call_operand.vmem [shape: f32[1,32], index: 10, kind: input, shape index: {}]
  %s11 = inlined_call_operand.vmem [shape: f32[1,32], index: 11, kind: input, shape index: {}]
  %s12 = inlined_call_operand.vmem [shape: f32[1,32], index: 12, kind: input, shape index: {}]
  %s13 = inlined_call_operand.hbm [shape: f32[512,8], index: 13, kind: input, shape index: {}]
  %s14 = inlined_call_operand.vmem [shape: f32[1,8], index: 14, kind: input, shape index: {}]
  %s15 = inlined_call_operand.vmem [shape: f32[2,8], index: 15, kind: output, shape index: {}]
  %s16 = sld [smem:[#allocation0]]
  $region102: #{_lambda_.1} parent=0
    _
  %s18 = ssub.s32 1, %s16
  %s19 = scalar_select 0, %s18, %s16
  $region1: #{_lambda_.1} parent=0
    #allocation2 [shape = 'u8[8192]{0}', space=vmem, size = 0x2000, scoped, tag = 'input window, operand 1, single buffered']
    #allocation3 [shape = 's32[1]{0}', space=sflag, size = 0x4, scoped, tag = 'scoped memory for _lambda_.1']
    #allocation4 [shape = 'u8[512]{0}', space=vmem, size = 0x400, scoped, tag = 'input window, operand 2, single buffered']
    #allocation5 [shape = 's32[1]{0}', space=sflag, size = 0x4, scoped, tag = 'scoped memory for _lambda_.1']
    #allocation6 [shape = 'u8[512]{0}', space=vmem, size = 0x400, scoped, tag = 'input window, operand 3, single buffered']
    #allocation7 [shape = 'u8[512]{0}', space=vmem, size = 0x400, scoped, tag = 'input window, operand 4, single buffered']
    #allocation8 [shape = 's32[1]{0}', space=sflag, size = 0x4, scoped, tag = 'scoped memory for _lambda_.1']
    #allocation9 [shape = 'u8[73728]{0}', space=vmem, size = 0x12000, scoped, tag = 'input window, operand 5, single buffered']
    #allocation10 [shape = 'u8[512]{0}', space=vmem, size = 0x400, scoped, tag = 'input window, operand 6, single buffered']
    #allocation11 [shape = 's32[1]{0}', space=sflag, size = 0x4, scoped, tag = 'scoped memory for _lambda_.1']
    #allocation12 [shape = 'u8[512]{0}', space=vmem, size = 0x400, scoped, tag = 'input window, operand 7, single buffered']
    #allocation13 [shape = 'u8[262144]{0}', space=vmem, size = 0x40000, scoped, tag = 'input window, operand 13, single buffered']
    #allocation14 [shape = 's32[1]{0}', space=sflag, size = 0x4, scoped, tag = 'scoped memory for _lambda_.1']
    %20 = vsyncpa [#allocation3], 0
    %21 = vsyncpa [#allocation5], 0
    %22 = vsyncpa [#allocation8], 0
    %23 = vsyncpa [#allocation11], 0
    %24 = vsyncpa [#allocation14], 0
    // Predicated region
    $region2: #{_lambda_.1} parent=1 // pred_check
      _
    $region3: #{_lambda_.1} parent=1 // pred_check_branch
      %26 = sbr.rel (0) target = $region5
    $region4: #{_lambda_.1} parent=1 // pred_region
      _
    $region5: #{_lambda_.1} parent=1 // pred_fallthru
      _
    // Predicated region
    $region6: #{_lambda_.1} parent=1 // pred_check
      _
    $region7: #{_lambda_.1} parent=1 // pred_check_branch
      %28 = sbr.rel (0) target = $region9
    $region8: #{_lambda_.1} parent=1 // pred_region
      %30 = vsyncadd [#allocation3], 0
      %s31 = sshll.u32 %s1, 4
      %s32 = int_to_ptr.hbm [resolvable:$true] %s31
      %s33 = sshll.u32 [#allocation2], 4
      %s34 = int_to_ptr.vmem [resolvable:$true] %s33
      %39 = dma.hbm_to_vmem [thread:$0]  %s32, 256, %s34, [#allocation3], 128, 128, 8
    $region9: #{_lambda_.1} parent=1 // pred_fallthru
      _
    // Predicated region
    $region10: #{_lambda_.1} parent=1 // pred_check
      _
    $region11: #{_lambda_.1} parent=1 // pred_check_branch
      %41 = sbr.rel (0) target = $region13
    $region12: #{_lambda_.1} parent=1 // pred_region
      %43 = vsyncadd [#allocation5], 0
      %s45 = sshll.u32 %s2, 4
      %s46 = int_to_ptr.hbm [resolvable:$true] %s45
      %s47 = sshll.u32 [#allocation4], 4
      %s48 = int_to_ptr.vmem [resolvable:$true] %s47
      %50 = dma.hbm_to_vmem [thread:$0]  %s46, 16, %s48, [#allocation5]
    $region13: #{_lambda_.1} parent=1 // pred_fallthru
      _
    // Predicated region
    $region14: #{_lambda_.1} parent=1 // pred_check
      _
    $region15: #{_lambda_.1} parent=1 // pred_check_branch
      %52 = sbr.rel (0) target = $region17
    $region16: #{_lambda_.1} parent=1 // pred_region
      %54 = vsyncadd [#allocation5], 0
      %s56 = sshll.u32 %s3, 4
      %s57 = int_to_ptr.hbm [resolvable:$true] %s56
      %s58 = sshll.u32 [#allocation6], 4
      %s59 = int_to_ptr.vmem [resolvable:$true] %s58
      %61 = dma.hbm_to_vmem [thread:$0]  %s57, 16, %s59, [#allocation5]
    $region17: #{_lambda_.1} parent=1 // pred_fallthru
      _
    // Predicated region
    $region18: #{_lambda_.1} parent=1 // pred_check
      _
    $region19: #{_lambda_.1} parent=1 // pred_check_branch
      %63 = sbr.rel (0) target = $region21
    $region20: #{_lambda_.1} parent=1 // pred_region
      %65 = vsyncadd [#allocation8], 0
      %s67 = sshll.u32 %s4, 4
      %s68 = int_to_ptr.hbm [resolvable:$true] %s67
      %s69 = sshll.u32 [#allocation7], 4
      %s70 = int_to_ptr.vmem [resolvable:$true] %s69
      %72 = dma.hbm_to_vmem [thread:$0]  %s68, 16, %s70, [#allocation8]
    $region21: #{_lambda_.1} parent=1 // pred_fallthru
      _
    // Predicated region
    $region22: #{_lambda_.1} parent=1 // pred_check
      _
    $region23: #{_lambda_.1} parent=1 // pred_check_branch
      %74 = sbr.rel (0) target = $region25
    $region24: #{_lambda_.1} parent=1 // pred_region
      %76 = vsyncadd [#allocation8], 0
      %s77 = sshll.u32 %s5, 4
      %s78 = int_to_ptr.hbm [resolvable:$true] %s77
      %s79 = sshll.u32 [#allocation9], 4
      %s80 = int_to_ptr.vmem [resolvable:$true] %s79
      %85 = dma.hbm_to_vmem [thread:$0]  %s78, 2304, %s80, [#allocation8], 128, 128, 8
    $region25: #{_lambda_.1} parent=1 // pred_fallthru
      _
    // Predicated region
    $region26: #{_lambda_.1} parent=1 // pred_check
      _
    $region27: #{_lambda_.1} parent=1 // pred_check_branch
      %87 = sbr.rel (0) target = $region29
    $region28: #{_lambda_.1} parent=1 // pred_region
      %89 = vsyncadd [#allocation11], 0
      %s91 = sshll.u32 %s6, 4
      %s92 = int_to_ptr.hbm [resolvable:$true] %s91
      %s93 = sshll.u32 [#allocation10], 4
      %s94 = int_to_ptr.vmem [resolvable:$true] %s93
      %96 = dma.hbm_to_vmem [thread:$0]  %s92, 16, %s94, [#allocation11]
    $region29: #{_lambda_.1} parent=1 // pred_fallthru
      _
    // Predicated region
    $region30: #{_lambda_.1} parent=1 // pred_check
      _
    $region31: #{_lambda_.1} parent=1 // pred_check_branch
      %98 = sbr.rel (0) target = $region33
    $region32: #{_lambda_.1} parent=1 // pred_region
      %100 = vsyncadd [#allocation11], 0
      %s102 = sshll.u32 %s7, 4
      %s103 = int_to_ptr.hbm [resolvable:$true] %s102
      %s104 = sshll.u32 [#allocation12], 4
      %s105 = int_to_ptr.vmem [resolvable:$true] %s104
      %107 = dma.hbm_to_vmem [thread:$0]  %s103, 16, %s105, [#allocation11]
    $region33: #{_lambda_.1} parent=1 // pred_fallthru
      _
    // Predicated region
    $region34: #{_lambda_.1} parent=1 // pred_check
      _
    $region35: #{_lambda_.1} parent=1 // pred_check_branch
      %109 = sbr.rel (0) target = $region37
    $region36: #{_lambda_.1} parent=1 // pred_region
      _
    $region37: #{_lambda_.1} parent=1 // pred_fallthru
      _
    // Predicated region
    $region38: #{_lambda_.1} parent=1 // pred_check
      _
    $region39: #{_lambda_.1} parent=1 // pred_check_branch
      %111 = sbr.rel (0) target = $region41
    $region40: #{_lambda_.1} parent=1 // pred_region
      _
    $region41: #{_lambda_.1} parent=1 // pred_fallthru
      _
    // Predicated region
    $region42: #{_lambda_.1} parent=1 // pred_check
      _
    $region43: #{_lambda_.1} parent=1 // pred_check_branch
      %113 = sbr.rel (0) target = $region45
    $region44: #{_lambda_.1} parent=1 // pred_region
      _
    $region45: #{_lambda_.1} parent=1 // pred_fallthru
      _
    // Predicated region
    $region46: #{_lambda_.1} parent=1 // pred_check
      _
    $region47: #{_lambda_.1} parent=1 // pred_check_branch
      %115 = sbr.rel (0) target = $region49
    $region48: #{_lambda_.1} parent=1 // pred_region
      _
    $region49: #{_lambda_.1} parent=1 // pred_fallthru
      _
    // Predicated region
    $region50: #{_lambda_.1} parent=1 // pred_check
      _
    $region51: #{_lambda_.1} parent=1 // pred_check_branch
      %117 = sbr.rel (0) target = $region53
    $region52: #{_lambda_.1} parent=1 // pred_region
      _
    $region53: #{_lambda_.1} parent=1 // pred_fallthru
      _
    // Predicated region
    $region54: #{_lambda_.1} parent=1 // pred_check
      _
    $region55: #{_lambda_.1} parent=1 // pred_check_branch
      %119 = sbr.rel (0) target = $region57
    $region56: #{_lambda_.1} parent=1 // pred_region
      %121 = vsyncadd [#allocation14], 0
      %s122 = sshll.u32 %s13, 4
      %s123 = int_to_ptr.hbm [resolvable:$true] %s122
      %s124 = sshll.u32 [#allocation13], 4
      %s125 = int_to_ptr.vmem [resolvable:$true] %s124
      %130 = dma.hbm_to_vmem [thread:$0]  %s123, 8192, %s125, [#allocation14], 128, 128, 8
    $region57: #{_lambda_.1} parent=1 // pred_fallthru
      _
    // Predicated region
    $region58: #{_lambda_.1} parent=1 // pred_check
      _
    $region59: #{_lambda_.1} parent=1 // pred_check_branch
      %132 = sbr.rel (0) target = $region61
    $region60: #{_lambda_.1} parent=1 // pred_region
      _
    $region61: #{_lambda_.1} parent=1 // pred_fallthru
      _
    // Predicated region
    $region62: #{_lambda_.1} parent=1 // pred_check
      _
    $region63: #{_lambda_.1} parent=1 // pred_check_branch
      %134 = sbr.rel (0) target = $region65
    $region64: #{_lambda_.1} parent=1 // pred_region
      %136 = dma.done [#allocation3], 256
    $region65: #{_lambda_.1} parent=1 // pred_fallthru
      _
    // Predicated region
    $region66: #{_lambda_.1} parent=1 // pred_check
      _
    $region67: #{_lambda_.1} parent=1 // pred_check_branch
      %138 = sbr.rel (0) target = $region69
    $region68: #{_lambda_.1} parent=1 // pred_region
      %140 = dma.done [#allocation5], 16
    $region69: #{_lambda_.1} parent=1 // pred_fallthru
      _
    // Predicated region
    $region70: #{_lambda_.1} parent=1 // pred_check
      _
    $region71: #{_lambda_.1} parent=1 // pred_check_branch
      %142 = sbr.rel (0) target = $region73
    $region72: #{_lambda_.1} parent=1 // pred_region
      %144 = dma.done [#allocation5], 16
    $region73: #{_lambda_.1} parent=1 // pred_fallthru
      _
    // Predicated region
    $region74: #{_lambda_.1} parent=1 // pred_check
      _
    $region75: #{_lambda_.1} parent=1 // pred_check_branch
      %146 = sbr.rel (0) target = $region77
    $region76: #{_lambda_.1} parent=1 // pred_region
      %148 = dma.done [#allocation8], 16
    $region77: #{_lambda_.1} parent=1 // pred_fallthru
      _
    // Predicated region
    $region78: #{_lambda_.1} parent=1 // pred_check
      _
    $region79: #{_lambda_.1} parent=1 // pred_check_branch
      %150 = sbr.rel (0) target = $region81
    $region80: #{_lambda_.1} parent=1 // pred_region
      %152 = dma.done [#allocation8], 2304
    $region81: #{_lambda_.1} parent=1 // pred_fallthru
      _
    // Predicated region
    $region82: #{_lambda_.1} parent=1 // pred_check
      _
    $region83: #{_lambda_.1} parent=1 // pred_check_branch
      %154 = sbr.rel (0) target = $region85
    $region84: #{_lambda_.1} parent=1 // pred_region
      %156 = dma.done [#allocation11], 16
    $region85: #{_lambda_.1} parent=1 // pred_fallthru
      _
    // Predicated region
    $region86: #{_lambda_.1} parent=1 // pred_check
      _
    $region87: #{_lambda_.1} parent=1 // pred_check_branch
      %158 = sbr.rel (0) target = $region89
    $region88: #{_lambda_.1} parent=1 // pred_region
      %160 = dma.done [#allocation11], 16
    $region89: #{_lambda_.1} parent=1 // pred_fallthru
      _
    // Predicated region
    $region90: #{_lambda_.1} parent=1 // pred_check
      _
    $region91: #{_lambda_.1} parent=1 // pred_check_branch
      %162 = sbr.rel (0) target = $region93
    $region92: #{_lambda_.1} parent=1 // pred_region
      %164 = dma.done [#allocation14], 8192
    $region93: #{_lambda_.1} parent=1 // pred_fallthru
      _
    %v165 = vld [vmem:[%s0] sm:$0xff]
    %v166 = vld [vmem:[%s0 + $0x8] sm:$0xff]
    %v167 = vld [vmem:[%s0 + $0x10] sm:$0xff]
    %v168 = vld [vmem:[%s0 + $0x18] sm:$0xff]
    %v169 = vld [vmem:[%s0 + $0x20] sm:$0xff]
    %v170 = vld [vmem:[%s0 + $0x28] sm:$0xff]
    %v171 = vld [vmem:[%s0 + $0x30] sm:$0xff]
    %v172 = vld [vmem:[%s0 + $0x38] sm:$0xff]
    %v173 = vld [vmem:[%s0 + $0x40] sm:$0xff]
    %v174 = vld [vmem:[%s0 + $0x48] sm:$0xff]
    %v175 = vld [vmem:[%s0 + $0x50] sm:$0xff]
    %v176 = vld [vmem:[%s0 + $0x58] sm:$0xff]
    %v177 = vld [vmem:[%s0 + $0x60] sm:$0xff]
    %v178 = vld [vmem:[%s0 + $0x68] sm:$0xff]
    %v179 = vld [vmem:[%s0 + $0x70] sm:$0xff]
    %v180 = vld [vmem:[%s0 + $0x78] sm:$0xff]
    %v181 = vld [vmem:[%s0 + $0x80] sm:$0xff]
    %v182 = vld [vmem:[%s0 + $0x88] sm:$0xff]
    %v183 = vld [vmem:[%s0 + $0x90] sm:$0xff]
    %v184 = vld [vmem:[%s0 + $0x98] sm:$0xff]
    %v185 = vld [vmem:[%s0 + $0xa0] sm:$0xff]
    %v186 = vld [vmem:[%s0 + $0xa8] sm:$0xff]
    %v187 = vld [vmem:[%s0 + $0xb0] sm:$0xff]
    %v188 = vld [vmem:[%s0 + $0xb8] sm:$0xff]
    %v189 = vld [vmem:[%s0 + $0xc0] sm:$0xff]
    %v190 = vld [vmem:[#allocation2] sm:$0xff]
    %v191 = vld [vmem:[#allocation2 + $0x8] sm:$0x1]
    %vm194 = vcmask 1045504
    %v195 = vrot.slane %v166, 2
    %v196 = vrot.slane %v167, 2
    %v197 = vsel %vm194, %v195, %v196
    %vm199 = vcmask 1043456
    %v200 = vrot.slane %v167, 4
    %v201 = vrot.slane %v168, 4
    %v202 = vsel %vm199, %v200, %v201
    %vm204 = vcmask 1041408
    %v205 = vrot.slane %v168, 6
    %v206 = vrot.slane %v169, 6
    %v207 = vsel %vm204, %v205, %v206
    %v210 = vrot.slane %v171, 2
    %v211 = vrot.slane %v172, 2
    %v212 = vsel %vm194, %v210, %v211
    %v214 = vrot.slane %v172, 4
    %v215 = vrot.slane %v173, 4
    %v216 = vsel %vm199, %v214, %v215
    %v218 = vrot.slane %v173, 6
    %v219 = vrot.slane %v174, 6
    %v220 = vsel %vm204, %v218, %v219
    %v223 = vrot.slane %v177, 4
    %v224 = vrot.slane %v178, 4
    %v225 = vsel %vm199, %v223, %v224
    %v227 = vrot.slane %v178, 6
    %v228 = vrot.slane %v179, 6
    %v229 = vsel %vm204, %v227, %v228
    %v232 = vrot.slane %v181, 2
    %v233 = vrot.slane %v182, 2
    %v234 = vsel %vm194, %v232, %v233
    %v236 = vrot.slane %v182, 4
    %v237 = vrot.slane %v183, 4
    %v238 = vsel %vm199, %v236, %v237
    %v240 = vrot.slane %v183, 6
    %v241 = vrot.slane %v184, 6
    %v242 = vsel %vm204, %v240, %v241
    %v245 = vrot.slane %v186, 2
    %v246 = vrot.slane %v187, 2
    %v247 = vsel %vm194, %v245, %v246
    %249 = vset.pattern.permute.xlu0 0
    %250 = vperm.xlu0 %249, %v165
    %v251 = vpop.permute.xlu0 %250
    %253 = vset.pattern.permute.xlu0 0
    %254 = vperm.xlu0 %253, %v197
    %v255 = vpop.permute.xlu0 %254
    %257 = vset.pattern.permute.xlu0 0
    %258 = vperm.xlu0 %257, %v202
    %v259 = vpop.permute.xlu0 %258
    %261 = vset.pattern.permute.xlu0 0
    %262 = vperm.xlu0 %261, %v207
    %v263 = vpop.permute.xlu0 %262
    %266 = vset.pattern.permute.xlu0 0
    %267 = vperm.xlu0 %266, %v170
    %v268 = vpop.permute.xlu0 %267
    %270 = vset.pattern.permute.xlu0 0
    %271 = vperm.xlu0 %270, %v212
    %v272 = vpop.permute.xlu0 %271
    %274 = vset.pattern.permute.xlu0 0
    %275 = vperm.xlu0 %274, %v216
    %v276 = vpop.permute.xlu0 %275
    %278 = vset.pattern.permute.xlu0 0
    %279 = vperm.xlu0 %278, %v220
    %v280 = vpop.permute.xlu0 %279
    %282 = vset.pattern.permute.xlu0 0
    %283 = vperm.xlu0 %282, %v225
    %v284 = vpop.permute.xlu0 %283
    %286 = vset.pattern.permute.xlu0 0
    %287 = vperm.xlu0 %286, %v229
    %v288 = vpop.permute.xlu0 %287
    %291 = vset.pattern.permute.xlu0 0
    %292 = vperm.xlu0 %291, %v180
    %v293 = vpop.permute.xlu0 %292
    %295 = vset.pattern.permute.xlu0 0
    %296 = vperm.xlu0 %295, %v234
    %v297 = vpop.permute.xlu0 %296
    %299 = vset.pattern.permute.xlu0 0
    %300 = vperm.xlu0 %299, %v238
    %v301 = vpop.permute.xlu0 %300
    %303 = vset.pattern.permute.xlu0 0
    %304 = vperm.xlu0 %303, %v242
    %v305 = vpop.permute.xlu0 %304
    %308 = vset.pattern.permute.xlu0 0
    %309 = vperm.xlu0 %308, %v185
    %v310 = vpop.permute.xlu0 %309
    %312 = vset.pattern.permute.xlu0 0
    %313 = vperm.xlu0 %312, %v247
    %v314 = vpop.permute.xlu0 %313
    %v316 = vperm.slane %v190, 0
    %v317 = vmul.f32 %v251, %v316
    %v318 = vmul.f32 %v255, %v316
    %v319 = vmul.f32 %v259, %v316
    %v320 = vmul.f32 %v263, %v316
    %v321 = vmul.f32 %v268, %v316
    %v322 = vmul.f32 %v272, %v316
    %v323 = vmul.f32 %v276, %v316
    %v324 = vmul.f32 %v280, %v316
    %v325 = vmul.f32 %v284, %v316
    %v326 = vmul.f32 %v288, %v316
    %v327 = vmul.f32 %v293, %v316
    %v328 = vmul.f32 %v297, %v316
    %v329 = vmul.f32 %v301, %v316
    %v330 = vmul.f32 %v305, %v316
    %v331 = vmul.f32 %v310, %v316
    %v332 = vmul.f32 %v314, %v316
    %v333 = vadd.f32 %v317, 0.0
    %v334 = vadd.f32 %v318, 0.0
    %v335 = vadd.f32 %v319, 0.0
    %v336 = vadd.f32 %v320, 0.0
    %v337 = vadd.f32 %v321, 0.0
    %v338 = vadd.f32 %v322, 0.0
    %v339 = vadd.f32 %v323, 0.0
    %v340 = vadd.f32 %v324, 0.0
    %v341 = vadd.f32 %v325, 0.0
    %v342 = vadd.f32 %v326, 0.0
    %v343 = vadd.f32 %v327, 0.0
    %v344 = vadd.f32 %v328, 0.0
    %v345 = vadd.f32 %v329, 0.0
    %v346 = vadd.f32 %v330, 0.0
    %v347 = vadd.f32 %v331, 0.0
    %v348 = vadd.f32 %v332, 0.0
    %vm349 = vcmask 1046528
    %v350 = vrot.slane %v165, 1
    %v351 = vrot.slane %v166, 1
    %v352 = vsel %vm349, %v350, %v351
    %vm353 = vcmask 1044480
    %v354 = vrot.slane %v166, 3
    %v355 = vrot.slane %v167, 3
    %v356 = vsel %vm353, %v354, %v355
    %vm357 = vcmask 1042432
    %v358 = vrot.slane %v167, 5
    %v359 = vrot.slane %v168, 5
    %v360 = vsel %vm357, %v358, %v359
    %vm361 = vcmask 1040384
    %v362 = vrot.slane %v168, 7
    %v363 = vrot.slane %v169, 7
    %v364 = vsel %vm361, %v362, %v363
    %v365 = vrot.slane %v170, 1
    %v366 = vrot.slane %v171, 1
    %v367 = vsel %vm349, %v365, %v366
    %v368 = vrot.slane %v171, 3
    %v369 = vrot.slane %v172, 3
    %v370 = vsel %vm353, %v368, %v369
    %v371 = vrot.slane %v172, 5
    %v372 = vrot.slane %v173, 5
    %v373 = vsel %vm357, %v371, %v372
    %v374 = vrot.slane %v173, 7
    %v375 = vrot.slane %v174, 7
    %v376 = vsel %vm361, %v374, %v375
    %v377 = vrot.slane %v177, 5
    %v378 = vrot.slane %v178, 5
    %v379 = vsel %vm357, %v377, %v378
    %v380 = vrot.slane %v178, 7
    %v381 = vrot.slane %v179, 7
    %v382 = vsel %vm361, %v380, %v381
    %v383 = vrot.slane %v180, 1
    %v384 = vrot.slane %v181, 1
    %v385 = vsel %vm349, %v383, %v384
    %v386 = vrot.slane %v181, 3
    %v387 = vrot.slane %v182, 3
    %v388 = vsel %vm353, %v386, %v387
    %v389 = vrot.slane %v182, 5
    %v390 = vrot.slane %v183, 5
    %v391 = vsel %vm357, %v389, %v390
    %v392 = vrot.slane %v183, 7
    %v393 = vrot.slane %v184, 7
    %v394 = vsel %vm361, %v392, %v393
    %v395 = vrot.slane %v185, 1
    %v396 = vrot.slane %v186, 1
    %v397 = vsel %vm349, %v395, %v396
    %v398 = vrot.slane %v186, 3
    %v399 = vrot.slane %v187, 3
    %v400 = vsel %vm353, %v398, %v399
    %401 = vset.pattern.permute.xlu0 0
    %402 = vperm.xlu0 %401, %v352
    %v403 = vpop.permute.xlu0 %402
    %405 = vset.pattern.permute.xlu0 0
    %406 = vperm.xlu0 %405, %v356
    %v407 = vpop.permute.xlu0 %406
    %409 = vset.pattern.permute.xlu0 0
    %410 = vperm.xlu0 %409, %v360
    %v411 = vpop.permute.xlu0 %410
    %413 = vset.pattern.permute.xlu0 0
    %414 = vperm.xlu0 %413, %v364
    %v415 = vpop.permute.xlu0 %414
    %417 = vset.pattern.permute.xlu0 0
    %418 = vperm.xlu0 %417, %v367
    %v419 = vpop.permute.xlu0 %418
    %421 = vset.pattern.permute.xlu0 0
    %422 = vperm.xlu0 %421, %v370
    %v423 = vpop.permute.xlu0 %422
    %425 = vset.pattern.permute.xlu0 0
    %426 = vperm.xlu0 %425, %v373
    %v427 = vpop.permute.xlu0 %426
    %429 = vset.pattern.permute.xlu0 0
    %430 = vperm.xlu0 %429, %v376
    %v431 = vpop.permute.xlu0 %430
    %433 = vset.pattern.permute.xlu0 0
    %434 = vperm.xlu0 %433, %v379
    %v435 = vpop.permute.xlu0 %434
    %437 = vset.pattern.permute.xlu0 0
    %438 = vperm.xlu0 %437, %v382
    %v439 = vpop.permute.xlu0 %438
    %441 = vset.pattern.permute.xlu0 0
    %442 = vperm.xlu0 %441, %v385
    %v443 = vpop.permute.xlu0 %442
    %445 = vset.pattern.permute.xlu0 0
    %446 = vperm.xlu0 %445, %v388
    %v447 = vpop.permute.xlu0 %446
    %449 = vset.pattern.permute.xlu0 0
    %450 = vperm.xlu0 %449, %v391
    %v451 = vpop.permute.xlu0 %450
    %453 = vset.pattern.permute.xlu0 0
    %454 = vperm.xlu0 %453, %v394
    %v455 = vpop.permute.xlu0 %454
    %457 = vset.pattern.permute.xlu0 0
    %458 = vperm.xlu0 %457, %v397
    %v459 = vpop.permute.xlu0 %458
    %461 = vset.pattern.permute.xlu0 0
    %462 = vperm.xlu0 %461, %v400
    %v463 = vpop.permute.xlu0 %462
    %v465 = vperm.slane %v190, 1
    %v466 = vmul.f32 %v403, %v465
    %v467 = vmul.f32 %v407, %v465
    %v468 = vmul.f32 %v411, %v465
    %v469 = vmul.f32 %v415, %v465
    %v470 = vmul.f32 %v419, %v465
    %v471 = vmul.f32 %v423, %v465
    %v472 = vmul.f32 %v427, %v465
    %v473 = vmul.f32 %v431, %v465
    %v474 = vmul.f32 %v435, %v465
    %v475 = vmul.f32 %v439, %v465
    %v476 = vmul.f32 %v443, %v465
    %v477 = vmul.f32 %v447, %v465
    %v478 = vmul.f32 %v451, %v465
    %v479 = vmul.f32 %v455, %v465
    %v480 = vmul.f32 %v459, %v465
    %v481 = vmul.f32 %v463, %v465
    %v482 = vadd.f32 %v333, %v466
    %v483 = vadd.f32 %v334, %v467
    %v484 = vadd.f32 %v335, %v468
    %v485 = vadd.f32 %v336, %v469
    %v486 = vadd.f32 %v337, %v470
    %v487 = vadd.f32 %v338, %v471
    %v488 = vadd.f32 %v339, %v472
    %v489 = vadd.f32 %v340, %v473
    %v490 = vadd.f32 %v341, %v474
    %v491 = vadd.f32 %v342, %v475
    %v492 = vadd.f32 %v343, %v476
    %v493 = vadd.f32 %v344, %v477
    %v494 = vadd.f32 %v345, %v478
    %v495 = vadd.f32 %v346, %v479
    %v496 = vadd.f32 %v347, %v480
    %v497 = vadd.f32 %v348, %v481
    %v498 = vrot.slane %v165, 2
    %v499 = vsel %vm194, %v498, %v195
    %v500 = vrot.slane %v166, 4
    %v501 = vsel %vm199, %v500, %v200
    %v502 = vrot.slane %v167, 6
    %v503 = vsel %vm204, %v502, %v205
    %v504 = vrot.slane %v170, 2
    %v505 = vsel %vm194, %v504, %v210
    %v506 = vrot.slane %v171, 4
    %v507 = vsel %vm199, %v506, %v214
    %v508 = vrot.slane %v172, 6
    %v509 = vsel %vm204, %v508, %v218
    %v510 = vrot.slane %v177, 6
    %v511 = vsel %vm204, %v510, %v227
    %v512 = vrot.slane %v180, 2
    %v513 = vsel %vm194, %v512, %v232
    %v514 = vrot.slane %v181, 4
    %v515 = vsel %vm199, %v514, %v236
    %v516 = vrot.slane %v182, 6
    %v517 = vsel %vm204, %v516, %v240
    %v518 = vrot.slane %v185, 2
    %v519 = vsel %vm194, %v518, %v245
    %v520 = vrot.slane %v186, 4
    %v521 = vrot.slane %v187, 4
    %v522 = vsel %vm199, %v520, %v521
    %523 = vset.pattern.permute.xlu0 0
    %524 = vperm.xlu0 %523, %v499
    %v525 = vpop.permute.xlu0 %524
    %527 = vset.pattern.permute.xlu0 0
    %528 = vperm.xlu0 %527, %v501
    %v529 = vpop.permute.xlu0 %528
    %531 = vset.pattern.permute.xlu0 0
    %532 = vperm.xlu0 %531, %v503
    %v533 = vpop.permute.xlu0 %532
    %535 = vset.pattern.permute.xlu0 0
    %536 = vperm.xlu0 %535, %v169
    %v537 = vpop.permute.xlu0 %536
    %539 = vset.pattern.permute.xlu0 0
    %540 = vperm.xlu0 %539, %v505
    %v541 = vpop.permute.xlu0 %540
    %543 = vset.pattern.permute.xlu0 0
    %544 = vperm.xlu0 %543, %v507
    %v545 = vpop.permute.xlu0 %544
    %547 = vset.pattern.permute.xlu0 0
    %548 = vperm.xlu0 %547, %v509
    %v549 = vpop.permute.xlu0 %548
    %551 = vset.pattern.permute.xlu0 0
    %552 = vperm.xlu0 %551, %v174
    %v553 = vpop.permute.xlu0 %552
    %555 = vset.pattern.permute.xlu0 0
    %556 = vperm.xlu0 %555, %v511
    %v557 = vpop.permute.xlu0 %556
    %559 = vset.pattern.permute.xlu0 0
    %560 = vperm.xlu0 %559, %v179
    %v561 = vpop.permute.xlu0 %560
    %563 = vset.pattern.permute.xlu0 0
    %564 = vperm.xlu0 %563, %v513
    %v565 = vpop.permute.xlu0 %564
    %567 = vset.pattern.permute.xlu0 0
    %568 = vperm.xlu0 %567, %v515
    %v569 = vpop.permute.xlu0 %568
    %571 = vset.pattern.permute.xlu0 0
    %572 = vperm.xlu0 %571, %v517
    %v573 = vpop.permute.xlu0 %572
    %575 = vset.pattern.permute.xlu0 0
    %576 = vperm.xlu0 %575, %v184
    %v577 = vpop.permute.xlu0 %576
    %579 = vset.pattern.permute.xlu0 0
    %580 = vperm.xlu0 %579, %v519
    %v581 = vpop.permute.xlu0 %580
    %583 = vset.pattern.permute.xlu0 0
    %584 = vperm.xlu0 %583, %v522
    %v585 = vpop.permute.xlu0 %584
    %v587 = vperm.slane %v190, 2
    %v588 = vmul.f32 %v525, %v587
    %v589 = vmul.f32 %v529, %v587
    %v590 = vmul.f32 %v533, %v587
    %v591 = vmul.f32 %v537, %v587
    %v592 = vmul.f32 %v541, %v587
    %v593 = vmul.f32 %v545, %v587
    %v594 = vmul.f32 %v549, %v587
    %v595 = vmul.f32 %v553, %v587
    %v596 = vmul.f32 %v557, %v587
    %v597 = vmul.f32 %v561, %v587
    %v598 = vmul.f32 %v565, %v587
    %v599 = vmul.f32 %v569, %v587
    %v600 = vmul.f32 %v573, %v587
    %v601 = vmul.f32 %v577, %v587
    %v602 = vmul.f32 %v581, %v587
    %v603 = vmul.f32 %v585, %v587
    %v604 = vadd.f32 %v482, %v588
    %v605 = vadd.f32 %v483, %v589
    %v606 = vadd.f32 %v484, %v590
    %v607 = vadd.f32 %v485, %v591
    %v608 = vadd.f32 %v486, %v592
    %v609 = vadd.f32 %v487, %v593
    %v610 = vadd.f32 %v488, %v594
    %v611 = vadd.f32 %v489, %v595
    %v612 = vadd.f32 %v490, %v596
    %v613 = vadd.f32 %v491, %v597
    %v614 = vadd.f32 %v492, %v598
    %v615 = vadd.f32 %v493, %v599
    %v616 = vadd.f32 %v494, %v600
    %v617 = vadd.f32 %v495, %v601
    %v618 = vadd.f32 %v496, %v602
    %v619 = vadd.f32 %v497, %v603
    %v621 = vrot.slane %v188, 4
    %v622 = vsel %vm199, %v521, %v621
    %624 = vset.pattern.permute.xlu0 0
    %625 = vperm.xlu0 %624, %v175
    %v626 = vpop.permute.xlu0 %625
    %628 = vset.pattern.permute.xlu0 0
    %629 = vperm.xlu0 %628, %v622
    %v630 = vpop.permute.xlu0 %629
    %v632 = vperm.slane %v190, 3
    %v633 = vmul.f32 %v255, %v632
    %v634 = vmul.f32 %v259, %v632
    %v635 = vmul.f32 %v263, %v632
    %v636 = vmul.f32 %v268, %v632
    %v637 = vmul.f32 %v272, %v632
    %v638 = vmul.f32 %v276, %v632
    %v639 = vmul.f32 %v280, %v632
    %v640 = vmul.f32 %v626, %v632
    %v641 = vmul.f32 %v288, %v632
    %v642 = vmul.f32 %v293, %v632
    %v643 = vmul.f32 %v297, %v632
    %v644 = vmul.f32 %v301, %v632
    %v645 = vmul.f32 %v305, %v632
    %v646 = vmul.f32 %v310, %v632
    %v647 = vmul.f32 %v314, %v632
    %v648 = vmul.f32 %v630, %v632
    %v649 = vadd.f32 %v604, %v633
    %v650 = vadd.f32 %v605, %v634
    %v651 = vadd.f32 %v606, %v635
    %v652 = vadd.f32 %v607, %v636
    %v653 = vadd.f32 %v608, %v637
    %v654 = vadd.f32 %v609, %v638
    %v655 = vadd.f32 %v610, %v639
    %v656 = vadd.f32 %v611, %v640
    %v657 = vadd.f32 %v612, %v641
    %v658 = vadd.f32 %v613, %v642
    %v659 = vadd.f32 %v614, %v643
    %v660 = vadd.f32 %v615, %v644
    %v661 = vadd.f32 %v616, %v645
    %v662 = vadd.f32 %v617, %v646
    %v663 = vadd.f32 %v618, %v647
    %v664 = vadd.f32 %v619, %v648
    %v666 = vrot.slane %v175, 1
    %v667 = vrot.slane %v176, 1
    %v668 = vsel %vm349, %v666, %v667
    %v669 = vrot.slane %v187, 5
    %v670 = vrot.slane %v188, 5
    %v671 = vsel %vm357, %v669, %v670
    %672 = vset.pattern.permute.xlu0 0
    %673 = vperm.xlu0 %672, %v668
    %v674 = vpop.permute.xlu0 %673
    %676 = vset.pattern.permute.xlu0 0
    %677 = vperm.xlu0 %676, %v671
    %v678 = vpop.permute.xlu0 %677
    %v680 = vperm.slane %v190, 4
    %v681 = vmul.f32 %v407, %v680
    %v682 = vmul.f32 %v411, %v680
    %v683 = vmul.f32 %v415, %v680
    %v684 = vmul.f32 %v419, %v680
    %v685 = vmul.f32 %v423, %v680
    %v686 = vmul.f32 %v427, %v680
    %v687 = vmul.f32 %v431, %v680
    %v688 = vmul.f32 %v674, %v680
    %v689 = vmul.f32 %v439, %v680
    %v690 = vmul.f32 %v443, %v680
    %v691 = vmul.f32 %v447, %v680
    %v692 = vmul.f32 %v451, %v680
    %v693 = vmul.f32 %v455, %v680
    %v694 = vmul.f32 %v459, %v680
    %v695 = vmul.f32 %v463, %v680
    %v696 = vmul.f32 %v678, %v680
    %v697 = vadd.f32 %v649, %v681
    %v698 = vadd.f32 %v650, %v682
    %v699 = vadd.f32 %v651, %v683
    %v700 = vadd.f32 %v652, %v684
    %v701 = vadd.f32 %v653, %v685
    %v702 = vadd.f32 %v654, %v686
    %v703 = vadd.f32 %v655, %v687
    %v704 = vadd.f32 %v656, %v688
    %v705 = vadd.f32 %v657, %v689
    %v706 = vadd.f32 %v658, %v690
    %v707 = vadd.f32 %v659, %v691
    %v708 = vadd.f32 %v660, %v692
    %v709 = vadd.f32 %v661, %v693
    %v710 = vadd.f32 %v662, %v694
    %v711 = vadd.f32 %v663, %v695
    %v712 = vadd.f32 %v664, %v696
    %v713 = vrot.slane %v175, 2
    %v714 = vrot.slane %v176, 2
    %v715 = vsel %vm194, %v713, %v714
    %v716 = vrot.slane %v187, 6
    %v717 = vrot.slane %v188, 6
    %v718 = vsel %vm204, %v716, %v717
    %719 = vset.pattern.permute.xlu0 0
    %720 = vperm.xlu0 %719, %v715
    %v721 = vpop.permute.xlu0 %720
    %723 = vset.pattern.permute.xlu0 0
    %724 = vperm.xlu0 %723, %v718
    %v725 = vpop.permute.xlu0 %724
    %v727 = vperm.slane %v190, 5
    %v728 = vmul.f32 %v529, %v727
    %v729 = vmul.f32 %v533, %v727
    %v730 = vmul.f32 %v537, %v727
    %v731 = vmul.f32 %v541, %v727
    %v732 = vmul.f32 %v545, %v727
    %v733 = vmul.f32 %v549, %v727
    %v734 = vmul.f32 %v553, %v727
    %v735 = vmul.f32 %v721, %v727
    %v736 = vmul.f32 %v561, %v727
    %v737 = vmul.f32 %v565, %v727
    %v738 = vmul.f32 %v569, %v727
    %v739 = vmul.f32 %v573, %v727
    %v740 = vmul.f32 %v577, %v727
    %v741 = vmul.f32 %v581, %v727
    %v742 = vmul.f32 %v585, %v727
    %v743 = vmul.f32 %v725, %v727
    %v744 = vadd.f32 %v697, %v728
    %v745 = vadd.f32 %v698, %v729
    %v746 = vadd.f32 %v699, %v730
    %v747 = vadd.f32 %v700, %v731
    %v748 = vadd.f32 %v701, %v732
    %v749 = vadd.f32 %v702, %v733
    %v750 = vadd.f32 %v703, %v734
    %v751 = vadd.f32 %v704, %v735
    %v752 = vadd.f32 %v705, %v736
    %v753 = vadd.f32 %v706, %v737
    %v754 = vadd.f32 %v707, %v738
    %v755 = vadd.f32 %v708, %v739
    %v756 = vadd.f32 %v709, %v740
    %v757 = vadd.f32 %v710, %v741
    %v758 = vadd.f32 %v711, %v742
    %v759 = vadd.f32 %v712, %v743
    %v760 = vrot.slane %v177, 2
    %v761 = vsel %vm194, %v714, %v760
    %v763 = vrot.slane %v189, 6
    %v764 = vsel %vm204, %v717, %v763
    %765 = vset.pattern.permute.xlu0 0
    %766 = vperm.xlu0 %765, %v761
    %v767 = vpop.permute.xlu0 %766
    %769 = vset.pattern.permute.xlu0 0
    %770 = vperm.xlu0 %769, %v764
    %v771 = vpop.permute.xlu0 %770
    %v773 = vperm.slane %v190, 6
    %v774 = vmul.f32 %v259, %v773
    %v775 = vmul.f32 %v263, %v773
    %v776 = vmul.f32 %v268, %v773
    %v777 = vmul.f32 %v272, %v773
    %v778 = vmul.f32 %v276, %v773
    %v779 = vmul.f32 %v280, %v773
    %v780 = vmul.f32 %v626, %v773
    %v781 = vmul.f32 %v767, %v773
    %v782 = vmul.f32 %v293, %v773
    %v783 = vmul.f32 %v297, %v773
    %v784 = vmul.f32 %v301, %v773
    %v785 = vmul.f32 %v305, %v773
    %v786 = vmul.f32 %v310, %v773
    %v787 = vmul.f32 %v314, %v773
    %v788 = vmul.f32 %v630, %v773
    %v789 = vmul.f32 %v771, %v773
    %v790 = vadd.f32 %v744, %v774
    %v791 = vadd.f32 %v745, %v775
    %v792 = vadd.f32 %v746, %v776
    %v793 = vadd.f32 %v747, %v777
    %v794 = vadd.f32 %v748, %v778
    %v795 = vadd.f32 %v749, %v779
    %v796 = vadd.f32 %v750, %v780
    %v797 = vadd.f32 %v751, %v781
    %v798 = vadd.f32 %v752, %v782
    %v799 = vadd.f32 %v753, %v783
    %v800 = vadd.f32 %v754, %v784
    %v801 = vadd.f32 %v755, %v785
    %v802 = vadd.f32 %v756, %v786
    %v803 = vadd.f32 %v757, %v787
    %v804 = vadd.f32 %v758, %v788
    %v805 = vadd.f32 %v759, %v789
    %v806 = vrot.slane %v176, 3
    %v807 = vrot.slane %v177, 3
    %v808 = vsel %vm353, %v806, %v807
    %v809 = vrot.slane %v188, 7
    %v810 = vrot.slane %v189, 7
    %v811 = vsel %vm361, %v809, %v810
    %812 = vset.pattern.permute.xlu0 0
    %813 = vperm.xlu0 %812, %v808
    %v814 = vpop.permute.xlu0 %813
    %816 = vset.pattern.permute.xlu0 0
    %817 = vperm.xlu0 %816, %v811
    %v818 = vpop.permute.xlu0 %817
    %v820 = vperm.slane %v190, 7
    %v821 = vmul.f32 %v411, %v820
    %v822 = vmul.f32 %v415, %v820
    %v823 = vmul.f32 %v419, %v820
    %v824 = vmul.f32 %v423, %v820
    %v825 = vmul.f32 %v427, %v820
    %v826 = vmul.f32 %v431, %v820
    %v827 = vmul.f32 %v674, %v820
    %v828 = vmul.f32 %v814, %v820
    %v829 = vmul.f32 %v443, %v820
    %v830 = vmul.f32 %v447, %v820
    %v831 = vmul.f32 %v451, %v820
    %v832 = vmul.f32 %v455, %v820
    %v833 = vmul.f32 %v459, %v820
    %v834 = vmul.f32 %v463, %v820
    %v835 = vmul.f32 %v678, %v820
    %v836 = vmul.f32 %v818, %v820
    %v837 = vadd.f32 %v790, %v821
    %v838 = vadd.f32 %v791, %v822
    %v839 = vadd.f32 %v792, %v823
    %v840 = vadd.f32 %v793, %v824
    %v841 = vadd.f32 %v794, %v825
    %v842 = vadd.f32 %v795, %v826
    %v843 = vadd.f32 %v796, %v827
    %v844 = vadd.f32 %v797, %v828
    %v845 = vadd.f32 %v798, %v829
    %v846 = vadd.f32 %v799, %v830
    %v847 = vadd.f32 %v800, %v831
    %v848 = vadd.f32 %v801, %v832
    %v849 = vadd.f32 %v802, %v833
    %v850 = vadd.f32 %v803, %v834
    %v851 = vadd.f32 %v804, %v835
    %v852 = vadd.f32 %v805, %v836
    %v853 = vrot.slane %v176, 4
    %v854 = vsel %vm199, %v853, %v223
    %855 = vset.pattern.permute.xlu0 0
    %856 = vperm.xlu0 %855, %v854
    %v857 = vpop.permute.xlu0 %856
    %859 = vset.pattern.permute.xlu0 0
    %860 = vperm.xlu0 %859, %v189
    %v861 = vpop.permute.xlu0 %860
    %v863 = vperm.slane %v191, 0
    %v864 = vmul.f32 %v533, %v863
    %v865 = vmul.f32 %v537, %v863
    %v866 = vmul.f32 %v541, %v863
    %v867 = vmul.f32 %v545, %v863
    %v868 = vmul.f32 %v549, %v863
    %v869 = vmul.f32 %v553, %v863
    %v870 = vmul.f32 %v721, %v863
    %v871 = vmul.f32 %v857, %v863
    %v872 = vmul.f32 %v565, %v863
    %v873 = vmul.f32 %v569, %v863
    %v874 = vmul.f32 %v573, %v863
    %v875 = vmul.f32 %v577, %v863
    %v876 = vmul.f32 %v581, %v863
    %v877 = vmul.f32 %v585, %v863
    %v878 = vmul.f32 %v725, %v863
    %v879 = vmul.f32 %v861, %v863
    %v880 = vadd.f32 %v837, %v864
    %v881 = vadd.f32 %v838, %v865
    %v882 = vadd.f32 %v839, %v866
    %v883 = vadd.f32 %v840, %v867
    %v884 = vadd.f32 %v841, %v868
    %v885 = vadd.f32 %v842, %v869
    %v886 = vadd.f32 %v843, %v870
    %v887 = vadd.f32 %v844, %v871
    %v888 = vadd.f32 %v845, %v872
    %v889 = vadd.f32 %v846, %v873
    %v890 = vadd.f32 %v847, %v874
    %v891 = vadd.f32 %v848, %v875
    %v892 = vadd.f32 %v849, %v876
    %v893 = vadd.f32 %v850, %v877
    %v894 = vadd.f32 %v851, %v878
    %v895 = vadd.f32 %v852, %v879
    %v896 = vld [vmem:[#allocation4] sm:$0x1]
    %v898 = vperm.slane %v896, 0
    %v900 = vadd.f32 %v880, %v898
    %v901 = vadd.f32 %v881, %v898
    %v902 = vadd.f32 %v882, %v898
    %v903 = vadd.f32 %v883, %v898
    %v904 = vadd.f32 %v884, %v898
    %v905 = vadd.f32 %v885, %v898
    %v906 = vadd.f32 %v886, %v898
    %v907 = vadd.f32 %v887, %v898
    %v908 = vadd.f32 %v888, %v898
    %v909 = vadd.f32 %v889, %v898
    %v910 = vadd.f32 %v890, %v898
    %v911 = vadd.f32 %v891, %v898
    %v912 = vadd.f32 %v892, %v898
    %v913 = vadd.f32 %v893, %v898
    %v914 = vadd.f32 %v894, %v898
    %v915 = vadd.f32 %v895, %v898
    %v916 = vld [vmem:[#allocation6] sm:$0x1]
    %v917 = vld [vmem:[#allocation7] sm:$0x1]
    %vm918 = vcmask 130048
    %v919 = vsel %vm918, %v900, 0.0
    %v920 = vsel %vm918, %v901, 0.0
    %v921 = vadd.f32 %v919, %v920
    %v922 = vsel %vm918, %v902, 0.0
    %v923 = vadd.f32 %v921, %v922
    %v924 = vsel %vm918, %v903, 0.0
    %v925 = vadd.f32 %v923, %v924
    %v926 = vsel %vm918, %v904, 0.0
    %v927 = vadd.f32 %v925, %v926
    %v928 = vsel %vm918, %v905, 0.0
    %v929 = vadd.f32 %v927, %v928
    %v930 = vsel %vm918, %v906, 0.0
    %v931 = vadd.f32 %v929, %v930
    %v932 = vsel %vm918, %v907, 0.0
    %v933 = vadd.f32 %v931, %v932
    %v934 = vsel %vm918, %v908, 0.0
    %v935 = vadd.f32 %v933, %v934
    %v936 = vsel %vm918, %v909, 0.0
    %v937 = vadd.f32 %v935, %v936
    %v938 = vsel %vm918, %v910, 0.0
    %v939 = vadd.f32 %v937, %v938
    %v940 = vsel %vm918, %v911, 0.0
    %v941 = vadd.f32 %v939, %v940
    %v942 = vsel %vm918, %v912, 0.0
    %v943 = vadd.f32 %v941, %v942
    %v944 = vsel %vm918, %v913, 0.0
    %v945 = vadd.f32 %v943, %v944
    %v946 = vsel %vm918, %v914, 0.0
    %v947 = vadd.f32 %v945, %v946
    %v948 = vsel %vm918, %v915, 0.0
    %v949 = vadd.f32 %v947, %v948
    %v950 = vrot.slane %v949, 4
    %v951 = vadd.f32 %v949, %v950
    %v952 = vrot.slane %v951, 2
    %v953 = vadd.f32 %v951, %v952
    %v954 = vrot.slane %v953, 1
    %v955 = vadd.f32 %v953, %v954
    %v956 = vmul.f32 %v900, %v900
    %v957 = vmul.f32 %v901, %v901
    %v958 = vmul.f32 %v902, %v902
    %v959 = vmul.f32 %v903, %v903
    %v960 = vmul.f32 %v904, %v904
    %v961 = vmul.f32 %v905, %v905
    %v962 = vmul.f32 %v906, %v906
    %v963 = vmul.f32 %v907, %v907
    %v964 = vmul.f32 %v908, %v908
    %v965 = vmul.f32 %v909, %v909
    %v966 = vmul.f32 %v910, %v910
    %v967 = vmul.f32 %v911, %v911
    %v968 = vmul.f32 %v912, %v912
    %v969 = vmul.f32 %v913, %v913
    %v970 = vmul.f32 %v914, %v914
    %v971 = vmul.f32 %v915, %v915
    %v972 = vsel %vm918, %v956, 0.0
    %v973 = vsel %vm918, %v957, 0.0
    %v974 = vadd.f32 %v972, %v973
    %v975 = vsel %vm918, %v958, 0.0
    %v976 = vadd.f32 %v974, %v975
    %v977 = vsel %vm918, %v959, 0.0
    %v978 = vadd.f32 %v976, %v977
    %v979 = vsel %vm918, %v960, 0.0
    %v980 = vadd.f32 %v978, %v979
    %v981 = vsel %vm918, %v961, 0.0
    %v982 = vadd.f32 %v980, %v981
    %v983 = vsel %vm918, %v962, 0.0
    %v984 = vadd.f32 %v982, %v983
    %v985 = vsel %vm918, %v963, 0.0
    %v986 = vadd.f32 %v984, %v985
    %v987 = vsel %vm918, %v964, 0.0
    %v988 = vadd.f32 %v986, %v987
    %v989 = vsel %vm918, %v965, 0.0
    %v990 = vadd.f32 %v988, %v989
    %v991 = vsel %vm918, %v966, 0.0
    %v992 = vadd.f32 %v990, %v991
    %v993 = vsel %vm918, %v967, 0.0
    %v994 = vadd.f32 %v992, %v993
    %v995 = vsel %vm918, %v968, 0.0
    %v996 = vadd.f32 %v994, %v995
    %v997 = vsel %vm918, %v969, 0.0
    %v998 = vadd.f32 %v996, %v997
    %v999 = vsel %vm918, %v970, 0.0
    %v1000 = vadd.f32 %v998, %v999
    %v1001 = vsel %vm918, %v971, 0.0
    %v1002 = vadd.f32 %v1000, %v1001
    %v1003 = vrot.slane %v1002, 4
    %v1004 = vadd.f32 %v1002, %v1003
    %v1005 = vrot.slane %v1004, 2
    %v1006 = vadd.f32 %v1004, %v1005
    %v1007 = vrot.slane %v1006, 1
    %v1008 = vadd.f32 %v1006, %v1007
    %v1009 = vmul.f32 %v955, 0.0078125
    %v1010 = vmul.f32 %v1008, 0.0078125
    %v1011 = vmul.f32 %v1009, %v1009
    %v1012 = vsub.f32 %v1010, %v1011
    %v1013 = vadd.f32 %v1012, 1e-05
    %v1014 = vrsqrt.pop %v1013
    %v1015 = vmul.f32 %v1014, %v1013
    %v1016 = vmul.f32 %v1015, %v1014
    %v1017 = vmul.f32 0.5, %v1016
    %v1018 = vsub.f32 1.5, %v1017
    %v1019 = vmul.f32 %v1014, %v1018
    %vm1020 = vweird.f32 %v1013
    %vm1021 = vweird.f32 %v1014
    %vm1022 = vmor %vm1020, %vm1021
    %v1023 = vsel %vm1022, %v1014, %v1019
    %v1024 = vmul.f32 %v916, %v1023
    %v1025 = vmul.f32 %v1009, %v1024
    %v1026 = vsub.f32 %v917, %v1025
    %v1028 = vperm.slane %v1024, 0
    %v1030 = vmul.f32 %v900, %v1028
    %v1031 = vmul.f32 %v901, %v1028
    %v1032 = vmul.f32 %v902, %v1028
    %v1033 = vmul.f32 %v903, %v1028
    %v1034 = vmul.f32 %v904, %v1028
    %v1035 = vmul.f32 %v905, %v1028
    %v1036 = vmul.f32 %v906, %v1028
    %v1037 = vmul.f32 %v907, %v1028
    %v1038 = vmul.f32 %v908, %v1028
    %v1039 = vmul.f32 %v909, %v1028
    %v1040 = vmul.f32 %v910, %v1028
    %v1041 = vmul.f32 %v911, %v1028
    %v1042 = vmul.f32 %v912, %v1028
    %v1043 = vmul.f32 %v913, %v1028
    %v1044 = vmul.f32 %v914, %v1028
    %v1045 = vmul.f32 %v915, %v1028
    %v1047 = vperm.slane %v1026, 0
    %v1049 = vadd.f32 %v1030, %v1047
    %v1050 = vadd.f32 %v1031, %v1047
    %v1051 = vadd.f32 %v1032, %v1047
    %v1052 = vadd.f32 %v1033, %v1047
    %v1053 = vadd.f32 %v1034, %v1047
    %v1054 = vadd.f32 %v1035, %v1047
    %v1055 = vadd.f32 %v1036, %v1047
    %v1056 = vadd.f32 %v1037, %v1047
    %v1057 = vadd.f32 %v1038, %v1047
    %v1058 = vadd.f32 %v1039, %v1047
    %v1059 = vadd.f32 %v1040, %v1047
    %v1060 = vadd.f32 %v1041, %v1047
    %v1061 = vadd.f32 %v1042, %v1047
    %v1062 = vadd.f32 %v1043, %v1047
    %v1063 = vadd.f32 %v1044, %v1047
    %v1064 = vadd.f32 %v1045, %v1047
    %v1065 = vmax.f32 %v1049, 0.0
    %v1066 = vmax.f32 %v1050, 0.0
    %v1067 = vmax.f32 %v1051, 0.0
    %v1068 = vmax.f32 %v1052, 0.0
    %v1069 = vmax.f32 %v1053, 0.0
    %v1070 = vmax.f32 %v1054, 0.0
    %v1071 = vmax.f32 %v1055, 0.0
    %v1072 = vmax.f32 %v1056, 0.0
    %v1073 = vmax.f32 %v1057, 0.0
    %v1074 = vmax.f32 %v1058, 0.0
    %v1075 = vmax.f32 %v1059, 0.0
    %v1076 = vmax.f32 %v1060, 0.0
    %v1077 = vmax.f32 %v1061, 0.0
    %v1078 = vmax.f32 %v1062, 0.0
    %v1079 = vmax.f32 %v1063, 0.0
    %v1080 = vmax.f32 %v1064, 0.0
    %v1082 = vrot.slane %v1066, 2
    %v1085 = vrot.slane %v1067, 4
    %v1088 = vrot.slane %v1068, 6
    %v1091 = vrot.slane %v1070, 2
    %v1094 = vrot.slane %v1073, 4
    %v1097 = vrot.slane %v1074, 6
    %v1100 = vrot.slane %v1076, 2
    %v1103 = vrot.slane %v1077, 4
    %v1106 = vrot.slane %v1078, 6
    %v1108 = vsel %vm194, %v1065, %v1082
    %v1109 = vsel %vm199, %v1082, %v1085
    %v1110 = vsel %vm204, %v1085, %v1088
    %v1111 = vsel %vm194, %v1069, %v1091
    %v1112 = vsel %vm199, %v1091, %v1094
    %v1113 = vsel %vm204, %v1094, %v1097
    %v1114 = vsel %vm194, %v1075, %v1100
    %v1115 = vsel %vm199, %v1100, %v1103
    %v1116 = vsel %vm204, %v1103, %v1106
    %v1118 = vrot.slane %v1065, 1
    %v1120 = vrot.slane %v1066, 3
    %v1122 = vrot.slane %v1067, 5
    %v1124 = vrot.slane %v1068, 7
    %v1127 = vrot.slane %v1069, 1
    %v1129 = vrot.slane %v1070, 3
    %v1131 = vrot.slane %v1073, 5
    %v1133 = vrot.slane %v1074, 7
    %v1136 = vrot.slane %v1075, 1
    %v1138 = vrot.slane %v1076, 3
    %v1140 = vrot.slane %v1077, 5
    %v1142 = vrot.slane %v1078, 7
    %v1144 = vsel %vm194, %v1118, %v1120
    %v1145 = vsel %vm199, %v1120, %v1122
    %v1146 = vsel %vm204, %v1122, %v1124
    %v1147 = vsel %vm194, %v1127, %v1129
    %v1148 = vsel %vm199, %v1129, %v1131
    %v1149 = vsel %vm204, %v1131, %v1133
    %v1150 = vsel %vm194, %v1136, %v1138
    %v1151 = vsel %vm199, %v1138, %v1140
    %v1152 = vsel %vm204, %v1140, %v1142
    %v1153 = vrot.slane %v1065, 2
    %v1155 = vrot.slane %v1066, 4
    %v1157 = vrot.slane %v1067, 6
    %v1159 = vrot.slane %v1069, 2
    %v1161 = vrot.slane %v1070, 4
    %v1163 = vrot.slane %v1073, 6
    %v1165 = vrot.slane %v1075, 2
    %v1167 = vrot.slane %v1076, 4
    %v1169 = vrot.slane %v1077, 6
    %v1171 = vsel %vm194, %v1153, %v1155
    %v1172 = vsel %vm199, %v1155, %v1157
    %v1173 = vsel %vm204, %v1157, %v1068
    %v1174 = vsel %vm194, %v1159, %v1161
    %v1175 = vsel %vm199, %v1161, %v1163
    %v1176 = vsel %vm204, %v1163, %v1074
    %v1177 = vsel %vm194, %v1165, %v1167
    %v1178 = vsel %vm199, %v1167, %v1169
    %v1179 = vsel %vm204, %v1169, %v1078
    %v1180 = vrot.slane %v1067, 2
    %v1182 = vrot.slane %v1068, 4
    %v1184 = vrot.slane %v1069, 6
    %v1187 = vrot.slane %v1071, 2
    %v1189 = vrot.slane %v1074, 4
    %v1191 = vrot.slane %v1075, 6
    %v1193 = vrot.slane %v1077, 2
    %v1195 = vrot.slane %v1078, 4
    %v1198 = vrot.slane %v1079, 6
    %v1200 = vsel %vm194, %v1066, %v1180
    %v1201 = vsel %vm199, %v1180, %v1182
    %v1202 = vsel %vm204, %v1182, %v1184
    %v1203 = vsel %vm194, %v1070, %v1187
    %v1204 = vsel %vm199, %v1187, %v1189
    %v1205 = vsel %vm204, %v1189, %v1191
    %v1206 = vsel %vm194, %v1076, %v1193
    %v1207 = vsel %vm199, %v1193, %v1195
    %v1208 = vsel %vm204, %v1195, %v1198
    %v1209 = vrot.slane %v1066, 1
    %v1211 = vrot.slane %v1067, 3
    %v1213 = vrot.slane %v1068, 5
    %v1215 = vrot.slane %v1069, 7
    %v1217 = vrot.slane %v1070, 1
    %v1219 = vrot.slane %v1071, 3
    %v1221 = vrot.slane %v1074, 5
    %v1223 = vrot.slane %v1075, 7
    %v1225 = vrot.slane %v1076, 1
    %v1227 = vrot.slane %v1077, 3
    %v1229 = vrot.slane %v1078, 5
    %v1231 = vrot.slane %v1079, 7
    %v1233 = vsel %vm194, %v1209, %v1211
    %v1234 = vsel %vm199, %v1211, %v1213
    %v1235 = vsel %vm204, %v1213, %v1215
    %v1236 = vsel %vm194, %v1217, %v1219
    %v1237 = vsel %vm199, %v1219, %v1221
    %v1238 = vsel %vm204, %v1221, %v1223
    %v1239 = vsel %vm194, %v1225, %v1227
    %v1240 = vsel %vm199, %v1227, %v1229
    %v1241 = vsel %vm204, %v1229, %v1231
    %v1242 = vrot.slane %v1071, 4
    %v1244 = vsel %vm194, %v1082, %v1085
    %v1245 = vsel %vm199, %v1085, %v1088
    %v1246 = vsel %vm204, %v1088, %v1069
    %v1247 = vsel %vm194, %v1091, %v1242
    %v1248 = vsel %vm199, %v1242, %v1097
    %v1249 = vsel %vm204, %v1097, %v1075
    %v1250 = vsel %vm194, %v1100, %v1103
    %v1251 = vsel %vm199, %v1103, %v1106
    %v1252 = vsel %vm204, %v1106, %v1079
    %v1253 = vrot.slane %v1068, 2
    %v1255 = vrot.slane %v1069, 4
    %v1257 = vrot.slane %v1070, 6
    %v1260 = vrot.slane %v1072, 2
    %v1262 = vrot.slane %v1075, 4
    %v1264 = vrot.slane %v1076, 6
    %v1266 = vrot.slane %v1078, 2
    %v1268 = vrot.slane %v1079, 4
    %v1271 = vrot.slane %v1080, 6
    %v1273 = vsel %vm194, %v1067, %v1253
    %v1274 = vsel %vm199, %v1253, %v1255
    %v1275 = vsel %vm204, %v1255, %v1257
    %v1276 = vsel %vm194, %v1071, %v1260
    %v1277 = vsel %vm199, %v1260, %v1262
    %v1278 = vsel %vm204, %v1262, %v1264
    %v1279 = vsel %vm194, %v1077, %v1266
    %v1280 = vsel %vm199, %v1266, %v1268
    %v1281 = vsel %vm204, %v1268, %v1271
    %v1282 = vrot.slane %v1067, 1
    %v1284 = vrot.slane %v1068, 3
    %v1286 = vrot.slane %v1069, 5
    %v1288 = vrot.slane %v1070, 7
    %v1290 = vrot.slane %v1071, 1
    %v1292 = vrot.slane %v1072, 3
    %v1294 = vrot.slane %v1075, 5
    %v1296 = vrot.slane %v1076, 7
    %v1298 = vrot.slane %v1077, 1
    %v1300 = vrot.slane %v1078, 3
    %v1302 = vrot.slane %v1079, 5
    %v1304 = vrot.slane %v1080, 7
    %v1306 = vsel %vm194, %v1282, %v1284
    %v1307 = vsel %vm199, %v1284, %v1286
    %v1308 = vsel %vm204, %v1286, %v1288
    %v1309 = vsel %vm194, %v1290, %v1292
    %v1310 = vsel %vm199, %v1292, %v1294
    %v1311 = vsel %vm204, %v1294, %v1296
    %v1312 = vsel %vm194, %v1298, %v1300
    %v1313 = vsel %vm199, %v1300, %v1302
    %v1314 = vsel %vm204, %v1302, %v1304
    %v1315 = vrot.slane %v1072, 4
    %v1317 = vsel %vm194, %v1180, %v1182
    %v1318 = vsel %vm199, %v1182, %v1184
    %v1319 = vsel %vm204, %v1184, %v1070
    %v1320 = vsel %vm194, %v1187, %v1315
    %v1321 = vsel %vm199, %v1315, %v1191
    %v1322 = vsel %vm204, %v1191, %v1076
    %v1323 = vsel %vm194, %v1193, %v1195
    %v1324 = vsel %vm199, %v1195, %v1198
    %v1325 = vsel %vm204, %v1198, %v1080
    %1335 = vrot.lane.b32.xlu0 %v1144, 16
    %v1336 = vpop.permute.xlu0 %1335
    %1337 = vrot.lane.b32.xlu0 %v1145, 16
    %v1338 = vpop.permute.xlu0 %1337
    %1339 = vrot.lane.b32.xlu0 %v1146, 16
    %v1340 = vpop.permute.xlu0 %1339
    %1341 = vrot.lane.b32.xlu0 %v1147, 16
    %v1342 = vpop.permute.xlu0 %1341
    %1343 = vrot.lane.b32.xlu0 %v1148, 16
    %v1344 = vpop.permute.xlu0 %1343
    %1345 = vrot.lane.b32.xlu0 %v1149, 16
    %v1346 = vpop.permute.xlu0 %1345
    %1347 = vrot.lane.b32.xlu0 %v1150, 16
    %v1348 = vpop.permute.xlu0 %1347
    %1349 = vrot.lane.b32.xlu0 %v1151, 16
    %v1350 = vpop.permute.xlu0 %1349
    %1351 = vrot.lane.b32.xlu0 %v1152, 16
    %v1352 = vpop.permute.xlu0 %1351
    %1371 = vrot.lane.b32.xlu0 %v1171, 32
    %v1372 = vpop.permute.xlu0 %1371
    %1373 = vrot.lane.b32.xlu0 %v1172, 32
    %v1374 = vpop.permute.xlu0 %1373
    %1375 = vrot.lane.b32.xlu0 %v1173, 32
    %v1376 = vpop.permute.xlu0 %1375
    %1377 = vrot.lane.b32.xlu0 %v1174, 32
    %v1378 = vpop.permute.xlu0 %1377
    %1379 = vrot.lane.b32.xlu0 %v1175, 32
    %v1380 = vpop.permute.xlu0 %1379
    %1381 = vrot.lane.b32.xlu0 %v1176, 32
    %v1382 = vpop.permute.xlu0 %1381
    %1383 = vrot.lane.b32.xlu0 %v1177, 32
    %v1384 = vpop.permute.xlu0 %1383
    %1385 = vrot.lane.b32.xlu0 %v1178, 32
    %v1386 = vpop.permute.xlu0 %1385
    %1387 = vrot.lane.b32.xlu0 %v1179, 32
    %v1388 = vpop.permute.xlu0 %1387
    %1407 = vrot.lane.b32.xlu0 %v1200, 48
    %v1408 = vpop.permute.xlu0 %1407
    %1409 = vrot.lane.b32.xlu0 %v1201, 48
    %v1410 = vpop.permute.xlu0 %1409
    %1411 = vrot.lane.b32.xlu0 %v1202, 48
    %v1412 = vpop.permute.xlu0 %1411
    %1413 = vrot.lane.b32.xlu0 %v1203, 48
    %v1414 = vpop.permute.xlu0 %1413
    %1415 = vrot.lane.b32.xlu0 %v1204, 48
    %v1416 = vpop.permute.xlu0 %1415
    %1417 = vrot.lane.b32.xlu0 %v1205, 48
    %v1418 = vpop.permute.xlu0 %1417
    %1419 = vrot.lane.b32.xlu0 %v1206, 48
    %v1420 = vpop.permute.xlu0 %1419
    %1421 = vrot.lane.b32.xlu0 %v1207, 48
    %v1422 = vpop.permute.xlu0 %1421
    %1423 = vrot.lane.b32.xlu0 %v1208, 48
    %v1424 = vpop.permute.xlu0 %1423
    %1443 = vrot.lane.b32.xlu0 %v1233, 64
    %v1444 = vpop.permute.xlu0 %1443
    %1445 = vrot.lane.b32.xlu0 %v1234, 64
    %v1446 = vpop.permute.xlu0 %1445
    %1447 = vrot.lane.b32.xlu0 %v1235, 64
    %v1448 = vpop.permute.xlu0 %1447
    %1449 = vrot.lane.b32.xlu0 %v1236, 64
    %v1450 = vpop.permute.xlu0 %1449
    %1451 = vrot.lane.b32.xlu0 %v1237, 64
    %v1452 = vpop.permute.xlu0 %1451
    %1453 = vrot.lane.b32.xlu0 %v1238, 64
    %v1454 = vpop.permute.xlu0 %1453
    %1455 = vrot.lane.b32.xlu0 %v1239, 64
    %v1456 = vpop.permute.xlu0 %1455
    %1457 = vrot.lane.b32.xlu0 %v1240, 64
    %v1458 = vpop.permute.xlu0 %1457
    %1459 = vrot.lane.b32.xlu0 %v1241, 64
    %v1460 = vpop.permute.xlu0 %1459
    %1479 = vrot.lane.b32.xlu0 %v1244, 80
    %v1480 = vpop.permute.xlu0 %1479
    %1481 = vrot.lane.b32.xlu0 %v1245, 80
    %v1482 = vpop.permute.xlu0 %1481
    %1483 = vrot.lane.b32.xlu0 %v1246, 80
    %v1484 = vpop.permute.xlu0 %1483
    %1485 = vrot.lane.b32.xlu0 %v1247, 80
    %v1486 = vpop.permute.xlu0 %1485
    %1487 = vrot.lane.b32.xlu0 %v1248, 80
    %v1488 = vpop.permute.xlu0 %1487
    %1489 = vrot.lane.b32.xlu0 %v1249, 80
    %v1490 = vpop.permute.xlu0 %1489
    %1491 = vrot.lane.b32.xlu0 %v1250, 80
    %v1492 = vpop.permute.xlu0 %1491
    %1493 = vrot.lane.b32.xlu0 %v1251, 80
    %v1494 = vpop.permute.xlu0 %1493
    %1495 = vrot.lane.b32.xlu0 %v1252, 80
    %v1496 = vpop.permute.xlu0 %1495
    %1515 = vrot.lane.b32.xlu0 %v1273, 96
    %v1516 = vpop.permute.xlu0 %1515
    %1517 = vrot.lane.b32.xlu0 %v1274, 96
    %v1518 = vpop.permute.xlu0 %1517
    %1519 = vrot.lane.b32.xlu0 %v1275, 96
    %v1520 = vpop.permute.xlu0 %1519
    %1521 = vrot.lane.b32.xlu0 %v1276, 96
    %v1522 = vpop.permute.xlu0 %1521
    %1523 = vrot.lane.b32.xlu0 %v1277, 96
    %v1524 = vpop.permute.xlu0 %1523
    %1525 = vrot.lane.b32.xlu0 %v1278, 96
    %v1526 = vpop.permute.xlu0 %1525
    %1527 = vrot.lane.b32.xlu0 %v1279, 96
    %v1528 = vpop.permute.xlu0 %1527
    %1529 = vrot.lane.b32.xlu0 %v1280, 96
    %v1530 = vpop.permute.xlu0 %1529
    %1531 = vrot.lane.b32.xlu0 %v1281, 96
    %v1532 = vpop.permute.xlu0 %1531
    %1551 = vrot.lane.b32.xlu0 %v1306, 112
    %v1552 = vpop.permute.xlu0 %1551
    %1553 = vrot.lane.b32.xlu0 %v1307, 112
    %v1554 = vpop.permute.xlu0 %1553
    %1555 = vrot.lane.b32.xlu0 %v1308, 112
    %v1556 = vpop.permute.xlu0 %1555
    %1557 = vrot.lane.b32.xlu0 %v1309, 112
    %v1558 = vpop.permute.xlu0 %1557
    %1559 = vrot.lane.b32.xlu0 %v1310, 112
    %v1560 = vpop.permute.xlu0 %1559
    %1561 = vrot.lane.b32.xlu0 %v1311, 112
    %v1562 = vpop.permute.xlu0 %1561
    %1563 = vrot.lane.b32.xlu0 %v1312, 112
    %v1564 = vpop.permute.xlu0 %1563
    %1565 = vrot.lane.b32.xlu0 %v1313, 112
    %v1566 = vpop.permute.xlu0 %1565
    %1567 = vrot.lane.b32.xlu0 %v1314, 112
    %v1568 = vpop.permute.xlu0 %1567
    %v1578 = vsel %vm918, %v1108, %v1336
    %v1579 = vsel %vm918, %v1109, %v1338
    %v1580 = vsel %vm918, %v1110, %v1340
    %v1581 = vsel %vm918, %v1111, %v1342
    %v1582 = vsel %vm918, %v1112, %v1344
    %v1583 = vsel %vm918, %v1113, %v1346
    %v1584 = vsel %vm918, %v1114, %v1348
    %v1585 = vsel %vm918, %v1115, %v1350
    %v1586 = vsel %vm918, %v1116, %v1352
    %vm1587 = vcmask 261120
    %v1588 = vsel %vm1587, %v1578, %v1372
    %v1589 = vsel %vm1587, %v1579, %v1374
    %v1590 = vsel %vm1587, %v1580, %v1376
    %v1591 = vsel %vm1587, %v1581, %v1378
    %v1592 = vsel %vm1587, %v1582, %v1380
    %v1593 = vsel %vm1587, %v1583, %v1382
    %v1594 = vsel %vm1587, %v1584, %v1384
    %v1595 = vsel %vm1587, %v1585, %v1386
    %v1596 = vsel %vm1587, %v1586, %v1388
    %vm1597 = vcmask 392192
    %v1598 = vsel %vm1597, %v1588, %v1408
    %v1599 = vsel %vm1597, %v1589, %v1410
    %v1600 = vsel %vm1597, %v1590, %v1412
    %v1601 = vsel %vm1597, %v1591, %v1414
    %v1602 = vsel %vm1597, %v1592, %v1416
    %v1603 = vsel %vm1597, %v1593, %v1418
    %v1604 = vsel %vm1597, %v1594, %v1420
    %v1605 = vsel %vm1597, %v1595, %v1422
    %v1606 = vsel %vm1597, %v1596, %v1424
    %vm1607 = vcmask 523264
    %v1608 = vsel %vm1607, %v1598, %v1444
    %v1609 = vsel %vm1607, %v1599, %v1446
    %v1610 = vsel %vm1607, %v1600, %v1448
    %v1611 = vsel %vm1607, %v1601, %v1450
    %v1612 = vsel %vm1607, %v1602, %v1452
    %v1613 = vsel %vm1607, %v1603, %v1454
    %v1614 = vsel %vm1607, %v1604, %v1456
    %v1615 = vsel %vm1607, %v1605, %v1458
    %v1616 = vsel %vm1607, %v1606, %v1460
    %vm1617 = vcmask 654336
    %v1618 = vsel %vm1617, %v1608, %v1480
    %v1619 = vsel %vm1617, %v1609, %v1482
    %v1620 = vsel %vm1617, %v1610, %v1484
    %v1621 = vsel %vm1617, %v1611, %v1486
    %v1622 = vsel %vm1617, %v1612, %v1488
    %v1623 = vsel %vm1617, %v1613, %v1490
    %v1624 = vsel %vm1617, %v1614, %v1492
    %v1625 = vsel %vm1617, %v1615, %v1494
    %v1626 = vsel %vm1617, %v1616, %v1496
    %vm1627 = vcmask 785408
    %v1628 = vsel %vm1627, %v1618, %v1516
    %v1629 = vsel %vm1627, %v1619, %v1518
    %v1630 = vsel %vm1627, %v1620, %v1520
    %v1631 = vsel %vm1627, %v1621, %v1522
    %v1632 = vsel %vm1627, %v1622, %v1524
    %v1633 = vsel %vm1627, %v1623, %v1526
    %v1634 = vsel %vm1627, %v1624, %v1528
    %v1635 = vsel %vm1627, %v1625, %v1530
    %v1636 = vsel %vm1627, %v1626, %v1532
    %vm1637 = vcmask 916480
    %v1638 = vsel %vm1637, %v1628, %v1552
    %v1639 = vsel %vm1637, %v1629, %v1554
    %v1640 = vsel %vm1637, %v1630, %v1556
    %v1641 = vsel %vm1637, %v1631, %v1558
    %v1642 = vsel %vm1637, %v1632, %v1560
    %v1643 = vsel %vm1637, %v1633, %v1562
    %v1644 = vsel %vm1637, %v1634, %v1564
    %v1645 = vsel %vm1637, %v1635, %v1566
    %v1646 = vsel %vm1637, %v1636, %v1568
    %v1647 = vld [vmem:[#allocation9] sm:$0xff]
    %v1648 = vld [vmem:[#allocation9 + $0x8] sm:$0xff]
    %v1649 = vld [vmem:[#allocation9 + $0x10] sm:$0xff]
    %v1650 = vld [vmem:[#allocation9 + $0x18] sm:$0xff]
    %v1651 = vld [vmem:[#allocation9 + $0x20] sm:$0xff]
    %v1652 = vld [vmem:[#allocation9 + $0x28] sm:$0xff]
    %v1653 = vld [vmem:[#allocation9 + $0x30] sm:$0xff]
    %v1654 = vld [vmem:[#allocation9 + $0x38] sm:$0xff]
    %v1655 = vld [vmem:[#allocation9 + $0x40] sm:$0xff]
    %v1656 = vld [vmem:[#allocation9 + $0x48] sm:$0xff]
    %v1657 = vld [vmem:[#allocation9 + $0x50] sm:$0xff]
    %v1658 = vld [vmem:[#allocation9 + $0x58] sm:$0xff]
    %v1659 = vld [vmem:[#allocation9 + $0x60] sm:$0xff]
    %v1660 = vld [vmem:[#allocation9 + $0x68] sm:$0xff]
    %v1661 = vld [vmem:[#allocation9 + $0x70] sm:$0xff]
    %v1662 = vld [vmem:[#allocation9 + $0x78] sm:$0xff]
    %v1663 = vld [vmem:[#allocation9 + $0x80] sm:$0xff]
    %v1664 = vld [vmem:[#allocation9 + $0x88] sm:$0xff]
    %v1665 = vld [vmem:[#allocation10] sm:$0x1]
    %v1667 = vperm.slane %v1665, 0
    %v1670 = vsel %vm918, %v1317, 0
    %v1673 = vsel %vm918, %v1318, 0
    %v1676 = vsel %vm918, %v1319, 0
    %v1679 = vsel %vm918, %v1320, 0
    %v1682 = vsel %vm918, %v1321, 0
    %v1685 = vsel %vm918, %v1322, 0
    %v1688 = vsel %vm918, %v1323, 0
    %v1691 = vsel %vm918, %v1324, 0
    %v1694 = vsel %vm918, %v1325, 0
    %1696 = vmatpush.msra.mxu0 %v1662
    %1697 = vmatpush.msra.mxu0 %v1661
    %1698 = vmatpush.msra.mxu0 %v1660
    %1699 = vmatpush.msra.mxu0 %v1659
    %1700 = vmatpush.msra.mxu0 %v1658
    %1701 = vmatpush.msra.mxu0 %v1657
    %1702 = vmatpush.msra.mxu0 %v1656
    %1703 = vmatpush.msra.mxu0 %v1655
    %1704 = vmatpush.msra.mxu0 %v1654
    %1705 = vmatpush.msra.mxu0 %v1653
    %1706 = vmatpush.msra.mxu0 %v1652
    %1707 = vmatpush.msra.mxu0 %v1651
    %1708 = vmatpush.msra.mxu0 %v1650
    %1709 = vmatpush.msra.mxu0 %v1649
    %1710 = vmatpush.msra.mxu0 %v1648
    %1711 = vmatpush.msra.mxu0 %v1647
    %1712 = vmatmul.f32.gmra.mxu0 %v1638
    %v1713 = vpop.f32.mrf.mxu0
    %v1714 = vadd.f32 %v1667, %v1713
    %1715 = vmatmul.f32.gmra.mxu0 %v1639
    %v1716 = vpop.f32.mrf.mxu0
    %v1717 = vadd.f32 %v1667, %v1716
    %1718 = vmatmul.f32.gmra.mxu0 %v1640
    %v1719 = vpop.f32.mrf.mxu0
    %v1720 = vadd.f32 %v1667, %v1719
    %1721 = vmatmul.f32.gmra.mxu0 %v1641
    %v1722 = vpop.f32.mrf.mxu0
    %v1723 = vadd.f32 %v1667, %v1722
    %1724 = vmatmul.f32.gmra.mxu0 %v1642
    %v1725 = vpop.f32.mrf.mxu0
    %v1726 = vadd.f32 %v1667, %v1725
    %1727 = vmatmul.f32.gmra.mxu0 %v1643
    %v1728 = vpop.f32.mrf.mxu0
    %v1729 = vadd.f32 %v1667, %v1728
    %1730 = vmatmul.f32.gmra.mxu0 %v1644
    %v1731 = vpop.f32.mrf.mxu0
    %v1732 = vadd.f32 %v1667, %v1731
    %1733 = vmatmul.f32.gmra.mxu0 %v1645
    %v1734 = vpop.f32.mrf.mxu0
    %v1735 = vadd.f32 %v1667, %v1734
    %1736 = vmatmul.f32.gmra.mxu0 %v1646
    %v1737 = vpop.f32.mrf.mxu0
    %v1738 = vadd.f32 %v1667, %v1737
    %1739 = vdwg.mxu0
    %1740 = vmatpush.msra.mxu0 0.0
    %1741 = vmatpush.msra.mxu0 0.0
    %1742 = vmatpush.msra.mxu0 0.0
    %1743 = vmatpush.msra.mxu0 0.0
    %1744 = vmatpush.msra.mxu0 0.0
    %1745 = vmatpush.msra.mxu0 0.0
    %1746 = vmatpush.msra.mxu0 0.0
    %1747 = vmatpush.msra.mxu0 0.0
    %1748 = vmatpush.msra.mxu0 0.0
    %1749 = vmatpush.msra.mxu0 0.0
    %1750 = vmatpush.msra.mxu0 0.0
    %1751 = vmatpush.msra.mxu0 0.0
    %1752 = vmatpush.msra.mxu0 0.0
    %1753 = vmatpush.msra.mxu0 0.0
    %1754 = vmatpush.msra.mxu0 %v1664
    %1755 = vmatpush.msra.mxu0 %v1663
    %1756 = vmatmul.f32.gmra.mxu0 %v1670
    %v1757 = vpop.f32.mrf.mxu0
    %v1758 = vadd.f32 %v1714, %v1757
    %1759 = vmatmul.f32.gmra.mxu0 %v1673
    %v1760 = vpop.f32.mrf.mxu0
    %v1761 = vadd.f32 %v1717, %v1760
    %1762 = vmatmul.f32.gmra.mxu0 %v1676
    %v1763 = vpop.f32.mrf.mxu0
    %v1764 = vadd.f32 %v1720, %v1763
    %1765 = vmatmul.f32.gmra.mxu0 %v1679
    %v1766 = vpop.f32.mrf.mxu0
    %v1767 = vadd.f32 %v1723, %v1766
    %1768 = vmatmul.f32.gmra.mxu0 %v1682
    %v1769 = vpop.f32.mrf.mxu0
    %v1770 = vadd.f32 %v1726, %v1769
    %1771 = vmatmul.f32.gmra.mxu0 %v1685
    %v1772 = vpop.f32.mrf.mxu0
    %v1773 = vadd.f32 %v1729, %v1772
    %1774 = vmatmul.f32.gmra.mxu0 %v1688
    %v1775 = vpop.f32.mrf.mxu0
    %v1776 = vadd.f32 %v1732, %v1775
    %1777 = vmatmul.f32.gmra.mxu0 %v1691
    %v1778 = vpop.f32.mrf.mxu0
    %v1779 = vadd.f32 %v1735, %v1778
    %1780 = vmatmul.f32.gmra.mxu0 %v1694
    %v1781 = vpop.f32.mrf.mxu0
    %v1782 = vadd.f32 %v1738, %v1781
    %1783 = vdwg.mxu0
    %v1784 = vld [vmem:[#allocation12] sm:$0x1]
    %v1785 = vld [vmem:[%s8] sm:$0x1]
    %v1786 = vsel %vm1587, %v1758, 0.0
    %v1787 = vsel %vm1587, %v1761, 0.0
    %v1788 = vadd.f32 %v1786, %v1787
    %v1789 = vsel %vm1587, %v1764, 0.0
    %v1790 = vadd.f32 %v1788, %v1789
    %v1791 = vsel %vm1587, %v1767, 0.0
    %v1792 = vadd.f32 %v1790, %v1791
    %v1793 = vsel %vm1587, %v1770, 0.0
    %v1794 = vadd.f32 %v1792, %v1793
    %v1795 = vsel %vm1587, %v1773, 0.0
    %v1796 = vadd.f32 %v1794, %v1795
    %v1797 = vsel %vm1587, %v1776, 0.0
    %v1798 = vadd.f32 %v1796, %v1797
    %v1799 = vsel %vm1587, %v1779, 0.0
    %v1800 = vadd.f32 %v1798, %v1799
    %v1801 = vsel %vm1587, %v1782, 0.0
    %v1802 = vadd.f32 %v1800, %v1801
    %v1803 = vrot.slane %v1802, 4
    %v1804 = vadd.f32 %v1802, %v1803
    %v1805 = vrot.slane %v1804, 2
    %v1806 = vadd.f32 %v1804, %v1805
    %v1807 = vrot.slane %v1806, 1
    %v1808 = vadd.f32 %v1806, %v1807
    %v1809 = vmul.f32 %v1758, %v1758
    %v1810 = vmul.f32 %v1761, %v1761
    %v1811 = vmul.f32 %v1764, %v1764
    %v1812 = vmul.f32 %v1767, %v1767
    %v1813 = vmul.f32 %v1770, %v1770
    %v1814 = vmul.f32 %v1773, %v1773
    %v1815 = vmul.f32 %v1776, %v1776
    %v1816 = vmul.f32 %v1779, %v1779
    %v1817 = vmul.f32 %v1782, %v1782
    %v1818 = vsel %vm1587, %v1809, 0.0
    %v1819 = vsel %vm1587, %v1810, 0.0
    %v1820 = vadd.f32 %v1818, %v1819
    %v1821 = vsel %vm1587, %v1811, 0.0
    %v1822 = vadd.f32 %v1820, %v1821
    %v1823 = vsel %vm1587, %v1812, 0.0
    %v1824 = vadd.f32 %v1822, %v1823
    %v1825 = vsel %vm1587, %v1813, 0.0
    %v1826 = vadd.f32 %v1824, %v1825
    %v1827 = vsel %vm1587, %v1814, 0.0
    %v1828 = vadd.f32 %v1826, %v1827
    %v1829 = vsel %vm1587, %v1815, 0.0
    %v1830 = vadd.f32 %v1828, %v1829
    %v1831 = vsel %vm1587, %v1816, 0.0
    %v1832 = vadd.f32 %v1830, %v1831
    %v1833 = vsel %vm1587, %v1817, 0.0
    %v1834 = vadd.f32 %v1832, %v1833
    %v1835 = vrot.slane %v1834, 4
    %v1836 = vadd.f32 %v1834, %v1835
    %v1837 = vrot.slane %v1836, 2
    %v1838 = vadd.f32 %v1836, %v1837
    %v1839 = vrot.slane %v1838, 1
    %v1840 = vadd.f32 %v1838, %v1839
    %v1841 = vmul.f32 %v1808, 0.013888889
    %v1842 = vmul.f32 %v1840, 0.013888889
    %v1843 = vmul.f32 %v1841, %v1841
    %v1844 = vsub.f32 %v1842, %v1843
    %v1845 = vadd.f32 %v1844, 1e-05
    %v1846 = vrsqrt.pop %v1845
    %v1847 = vmul.f32 %v1846, %v1845
    %v1848 = vmul.f32 %v1847, %v1846
    %v1849 = vmul.f32 0.5, %v1848
    %v1850 = vsub.f32 1.5, %v1849
    %v1851 = vmul.f32 %v1846, %v1850
    %vm1852 = vweird.f32 %v1845
    %vm1853 = vweird.f32 %v1846
    %vm1854 = vmor %vm1852, %vm1853
    %v1855 = vsel %vm1854, %v1846, %v1851
    %v1856 = vmul.f32 %v1784, %v1855
    %v1857 = vmul.f32 %v1841, %v1856
    %v1858 = vsub.f32 %v1785, %v1857
    %v1860 = vperm.slane %v1856, 0
    %v1862 = vmul.f32 %v1758, %v1860
    %v1863 = vmul.f32 %v1761, %v1860
    %v1864 = vmul.f32 %v1764, %v1860
    %v1865 = vmul.f32 %v1767, %v1860
    %v1866 = vmul.f32 %v1770, %v1860
    %v1867 = vmul.f32 %v1773, %v1860
    %v1868 = vmul.f32 %v1776, %v1860
    %v1869 = vmul.f32 %v1779, %v1860
    %v1870 = vmul.f32 %v1782, %v1860
    %v1872 = vperm.slane %v1858, 0
    %v1874 = vadd.f32 %v1862, %v1872
    %v1875 = vadd.f32 %v1863, %v1872
    %v1876 = vadd.f32 %v1864, %v1872
    %v1877 = vadd.f32 %v1865, %v1872
    %v1878 = vadd.f32 %v1866, %v1872
    %v1879 = vadd.f32 %v1867, %v1872
    %v1880 = vadd.f32 %v1868, %v1872
    %v1881 = vadd.f32 %v1869, %v1872
    %v1882 = vadd.f32 %v1870, %v1872
    %v1883 = vmax.f32 %v1874, 0.0
    %v1884 = vmax.f32 %v1875, 0.0
    %v1885 = vmax.f32 %v1876, 0.0
    %v1886 = vmax.f32 %v1877, 0.0
    %v1887 = vmax.f32 %v1878, 0.0
    %v1888 = vmax.f32 %v1879, 0.0
    %v1889 = vmax.f32 %v1880, 0.0
    %v1890 = vmax.f32 %v1881, 0.0
    %v1891 = vmax.f32 %v1882, 0.0
    %v1894 = vrot.slane %v1883, 2
    %v1895 = vrot.slane %v1884, 2
    %v1896 = vsel %vm194, %v1894, %v1895
    %v1898 = vrot.slane %v1884, 4
    %v1901 = vrot.slane %v1885, 6
    %v1904 = vrot.slane %v1887, 4
    %v1907 = vrot.slane %v1888, 6
    %v1911 = vrot.slane %v1889, 2
    %v1912 = vrot.slane %v1890, 2
    %v1913 = vsel %vm194, %v1911, %v1912
    %v1915 = vsel %vm199, %v1883, %v1896
    %v1916 = vsel %vm199, %v1898, %v1901
    %v1917 = vsel %vm199, %v1904, %v1907
    %v1918 = vsel %vm199, %v1889, %v1913
    %v1919 = vrot.slane %v1883, 1
    %v1921 = vrot.slane %v1883, 3
    %v1922 = vrot.slane %v1884, 3
    %v1923 = vsel %vm353, %v1921, %v1922
    %v1925 = vrot.slane %v1884, 5
    %v1926 = vrot.slane %v1885, 5
    %v1927 = vsel %vm357, %v1925, %v1926
    %v1929 = vrot.slane %v1885, 7
    %v1931 = vrot.slane %v1887, 5
    %v1932 = vrot.slane %v1888, 5
    %v1933 = vsel %vm357, %v1931, %v1932
    %v1935 = vrot.slane %v1888, 7
    %v1937 = vrot.slane %v1889, 1
    %v1939 = vrot.slane %v1889, 3
    %v1940 = vrot.slane %v1890, 3
    %v1941 = vsel %vm353, %v1939, %v1940
    %v1943 = vsel %vm199, %v1919, %v1923
    %v1944 = vsel %vm199, %v1927, %v1929
    %v1945 = vsel %vm199, %v1933, %v1935
    %v1946 = vsel %vm199, %v1937, %v1941
    %v1948 = vrot.slane %v1884, 6
    %v1949 = vsel %vm204, %v1948, %v1901
    %v1951 = vrot.slane %v1887, 6
    %v1952 = vsel %vm204, %v1951, %v1907
    %v1955 = vrot.slane %v1890, 4
    %v1957 = vsel %vm199, %v1894, %v1898
    %v1958 = vsel %vm199, %v1949, %v1885
    %v1959 = vsel %vm199, %v1952, %v1888
    %v1960 = vsel %vm199, %v1911, %v1955
    %v1961 = vrot.slane %v1883, 6
    %v1962 = vsel %vm204, %v1961, %v1948
    %v1964 = vrot.slane %v1885, 2
    %v1967 = vrot.slane %v1886, 4
    %v1969 = vrot.slane %v1888, 2
    %v1971 = vrot.slane %v1889, 4
    %v1973 = vrot.slane %v1889, 6
    %v1974 = vrot.slane %v1890, 6
    %v1975 = vsel %vm204, %v1973, %v1974
    %v1977 = vsel %vm199, %v1962, %v1884
    %v1978 = vsel %vm199, %v1964, %v1967
    %v1979 = vsel %vm199, %v1969, %v1971
    %v1980 = vsel %vm199, %v1975, %v1890
    %v1981 = vrot.slane %v1883, 7
    %v1982 = vrot.slane %v1884, 7
    %v1983 = vsel %vm361, %v1981, %v1982
    %v1985 = vrot.slane %v1884, 1
    %v1986 = vrot.slane %v1885, 1
    %v1987 = vsel %vm349, %v1985, %v1986
    %v1989 = vrot.slane %v1885, 3
    %v1991 = vrot.slane %v1886, 5
    %v1993 = vrot.slane %v1888, 3
    %v1995 = vrot.slane %v1889, 5
    %v1997 = vrot.slane %v1889, 7
    %v1998 = vrot.slane %v1890, 7
    %v1999 = vsel %vm361, %v1997, %v1998
    %v2002 = vrot.slane %v1890, 1
    %v2003 = vrot.slane %v1891, 1
    %v2004 = vsel %vm349, %v2002, %v2003
    %v2006 = vsel %vm199, %v1983, %v1987
    %v2007 = vsel %vm199, %v1989, %v1991
    %v2008 = vsel %vm199, %v1993, %v1995
    %v2009 = vsel %vm199, %v1999, %v2004
    %v2010 = vsel %vm194, %v1895, %v1964
    %v2012 = vrot.slane %v1885, 4
    %v2014 = vrot.slane %v1886, 6
    %v2016 = vrot.slane %v1888, 4
    %v2019 = vrot.slane %v1891, 2
    %v2020 = vsel %vm194, %v1912, %v2019
    %v2022 = vsel %vm199, %v1884, %v2010
    %v2023 = vsel %vm199, %v2012, %v2014
    %v2024 = vsel %vm199, %v2016, %v1973
    %v2025 = vsel %vm199, %v1890, %v2020
    %v2026 = vrot.slane %v1886, 2
    %v2027 = vrot.slane %v1887, 2
    %v2028 = vsel %vm194, %v2026, %v2027
    %v2030 = vrot.slane %v1891, 6
    %v2032 = vsel %vm199, %v1886, %v2028
    %v2033 = vsel %vm199, %v1955, %v2030
    %v2034 = vrot.slane %v1886, 1
    %v2036 = vrot.slane %v1886, 3
    %v2037 = vrot.slane %v1887, 3
    %v2038 = vsel %vm353, %v2036, %v2037
    %v2040 = vrot.slane %v1890, 5
    %v2041 = vrot.slane %v1891, 5
    %v2042 = vsel %vm357, %v2040, %v2041
    %v2044 = vrot.slane %v1891, 7
    %v2046 = vsel %vm199, %v2034, %v2038
    %v2047 = vsel %vm199, %v2042, %v2044
    %v2049 = vsel %vm204, %v1974, %v2030
    %v2051 = vsel %vm199, %v2026, %v1904
    %v2052 = vsel %vm199, %v2049, %v1891
    %2057 = vrot.lane.b32.xlu0 %v1943, 32
    %v2058 = vpop.permute.xlu0 %2057
    %2059 = vrot.lane.b32.xlu0 %v1944, 32
    %v2060 = vpop.permute.xlu0 %2059
    %2061 = vrot.lane.b32.xlu0 %v1945, 32
    %v2062 = vpop.permute.xlu0 %2061
    %2063 = vrot.lane.b32.xlu0 %v1946, 32
    %v2064 = vpop.permute.xlu0 %2063
    %2073 = vrot.lane.b32.xlu0 %v1957, 64
    %v2074 = vpop.permute.xlu0 %2073
    %2075 = vrot.lane.b32.xlu0 %v1958, 64
    %v2076 = vpop.permute.xlu0 %2075
    %2077 = vrot.lane.b32.xlu0 %v1959, 64
    %v2078 = vpop.permute.xlu0 %2077
    %2079 = vrot.lane.b32.xlu0 %v1960, 64
    %v2080 = vpop.permute.xlu0 %2079
    %2089 = vrot.lane.b32.xlu0 %v1977, 96
    %v2090 = vpop.permute.xlu0 %2089
    %2091 = vrot.lane.b32.xlu0 %v1978, 96
    %v2092 = vpop.permute.xlu0 %2091
    %2093 = vrot.lane.b32.xlu0 %v1979, 96
    %v2094 = vpop.permute.xlu0 %2093
    %2095 = vrot.lane.b32.xlu0 %v1980, 96
    %v2096 = vpop.permute.xlu0 %2095
    %2105 = vrot.lane.b32.xlu0 %v2022, 32
    %v2106 = vpop.permute.xlu0 %2105
    %2107 = vrot.lane.b32.xlu0 %v2023, 32
    %v2108 = vpop.permute.xlu0 %2107
    %2109 = vrot.lane.b32.xlu0 %v2024, 32
    %v2110 = vpop.permute.xlu0 %2109
    %2111 = vrot.lane.b32.xlu0 %v2025, 32
    %v2112 = vpop.permute.xlu0 %2111
    %2121 = vrot.lane.b32.xlu0 %v1916, 64
    %v2122 = vpop.permute.xlu0 %2121
    %2123 = vrot.lane.b32.xlu0 %v2032, 64
    %v2124 = vpop.permute.xlu0 %2123
    %2125 = vrot.lane.b32.xlu0 %v1918, 64
    %v2126 = vpop.permute.xlu0 %2125
    %2127 = vrot.lane.b32.xlu0 %v2033, 64
    %v2128 = vpop.permute.xlu0 %2127
    %2135 = vrot.lane.b32.xlu0 %v1944, 96
    %v2136 = vpop.permute.xlu0 %2135
    %2137 = vrot.lane.b32.xlu0 %v2046, 96
    %v2138 = vpop.permute.xlu0 %2137
    %2139 = vrot.lane.b32.xlu0 %v1946, 96
    %v2140 = vpop.permute.xlu0 %2139
    %2141 = vrot.lane.b32.xlu0 %v2047, 96
    %v2142 = vpop.permute.xlu0 %2141
    %v2147 = vsel %vm1587, %v1915, %v2058
    %v2148 = vsel %vm1587, %v1916, %v2060
    %v2149 = vsel %vm1587, %v1917, %v2062
    %v2150 = vsel %vm1587, %v1918, %v2064
    %v2151 = vsel %vm1607, %v2147, %v2074
    %v2152 = vsel %vm1607, %v2148, %v2076
    %v2153 = vsel %vm1607, %v2149, %v2078
    %v2154 = vsel %vm1607, %v2150, %v2080
    %v2155 = vsel %vm1627, %v2151, %v2090
    %v2156 = vsel %vm1627, %v2152, %v2092
    %v2157 = vsel %vm1627, %v2153, %v2094
    %v2158 = vsel %vm1627, %v2154, %v2096
    %v2159 = vsel %vm1587, %v2006, %v2106
    %v2160 = vsel %vm1587, %v2007, %v2108
    %v2161 = vsel %vm1587, %v2008, %v2110
    %v2162 = vsel %vm1587, %v2009, %v2112
    %v2163 = vsel %vm1607, %v2159, %v2122
    %v2164 = vsel %vm1607, %v2160, %v2124
    %v2165 = vsel %vm1607, %v2161, %v2126
    %v2166 = vsel %vm1607, %v2162, %v2128
    %v2167 = vsel %vm1627, %v2163, %v2136
    %v2168 = vsel %vm1627, %v2164, %v2138
    %v2169 = vsel %vm1627, %v2165, %v2140
    %v2170 = vsel %vm1627, %v2166, %v2142
    %v2171 = vld [vmem:[%s9] sm:$0xff]
    %v2172 = vld [vmem:[%s9 + $0x8] sm:$0xff]
    %v2173 = vld [vmem:[%s9 + $0x10] sm:$0xff]
    %v2174 = vld [vmem:[%s9 + $0x18] sm:$0xff]
    %v2175 = vld [vmem:[%s9 + $0x20] sm:$0xff]
    %v2176 = vld [vmem:[%s9 + $0x28] sm:$0xff]
    %v2177 = vld [vmem:[%s9 + $0x30] sm:$0xff]
    %v2178 = vld [vmem:[%s9 + $0x38] sm:$0xff]
    %v2179 = vld [vmem:[%s9 + $0x40] sm:$0xff]
    %v2180 = vld [vmem:[%s9 + $0x48] sm:$0xff]
    %v2181 = vld [vmem:[%s9 + $0x50] sm:$0xff]
    %v2182 = vld [vmem:[%s9 + $0x58] sm:$0xff]
    %v2183 = vld [vmem:[%s9 + $0x60] sm:$0xff]
    %v2184 = vld [vmem:[%s9 + $0x68] sm:$0xff]
    %v2185 = vld [vmem:[%s9 + $0x70] sm:$0xff]
    %v2186 = vld [vmem:[%s9 + $0x78] sm:$0xff]
    %v2187 = vld [vmem:[%s9 + $0x80] sm:$0xff]
    %v2188 = vld [vmem:[%s9 + $0x88] sm:$0xff]
    %v2189 = vld [vmem:[%s9 + $0x90] sm:$0xff]
    %v2190 = vld [vmem:[%s9 + $0x98] sm:$0xff]
    %v2191 = vld [vmem:[%s9 + $0xa0] sm:$0xff]
    %v2192 = vld [vmem:[%s9 + $0xa8] sm:$0xff]
    %v2193 = vld [vmem:[%s9 + $0xb0] sm:$0xff]
    %v2194 = vld [vmem:[%s9 + $0xb8] sm:$0xff]
    %v2195 = vld [vmem:[%s9 + $0xc0] sm:$0xff]
    %v2196 = vld [vmem:[%s9 + $0xc8] sm:$0xff]
    %v2197 = vld [vmem:[%s9 + $0xd0] sm:$0xff]
    %v2198 = vld [vmem:[%s9 + $0xd8] sm:$0xff]
    %v2199 = vld [vmem:[%s9 + $0xe0] sm:$0xff]
    %v2200 = vld [vmem:[%s9 + $0xe8] sm:$0xff]
    %v2201 = vld [vmem:[%s9 + $0xf0] sm:$0xff]
    %v2202 = vld [vmem:[%s9 + $0xf8] sm:$0xff]
    %v2203 = vld [vmem:[%s9 + $0x100] sm:$0xff]
    %v2204 = vld [vmem:[%s9 + $0x108] sm:$0xff]
    %v2205 = vld [vmem:[%s9 + $0x110] sm:$0xff]
    %v2206 = vld [vmem:[%s9 + $0x118] sm:$0xff]
    %v2207 = vld [vmem:[%s10] sm:$0x1]
    %v2209 = vperm.slane %v2207, 0
    %v2211 = vsel %vm1587, %v1958, 0
    %v2214 = vsel %vm1587, %v2051, 0
    %v2216 = vsel %vm1587, %v1960, 0
    %v2219 = vsel %vm1587, %v2052, 0
    %2221 = vmatpush.msra.mxu0 %v2186
    %2222 = vmatpush.msra.mxu0 %v2185
    %2223 = vmatpush.msra.mxu0 %v2184
    %2224 = vmatpush.msra.mxu0 %v2183
    %2225 = vmatpush.msra.mxu0 %v2182
    %2226 = vmatpush.msra.mxu0 %v2181
    %2227 = vmatpush.msra.mxu0 %v2180
    %2228 = vmatpush.msra.mxu0 %v2179
    %2229 = vmatpush.msra.mxu0 %v2178
    %2230 = vmatpush.msra.mxu0 %v2177
    %2231 = vmatpush.msra.mxu0 %v2176
    %2232 = vmatpush.msra.mxu0 %v2175
    %2233 = vmatpush.msra.mxu0 %v2174
    %2234 = vmatpush.msra.mxu0 %v2173
    %2235 = vmatpush.msra.mxu0 %v2172
    %2236 = vmatpush.msra.mxu0 %v2171
    %2237 = vmatmul.f32.gmra.mxu0 %v2155
    %v2238 = vpop.f32.mrf.mxu0
    %v2239 = vadd.f32 %v2209, %v2238
    %2240 = vmatmul.f32.gmra.mxu0 %v2156
    %v2241 = vpop.f32.mrf.mxu0
    %v2242 = vadd.f32 %v2209, %v2241
    %2243 = vmatmul.f32.gmra.mxu0 %v2157
    %v2244 = vpop.f32.mrf.mxu0
    %v2245 = vadd.f32 %v2209, %v2244
    %2246 = vmatmul.f32.gmra.mxu0 %v2158
    %v2247 = vpop.f32.mrf.mxu0
    %v2248 = vadd.f32 %v2209, %v2247
    %2249 = vdwg.mxu0
    %2250 = vmatpush.msra.mxu0 %v2202
    %2251 = vmatpush.msra.mxu0 %v2201
    %2252 = vmatpush.msra.mxu0 %v2200
    %2253 = vmatpush.msra.mxu0 %v2199
    %2254 = vmatpush.msra.mxu0 %v2198
    %2255 = vmatpush.msra.mxu0 %v2197
    %2256 = vmatpush.msra.mxu0 %v2196
    %2257 = vmatpush.msra.mxu0 %v2195
    %2258 = vmatpush.msra.mxu0 %v2194
    %2259 = vmatpush.msra.mxu0 %v2193
    %2260 = vmatpush.msra.mxu0 %v2192
    %2261 = vmatpush.msra.mxu0 %v2191
    %2262 = vmatpush.msra.mxu0 %v2190
    %2263 = vmatpush.msra.mxu0 %v2189
    %2264 = vmatpush.msra.mxu0 %v2188
    %2265 = vmatpush.msra.mxu0 %v2187
    %2266 = vmatmul.f32.gmra.mxu0 %v2167
    %v2267 = vpop.f32.mrf.mxu0
    %v2268 = vadd.f32 %v2239, %v2267
    %2269 = vmatmul.f32.gmra.mxu0 %v2168
    %v2270 = vpop.f32.mrf.mxu0
    %v2271 = vadd.f32 %v2242, %v2270
    %2272 = vmatmul.f32.gmra.mxu0 %v2169
    %v2273 = vpop.f32.mrf.mxu0
    %v2274 = vadd.f32 %v2245, %v2273
    %2275 = vmatmul.f32.gmra.mxu0 %v2170
    %v2276 = vpop.f32.mrf.mxu0
    %v2277 = vadd.f32 %v2248, %v2276
    %2278 = vdwg.mxu0
    %2279 = vmatpush.msra.mxu0 0.0
    %2280 = vmatpush.msra.mxu0 0.0
    %2281 = vmatpush.msra.mxu0 0.0
    %2282 = vmatpush.msra.mxu0 0.0
    %2283 = vmatpush.msra.mxu0 0.0
    %2284 = vmatpush.msra.mxu0 0.0
    %2285 = vmatpush.msra.mxu0 0.0
    %2286 = vmatpush.msra.mxu0 0.0
    %2287 = vmatpush.msra.mxu0 0.0
    %2288 = vmatpush.msra.mxu0 0.0
    %2289 = vmatpush.msra.mxu0 0.0
    %2290 = vmatpush.msra.mxu0 0.0
    %2291 = vmatpush.msra.mxu0 %v2206
    %2292 = vmatpush.msra.mxu0 %v2205
    %2293 = vmatpush.msra.mxu0 %v2204
    %2294 = vmatpush.msra.mxu0 %v2203
    %2295 = vmatmul.f32.gmra.mxu0 %v2211
    %v2296 = vpop.f32.mrf.mxu0
    %v2297 = vadd.f32 %v2268, %v2296
    %2298 = vmatmul.f32.gmra.mxu0 %v2214
    %v2299 = vpop.f32.mrf.mxu0
    %v2300 = vadd.f32 %v2271, %v2299
    %2301 = vmatmul.f32.gmra.mxu0 %v2216
    %v2302 = vpop.f32.mrf.mxu0
    %v2303 = vadd.f32 %v2274, %v2302
    %2304 = vmatmul.f32.gmra.mxu0 %v2219
    %v2305 = vpop.f32.mrf.mxu0
    %v2306 = vadd.f32 %v2277, %v2305
    %2307 = vdwg.mxu0
    %v2308 = vld [vmem:[%s11] sm:$0x1]
    %v2309 = vld [vmem:[%s12] sm:$0x1]
    %v2310 = vsel %vm1587, %v2297, 0.0
    %v2311 = vsel %vm1587, %v2300, 0.0
    %v2312 = vadd.f32 %v2310, %v2311
    %v2313 = vsel %vm1587, %v2303, 0.0
    %v2314 = vadd.f32 %v2312, %v2313
    %v2315 = vsel %vm1587, %v2306, 0.0
    %v2316 = vadd.f32 %v2314, %v2315
    %v2317 = vrot.slane %v2316, 4
    %v2318 = vadd.f32 %v2316, %v2317
    %v2319 = vrot.slane %v2318, 2
    %v2320 = vadd.f32 %v2318, %v2319
    %v2321 = vrot.slane %v2320, 1
    %v2322 = vadd.f32 %v2320, %v2321
    %v2323 = vmul.f32 %v2297, %v2297
    %v2324 = vmul.f32 %v2300, %v2300
    %v2325 = vmul.f32 %v2303, %v2303
    %v2326 = vmul.f32 %v2306, %v2306
    %v2327 = vsel %vm1587, %v2323, 0.0
    %v2328 = vsel %vm1587, %v2324, 0.0
    %v2329 = vadd.f32 %v2327, %v2328
    %v2330 = vsel %vm1587, %v2325, 0.0
    %v2331 = vadd.f32 %v2329, %v2330
    %v2332 = vsel %vm1587, %v2326, 0.0
    %v2333 = vadd.f32 %v2331, %v2332
    %v2334 = vrot.slane %v2333, 4
    %v2335 = vadd.f32 %v2333, %v2334
    %v2336 = vrot.slane %v2335, 2
    %v2337 = vadd.f32 %v2335, %v2336
    %v2338 = vrot.slane %v2337, 1
    %v2339 = vadd.f32 %v2337, %v2338
    %v2340 = vmul.f32 %v2322, 0.03125
    %v2341 = vmul.f32 %v2339, 0.03125
    %v2342 = vmul.f32 %v2340, %v2340
    %v2343 = vsub.f32 %v2341, %v2342
    %v2344 = vadd.f32 %v2343, 1e-05
    %v2345 = vrsqrt.pop %v2344
    %v2346 = vmul.f32 %v2345, %v2344
    %v2347 = vmul.f32 %v2346, %v2345
    %v2348 = vmul.f32 0.5, %v2347
    %v2349 = vsub.f32 1.5, %v2348
    %v2350 = vmul.f32 %v2345, %v2349
    %vm2351 = vweird.f32 %v2344
    %vm2352 = vweird.f32 %v2345
    %vm2353 = vmor %vm2351, %vm2352
    %v2354 = vsel %vm2353, %v2345, %v2350
    %v2355 = vmul.f32 %v2308, %v2354
    %v2356 = vmul.f32 %v2340, %v2355
    %v2357 = vsub.f32 %v2309, %v2356
    %v2359 = vperm.slane %v2355, 0
    %v2361 = vmul.f32 %v2297, %v2359
    %v2362 = vmul.f32 %v2300, %v2359
    %v2363 = vmul.f32 %v2303, %v2359
    %v2364 = vmul.f32 %v2306, %v2359
    %v2366 = vperm.slane %v2357, 0
    %v2368 = vadd.f32 %v2361, %v2366
    %v2369 = vadd.f32 %v2362, %v2366
    %v2370 = vadd.f32 %v2363, %v2366
    %v2371 = vadd.f32 %v2364, %v2366
    %v2372 = vmax.f32 %v2368, 0.0
    %v2373 = vmax.f32 %v2369, 0.0
    %v2374 = vmax.f32 %v2370, 0.0
    %v2375 = vmax.f32 %v2371, 0.0
    %v2377 = vrot.slane %v2372, 1
    %2378 = vrot.lane.b32.xlu0 %v2377, 32
    %v2379 = vpop.permute.xlu0 %2378
    %v2381 = vrot.slane %v2372, 2
    %2382 = vrot.lane.b32.xlu0 %v2381, 64
    %v2383 = vpop.permute.xlu0 %2382
    %v2385 = vrot.slane %v2372, 3
    %2386 = vrot.lane.b32.xlu0 %v2385, 96
    %v2387 = vpop.permute.xlu0 %2386
    %v2389 = vrot.slane %v2372, 4
    %v2391 = vrot.slane %v2372, 5
    %2392 = vrot.lane.b32.xlu0 %v2391, 32
    %v2393 = vpop.permute.xlu0 %2392
    %v2395 = vrot.slane %v2372, 6
    %2396 = vrot.lane.b32.xlu0 %v2395, 64
    %v2397 = vpop.permute.xlu0 %2396
    %v2399 = vrot.slane %v2372, 7
    %2400 = vrot.lane.b32.xlu0 %v2399, 96
    %v2401 = vpop.permute.xlu0 %2400
    %v2404 = vrot.slane %v2373, 1
    %2405 = vrot.lane.b32.xlu0 %v2404, 32
    %v2406 = vpop.permute.xlu0 %2405
    %v2408 = vrot.slane %v2373, 2
    %2409 = vrot.lane.b32.xlu0 %v2408, 64
    %v2410 = vpop.permute.xlu0 %2409
    %v2412 = vrot.slane %v2373, 3
    %2413 = vrot.lane.b32.xlu0 %v2412, 96
    %v2414 = vpop.permute.xlu0 %2413
    %v2416 = vrot.slane %v2373, 4
    %v2418 = vrot.slane %v2373, 5
    %2419 = vrot.lane.b32.xlu0 %v2418, 32
    %v2420 = vpop.permute.xlu0 %2419
    %v2422 = vrot.slane %v2373, 6
    %2423 = vrot.lane.b32.xlu0 %v2422, 64
    %v2424 = vpop.permute.xlu0 %2423
    %v2426 = vrot.slane %v2373, 7
    %2427 = vrot.lane.b32.xlu0 %v2426, 96
    %v2428 = vpop.permute.xlu0 %2427
    %v2430 = vsel %vm1587, %v2372, %v2379
    %v2431 = vsel %vm1607, %v2430, %v2383
    %v2432 = vsel %vm1627, %v2431, %v2387
    %v2433 = vsel %vm1587, %v2389, %v2393
    %v2434 = vsel %vm1607, %v2433, %v2397
    %v2435 = vsel %vm1627, %v2434, %v2401
    %v2436 = vsel %vm1587, %v2373, %v2406
    %v2437 = vsel %vm1607, %v2436, %v2410
    %v2438 = vsel %vm1627, %v2437, %v2414
    %v2439 = vsel %vm1587, %v2416, %v2420
    %v2440 = vsel %vm1607, %v2439, %v2424
    %v2441 = vsel %vm1627, %v2440, %v2428
    %v2443 = vrot.slane %v2374, 1
    %2444 = vrot.lane.b32.xlu0 %v2443, 32
    %v2445 = vpop.permute.xlu0 %2444
    %v2447 = vrot.slane %v2374, 2
    %2448 = vrot.lane.b32.xlu0 %v2447, 64
    %v2449 = vpop.permute.xlu0 %2448
    %v2451 = vrot.slane %v2374, 3
    %2452 = vrot.lane.b32.xlu0 %v2451, 96
    %v2453 = vpop.permute.xlu0 %2452
    %v2455 = vrot.slane %v2374, 4
    %v2457 = vrot.slane %v2374, 5
    %2458 = vrot.lane.b32.xlu0 %v2457, 32
    %v2459 = vpop.permute.xlu0 %2458
    %v2461 = vrot.slane %v2374, 6
    %2462 = vrot.lane.b32.xlu0 %v2461, 64
    %v2463 = vpop.permute.xlu0 %2462
    %v2465 = vrot.slane %v2374, 7
    %2466 = vrot.lane.b32.xlu0 %v2465, 96
    %v2467 = vpop.permute.xlu0 %2466
    %v2470 = vrot.slane %v2375, 1
    %2471 = vrot.lane.b32.xlu0 %v2470, 32
    %v2472 = vpop.permute.xlu0 %2471
    %v2474 = vrot.slane %v2375, 2
    %2475 = vrot.lane.b32.xlu0 %v2474, 64
    %v2476 = vpop.permute.xlu0 %2475
    %v2478 = vrot.slane %v2375, 3
    %2479 = vrot.lane.b32.xlu0 %v2478, 96
    %v2480 = vpop.permute.xlu0 %2479
    %v2482 = vrot.slane %v2375, 4
    %v2484 = vrot.slane %v2375, 5
    %2485 = vrot.lane.b32.xlu0 %v2484, 32
    %v2486 = vpop.permute.xlu0 %2485
    %v2488 = vrot.slane %v2375, 6
    %2489 = vrot.lane.b32.xlu0 %v2488, 64
    %v2490 = vpop.permute.xlu0 %2489
    %v2492 = vrot.slane %v2375, 7
    %2493 = vrot.lane.b32.xlu0 %v2492, 96
    %v2494 = vpop.permute.xlu0 %2493
    %v2496 = vsel %vm1587, %v2374, %v2445
    %v2497 = vsel %vm1607, %v2496, %v2449
    %v2498 = vsel %vm1627, %v2497, %v2453
    %v2499 = vsel %vm1587, %v2455, %v2459
    %v2500 = vsel %vm1607, %v2499, %v2463
    %v2501 = vsel %vm1627, %v2500, %v2467
    %v2502 = vsel %vm1587, %v2375, %v2472
    %v2503 = vsel %vm1607, %v2502, %v2476
    %v2504 = vsel %vm1627, %v2503, %v2480
    %v2505 = vsel %vm1587, %v2482, %v2486
    %v2506 = vsel %vm1607, %v2505, %v2490
    %v2507 = vsel %vm1627, %v2506, %v2494
    %v2512 = vrot.slane %v2498, 7
    %v2513 = vrot.slane %v2501, 7
    %v2514 = vrot.slane %v2504, 7
    %v2515 = vrot.slane %v2507, 7
    %v2520 = vsel %vm361, %v2432, %v2512
    %v2521 = vsel %vm361, %v2435, %v2513
    %v2522 = vsel %vm361, %v2438, %v2514
    %v2523 = vsel %vm361, %v2441, %v2515
    %v2524 = vld [vmem:[#allocation13] sm:$0xff]
    %v2525 = vld [vmem:[#allocation13 + $0x8] sm:$0xff]
    %v2526 = vld [vmem:[#allocation13 + $0x10] sm:$0xff]
    %v2527 = vld [vmem:[#allocation13 + $0x18] sm:$0xff]
    %v2528 = vld [vmem:[#allocation13 + $0x20] sm:$0xff]
    %v2529 = vld [vmem:[#allocation13 + $0x28] sm:$0xff]
    %v2530 = vld [vmem:[#allocation13 + $0x30] sm:$0xff]
    %v2531 = vld [vmem:[#allocation13 + $0x38] sm:$0xff]
    %v2532 = vld [vmem:[#allocation13 + $0x40] sm:$0xff]
    %v2533 = vld [vmem:[#allocation13 + $0x48] sm:$0xff]
    %v2534 = vld [vmem:[#allocation13 + $0x50] sm:$0xff]
    %v2535 = vld [vmem:[#allocation13 + $0x58] sm:$0xff]
    %v2536 = vld [vmem:[#allocation13 + $0x60] sm:$0xff]
    %v2537 = vld [vmem:[#allocation13 + $0x68] sm:$0xff]
    %v2538 = vld [vmem:[#allocation13 + $0x70] sm:$0xff]
    %v2539 = vld [vmem:[#allocation13 + $0x78] sm:$0xff]
    %v2540 = vld [vmem:[#allocation13 + $0x80] sm:$0xff]
    %v2541 = vld [vmem:[#allocation13 + $0x88] sm:$0xff]
    %v2542 = vld [vmem:[#allocation13 + $0x90] sm:$0xff]
    %v2543 = vld [vmem:[#allocation13 + $0x98] sm:$0xff]
    %v2544 = vld [vmem:[#allocation13 + $0xa0] sm:$0xff]
    %v2545 = vld [vmem:[#allocation13 + $0xa8] sm:$0xff]
    %v2546 = vld [vmem:[#allocation13 + $0xb0] sm:$0xff]
    %v2547 = vld [vmem:[#allocation13 + $0xb8] sm:$0xff]
    %v2548 = vld [vmem:[#allocation13 + $0xc0] sm:$0xff]
    %v2549 = vld [vmem:[#allocation13 + $0xc8] sm:$0xff]
    %v2550 = vld [vmem:[#allocation13 + $0xd0] sm:$0xff]
    %v2551 = vld [vmem:[#allocation13 + $0xd8] sm:$0xff]
    %v2552 = vld [vmem:[#allocation13 + $0xe0] sm:$0xff]
    %v2553 = vld [vmem:[#allocation13 + $0xe8] sm:$0xff]
    %v2554 = vld [vmem:[#allocation13 + $0xf0] sm:$0xff]
    %v2555 = vld [vmem:[#allocation13 + $0xf8] sm:$0xff]
    %v2556 = vld [vmem:[#allocation13 + $0x100] sm:$0xff]
    %v2557 = vld [vmem:[#allocation13 + $0x108] sm:$0xff]
    %v2558 = vld [vmem:[#allocation13 + $0x110] sm:$0xff]
    %v2559 = vld [vmem:[#allocation13 + $0x118] sm:$0xff]
    %v2560 = vld [vmem:[#allocation13 + $0x120] sm:$0xff]
    %v2561 = vld [vmem:[#allocation13 + $0x128] sm:$0xff]
    %v2562 = vld [vmem:[#allocation13 + $0x130] sm:$0xff]
    %v2563 = vld [vmem:[#allocation13 + $0x138] sm:$0xff]
    %v2564 = vld [vmem:[#allocation13 + $0x140] sm:$0xff]
    %v2565 = vld [vmem:[#allocation13 + $0x148] sm:$0xff]
    %v2566 = vld [vmem:[#allocation13 + $0x150] sm:$0xff]
    %v2567 = vld [vmem:[#allocation13 + $0x158] sm:$0xff]
    %v2568 = vld [vmem:[#allocation13 + $0x160] sm:$0xff]
    %v2569 = vld [vmem:[#allocation13 + $0x168] sm:$0xff]
    %v2570 = vld [vmem:[#allocation13 + $0x170] sm:$0xff]
    %v2571 = vld [vmem:[#allocation13 + $0x178] sm:$0xff]
    %v2572 = vld [vmem:[#allocation13 + $0x180] sm:$0xff]
    %v2573 = vld [vmem:[#allocation13 + $0x188] sm:$0xff]
    %v2574 = vld [vmem:[#allocation13 + $0x190] sm:$0xff]
    %v2575 = vld [vmem:[#allocation13 + $0x198] sm:$0xff]
    %v2576 = vld [vmem:[#allocation13 + $0x1a0] sm:$0xff]
    %v2577 = vld [vmem:[#allocation13 + $0x1a8] sm:$0xff]
    %v2578 = vld [vmem:[#allocation13 + $0x1b0] sm:$0xff]
    %v2579 = vld [vmem:[#allocation13 + $0x1b8] sm:$0xff]
    %v2580 = vld [vmem:[#allocation13 + $0x1c0] sm:$0xff]
    %v2581 = vld [vmem:[#allocation13 + $0x1c8] sm:$0xff]
    %v2582 = vld [vmem:[#allocation13 + $0x1d0] sm:$0xff]
    %v2583 = vld [vmem:[#allocation13 + $0x1d8] sm:$0xff]
    %v2584 = vld [vmem:[#allocation13 + $0x1e0] sm:$0xff]
    %v2585 = vld [vmem:[#allocation13 + $0x1e8] sm:$0xff]
    %v2586 = vld [vmem:[#allocation13 + $0x1f0] sm:$0xff]
    %v2587 = vld [vmem:[#allocation13 + $0x1f8] sm:$0xff]
    %v2588 = vld [vmem:[%s14] sm:$0x1]
    %v2590 = vperm.slane %v2588, 0
    %2592 = vmatpush.msra.mxu0 %v2539
    %2593 = vmatpush.msra.mxu0 %v2538
    %2594 = vmatpush.msra.mxu0 %v2537
    %2595 = vmatpush.msra.mxu0 %v2536
    %2596 = vmatpush.msra.mxu0 %v2535
    %2597 = vmatpush.msra.mxu0 %v2534
    %2598 = vmatpush.msra.mxu0 %v2533
    %2599 = vmatpush.msra.mxu0 %v2532
    %2600 = vmatpush.msra.mxu0 %v2531
    %2601 = vmatpush.msra.mxu0 %v2530
    %2602 = vmatpush.msra.mxu0 %v2529
    %2603 = vmatpush.msra.mxu0 %v2528
    %2604 = vmatpush.msra.mxu0 %v2527
    %2605 = vmatpush.msra.mxu0 %v2526
    %2606 = vmatpush.msra.mxu0 %v2525
    %2607 = vmatpush.msra.mxu0 %v2524
    %2608 = vmatmul.f32.gmra.mxu0 %v2520
    %v2609 = vpop.f32.mrf.mxu0
    %v2610 = vadd.f32 %v2590, %v2609
    %2611 = vdwg.mxu0
    %2612 = vmatpush.msra.mxu0 %v2555
    %2613 = vmatpush.msra.mxu0 %v2554
    %2614 = vmatpush.msra.mxu0 %v2553
    %2615 = vmatpush.msra.mxu0 %v2552
    %2616 = vmatpush.msra.mxu0 %v2551
    %2617 = vmatpush.msra.mxu0 %v2550
    %2618 = vmatpush.msra.mxu0 %v2549
    %2619 = vmatpush.msra.mxu0 %v2548
    %2620 = vmatpush.msra.mxu0 %v2547
    %2621 = vmatpush.msra.mxu0 %v2546
    %2622 = vmatpush.msra.mxu0 %v2545
    %2623 = vmatpush.msra.mxu0 %v2544
    %2624 = vmatpush.msra.mxu0 %v2543
    %2625 = vmatpush.msra.mxu0 %v2542
    %2626 = vmatpush.msra.mxu0 %v2541
    %2627 = vmatpush.msra.mxu0 %v2540
    %2628 = vmatmul.f32.gmra.mxu0 %v2521
    %v2629 = vpop.f32.mrf.mxu0
    %v2630 = vadd.f32 %v2610, %v2629
    %2631 = vdwg.mxu0
    %2632 = vmatpush.msra.mxu0 %v2571
    %2633 = vmatpush.msra.mxu0 %v2570
    %2634 = vmatpush.msra.mxu0 %v2569
    %2635 = vmatpush.msra.mxu0 %v2568
    %2636 = vmatpush.msra.mxu0 %v2567
    %2637 = vmatpush.msra.mxu0 %v2566
    %2638 = vmatpush.msra.mxu0 %v2565
    %2639 = vmatpush.msra.mxu0 %v2564
    %2640 = vmatpush.msra.mxu0 %v2563
    %2641 = vmatpush.msra.mxu0 %v2562
    %2642 = vmatpush.msra.mxu0 %v2561
    %2643 = vmatpush.msra.mxu0 %v2560
    %2644 = vmatpush.msra.mxu0 %v2559
    %2645 = vmatpush.msra.mxu0 %v2558
    %2646 = vmatpush.msra.mxu0 %v2557
    %2647 = vmatpush.msra.mxu0 %v2556
    %2648 = vmatmul.f32.gmra.mxu0 %v2522
    %v2649 = vpop.f32.mrf.mxu0
    %v2650 = vadd.f32 %v2630, %v2649
    %2651 = vdwg.mxu0
    %2652 = vmatpush.msra.mxu0 %v2587
    %2653 = vmatpush.msra.mxu0 %v2586
    %2654 = vmatpush.msra.mxu0 %v2585
    %2655 = vmatpush.msra.mxu0 %v2584
    %2656 = vmatpush.msra.mxu0 %v2583
    %2657 = vmatpush.msra.mxu0 %v2582
    %2658 = vmatpush.msra.mxu0 %v2581
    %2659 = vmatpush.msra.mxu0 %v2580
    %2660 = vmatpush.msra.mxu0 %v2579
    %2661 = vmatpush.msra.mxu0 %v2578
    %2662 = vmatpush.msra.mxu0 %v2577
    %2663 = vmatpush.msra.mxu0 %v2576
    %2664 = vmatpush.msra.mxu0 %v2575
    %2665 = vmatpush.msra.mxu0 %v2574
    %2666 = vmatpush.msra.mxu0 %v2573
    %2667 = vmatpush.msra.mxu0 %v2572
    %2668 = vmatmul.f32.gmra.mxu0 %v2523
    %v2669 = vpop.f32.mrf.mxu0
    %v2670 = vadd.f32 %v2650, %v2669
    %2671 = vdwg.mxu0
    %vm2672 = vcmask 58368
    %2673 = vst.msk [vmem:[%s15] sm:$0x3] %vm2672, %v2670
    // Predicated region
    $region94: #{_lambda_.1} parent=1 // pred_check
      _
    $region95: #{_lambda_.1} parent=1 // pred_check_branch
      %2675 = sbr.rel (0) target = $region97
    $region96: #{_lambda_.1} parent=1 // pred_region
      _
    $region97: #{_lambda_.1} parent=1 // pred_fallthru
      _
    // Predicated region
    $region98: #{_lambda_.1} parent=1 // pred_check
      _
    $region99: #{_lambda_.1} parent=1 // pred_check_branch
      %2677 = sbr.rel (0) target = $region101
    $region100: #{_lambda_.1} parent=1 // pred_region
      _
    $region101: #{_lambda_.1} parent=1 // pred_fallthru
      _
    %2678 = vsyncpa [#allocation3], 1
    %2679 = vsyncpa [#allocation5], 1
    %2680 = vsyncpa [#allocation8], 1
    %2681 = vsyncpa [#allocation11], 1
    %2682 = vsyncpa [#allocation14], 1

</llo_original>
